<compile_context>
chip_gen: v6e
topology: v6e:2x2x1
jax: 0.10.0
libtpu: 0.0.40
codegen_flags: <defaults>
</compile_context>

<pallas_src>
import math
import numpy as np

import jax
import jax.numpy as jnp
from jax.experimental import pallas as pl
from jax.experimental.pallas import tpu as pltpu


# ---------------------------------------------------------------------------
# Host-side construction of flattened spatial operators
# ---------------------------------------------------------------------------
def _round_up(n, m):
    return ((n + m - 1) // m) * m


def _conv_out_size(n, k, stride, pad):
    return (n + 2 * pad - k) // stride + 1


def _band_matrix(out_size, in_size, k):
    """Valid k-wide sum-pooling along one axis: M[i, i:i+k] = 1."""
    m = np.zeros((out_size, in_size), np.float32)
    for i in range(out_size):
        m[i, i:i + k] = 1.0
    return m


def _conv_tap_matrix(out_size, in_size, tap, stride, pad):
    """One kernel tap of a conv along one axis (zero padding folded in)."""
    m = np.zeros((out_size, in_size), np.float32)
    for y in range(out_size):
        j = stride * y + tap - pad
        if 0 <= j < in_size:
            m[y, j] = 1.0
    return m


def _bilinear_matrix(out_size, in_size):
    """Row weights matching torch F.interpolate(mode='bilinear', align_corners=False)."""
    scale = in_size / out_size
    m = np.zeros((out_size, in_size), np.float32)
    for i in range(out_size):
        src = max(scale * (i + 0.5) - 0.5, 0.0)
        i0 = min(int(math.floor(src)), in_size - 1)
        i1 = min(i0 + 1, in_size - 1)
        lam = src - i0
        m[i, i0] += 1.0 - lam
        m[i, i1] += lam
    return m


def _vmem_capacity_bytes():
    """Per-core VMEM capacity; conservative fallback (v7x) if the query fails."""
    try:
        return int(pltpu.get_tpu_info().vmem_capacity_bytes)
    except Exception:
        return 64 * 1024 * 1024


def _pick_batch_tile(B, C, f, HW, S1P, S2P, const_bytes, budget):
    """Largest valid divisor of B whose per-grid-step VMEM footprint fits."""
    def est(tb):
        f4, b2 = 4, 2
        io = 2 * 2 * tb * C * HW * f4                       # x / out, double-buffered
        inter = tb * f * (3 * HW + 3 * S1P + 2 * S2P) * f4  # t1, e, e*t1, num, den/t2, t3
        inter += tb * C * (2 * S2P + 3 * HW) * f4           # t4, w_small, w_full, g, out
        inter += 2 * 9 * tb * f * S2P * b2                  # im2col scratches (bf16)
        wts = 2 * (tb * f * (tb * C + 9 * tb * f) + tb * C * 9 * tb * f) * b2
        return io + inter + wts + const_bytes
    # tb*C must be a multiple of 8 (sublane tiling) unless the block spans B.
    cands = [d for d in range(1, B + 1)
             if B % d == 0 and ((d * C) % 8 == 0 or d == B)]
    fitting = [d for d in cands if est(d) <= budget]
    # Fewest grid steps wins (grid steps are a sequential loop on 1-TC parts).
    # TODO(synk): on v7x (2 TensorCores) prefer >= 2 grid steps when B allows.
    return max(fitting) if fitting else min(cands)


# ---------------------------------------------------------------------------
# Pallas kernel: one batch tile per grid step, everything fused in VMEM
# ---------------------------------------------------------------------------
def _local_attention_kernel(x_ref, gsel_ref, w1_ref, b1_ref, w3_ref, b3_ref,
                            w4_ref, b4_ref, kpool_ref, ksel_ref, kshift_ref,
                            kup_ref, o_ref, col3_ref, col4_ref):
    f32, bf16 = jnp.float32, jnp.bfloat16
    tbF = b1_ref.shape[0]                    # tb * f  (static)

    x = x_ref[...]                           # (tb*C, HW) f32

    # 1x1 conv (block-diagonal across the batch tile).  K = tb*C is tiny, so
    # keep it f32: t1 feeds exp() and benefits from exact inputs.
    t1 = jnp.dot(w1_ref[...], x, preferred_element_type=f32) + b1_ref[...]

    # SoftPooling2D(3, stride=1): sum(e*t)/sum(e) over valid 3x3 windows,
    # implemented as two lane-side matmuls against the 0/1 pooling operator.
    e = jnp.exp(t1)
    kpool = kpool_ref[...]
    num = jnp.dot((e * t1).astype(bf16), kpool, preferred_element_type=f32)
    den = jnp.dot(e.astype(bf16), kpool, preferred_element_type=f32)
    # Padded S1 lanes have den == 0: guard so they stay finite (they are then
    # annihilated by the zero rows of ksel).
    t2 = (num * pl.reciprocal(jnp.maximum(den, 1e-30), approx=True)).astype(bf16)

    # conv3 (3x3, stride 2, pad 1) as im2col: 9 batched spatial selects into a
    # (9*tbF, S2P) scratch, then ONE stacked block-diagonal channel matmul.
    for k in range(9):
        col3_ref[pl.ds(k * tbF, tbF), :] = jnp.dot(
            t2, ksel_ref[k], preferred_element_type=f32).astype(bf16)
    t3 = (jnp.dot(w3_ref[...], col3_ref[...], preferred_element_type=f32)
          + b3_ref[...]).astype(bf16)                                  # (tbF, S2P)

    # conv4 (3x3, stride 1, pad 1), same im2col structure (f -> C).
    for k in range(9):
        col4_ref[pl.ds(k * tbF, tbF), :] = jnp.dot(
            t3, kshift_ref[k], preferred_element_type=f32).astype(bf16)
    t4 = (jnp.dot(w4_ref[...], col4_ref[...], preferred_element_type=f32)
          + b4_ref[...])                                               # (tb*C, S2P)

    # sigmoid + bilinear upsample back to (H, W); output stays lane-dense.
    w_full = jnp.dot(jax.nn.sigmoid(t4).astype(bf16), kup_ref[...],
                     preferred_element_type=f32)                       # (tb*C, HW)

    # Gate: sigmoid of channel 0 of each batch element, broadcast to its C
    # rows with one exact 0/1 selection matmul (keeps the slab fully batched).
    g = jax.nn.sigmoid(jnp.dot(gsel_ref[...], x, preferred_element_type=f32))

    o_ref[...] = (x * w_full * g).astype(o_ref.dtype)


def local_attention(x, w1, b1, w3, b3, w4, b4):
    """x: (B, C, H, W) f32; weights in torch Conv2d layout. Returns (B, C, H, W)."""
    B, C, H, W = x.shape
    f = w1.shape[0]
    HW = H * W
    Hp, Wp = H - 2, W - 2                        # after valid 3x3 soft-pool
    S1 = Hp * Wp
    Hq = _conv_out_size(Hp, 3, 2, 1)
    Wq = _conv_out_size(Wp, 3, 2, 1)             # after stride-2 conv
    S2 = Hq * Wq
    S1P = _round_up(S1, 128)                     # lane-padded intermediates
    S2P = _round_up(S2, 128)

    # ---- host-precomputed flattened spatial operators (lane-padded) --------
    kpool_t = np.zeros((HW, S1P), np.float32)
    kpool_t[:, :S1] = np.kron(_band_matrix(Hp, H, 3), _band_matrix(Wp, W, 3)).T

    ksel_t = np.zeros((9, S1P, S2P), np.float32)
    kshift_t = np.zeros((9, S2P, S2P), np.float32)
    for dy in range(3):
        for dx in range(3):
            k = 3 * dy + dx
            ksel_t[k, :S1, :S2] = np.kron(_conv_tap_matrix(Hq, Hp, dy, 2, 1),
                                          _conv_tap_matrix(Wq, Wp, dx, 2, 1)).T
            kshift_t[k, :S2, :S2] = np.kron(_conv_tap_matrix(Hq, Hq, dy, 1, 1),
                                            _conv_tap_matrix(Wq, Wq, dx, 1, 1)).T

    kup_t = np.zeros((S2P, HW), np.float32)
    kup_t[:S2, :] = np.kron(_bilinear_matrix(H, Hq), _bilinear_matrix(W, Wq)).T

    # ---- batch tile & VMEM budget ------------------------------------------
    const_bytes = 2 * 2 * (kpool_t.size + ksel_t.size + kshift_t.size + kup_t.size)
    cap = _vmem_capacity_bytes()
    vmem_limit = min((3 * cap) // 4, 96 * 1024 * 1024)
    budget = max(vmem_limit - 4 * 1024 * 1024, 8 * 1024 * 1024)
    tb = _pick_batch_tile(B, C, f, HW, S1P, S2P, const_bytes, budget)
    tbC, tbF = tb * C, tb * f

    # ---- block-diagonal (per-batch-tile) channel-mixing weights ------------
    eye = np.eye(tb, dtype=np.float32)
    w1_np = np.asarray(w1, np.float32)
    w3_taps = np.asarray(w3, np.float32).transpose(2, 3, 0, 1).reshape(9, f, f)
    w4_taps = np.asarray(w4, np.float32).transpose(2, 3, 0, 1).reshape(9, C, f)
    w1_bd = np.kron(eye, w1_np)                                       # (tbF, tbC)
    w3_bd = np.concatenate([np.kron(eye, w3_taps[k]) for k in range(9)], axis=1)
    w4_bd = np.concatenate([np.kron(eye, w4_taps[k]) for k in range(9)], axis=1)
    b1_t = np.tile(np.asarray(b1, np.float32).reshape(f, 1), (tb, 1))
    b3_t = np.tile(np.asarray(b3, np.float32).reshape(f, 1), (tb, 1))
    b4_t = np.tile(np.asarray(b4, np.float32).reshape(C, 1), (tb, 1))
    gate_sel = np.zeros((C, C), np.float32)
    gate_sel[:, 0] = 1.0
    gsel = np.kron(eye, gate_sel)                                     # (tbC, tbC)

    x2 = x.reshape(B * C, HW)
    bf16 = jnp.bfloat16
    c2 = lambda i: (0, 0)        # resident 2-D constants (same block every step)
    c3 = lambda i: (0, 0, 0)     # resident 3-D constants

    out = pl.pallas_call(
        _local_attention_kernel,
        out_shape=jax.ShapeDtypeStruct((B * C, HW), x.dtype),
        grid_spec=pltpu.PrefetchScalarGridSpec(
            num_scalar_prefetch=0,
            grid=(B // tb,),
            in_specs=[
                pl.BlockSpec((tbC, HW), lambda i: (i, 0)),        # x slab
                pl.BlockSpec((tbC, tbC), c2),                     # gate selector
                pl.BlockSpec((tbF, tbC), c2),                     # 1x1 conv (block-diag)
                pl.BlockSpec((tbF, 1), c2),                       # b1 (tiled)
                pl.BlockSpec((tbF, 9 * tbF), c2),                 # conv3 stacked weights
                pl.BlockSpec((tbF, 1), c2),                       # b3 (tiled)
                pl.BlockSpec((tbC, 9 * tbF), c2),                 # conv4 stacked weights
                pl.BlockSpec((tbC, 1), c2),                       # b4 (tiled)
                pl.BlockSpec((HW, S1P), c2),                      # soft-pool operator
                pl.BlockSpec((9, S1P, S2P), c3),                  # conv3 spatial taps
                pl.BlockSpec((9, S2P, S2P), c3),                  # conv4 spatial taps
                pl.BlockSpec((S2P, HW), c2),                      # bilinear upsample
            ],
            out_specs=pl.BlockSpec((tbC, HW), lambda i: (i, 0)),
            scratch_shapes=[pltpu.VMEM((9 * tbF, S2P), jnp.bfloat16),
                            pltpu.VMEM((9 * tbF, S2P), jnp.bfloat16)],
        ),
        compiler_params=pltpu.CompilerParams(
            dimension_semantics=("parallel",),
            vmem_limit_bytes=int(vmem_limit),
        ),
    )(x2, jnp.asarray(gsel), jnp.asarray(w1_bd), jnp.asarray(b1_t),
      jnp.asarray(w3_bd, bf16), jnp.asarray(b3_t), jnp.asarray(w4_bd, bf16),
      jnp.asarray(b4_t), jnp.asarray(kpool_t, bf16), jnp.asarray(ksel_t, bf16),
      jnp.asarray(kshift_t, bf16), jnp.asarray(kup_t, bf16))

    return out.reshape(B, C, H, W)


# ---------------------------------------------------------------------------
# Pure-JAX reference (mirrors the PyTorch forward, f32 HIGHEST precision)
# ---------------------------------------------------------------------------
def local_attention_reference(x, w1, b1, w3, b3, w4, b4, uh, uw):
    hp = jax.lax.Precision.HIGHEST
    dn = ('NCHW', 'OIHW', 'NCHW')

    g = jax.nn.sigmoid(x[:, :1])

    t1 = jax.lax.conv_general_dilated(
        x, w1[:, :, None, None], (1, 1), [(0, 0), (0, 0)],
        dimension_numbers=dn, precision=hp) + b1[None, :, None, None]

    def sum_pool3(a):
        return jax.lax.reduce_window(a, 0.0, jax.lax.add,
                                     (1, 1, 3, 3), (1, 1, 1, 1), 'VALID')

    e = jnp.exp(t1)
    t2 = sum_pool3(e * t1) / sum_pool3(e)

    t3 = jax.lax.conv_general_dilated(
        t2, w3, (2, 2), [(1, 1), (1, 1)],
        dimension_numbers=dn, precision=hp) + b3[None, :, None, None]
    t4 = jax.lax.conv_general_dilated(
        t3, w4, (1, 1), [(1, 1), (1, 1)],
        dimension_numbers=dn, precision=hp) + b4[None, :, None, None]
    t5 = jax.nn.sigmoid(t4)

    w_full = jnp.einsum('hH,bcHW,wW->bchw', uh, t5, uw, precision=hp)
    return x * w_full * g


if __name__ == "__main__":
    # Small shapes consistent with LocalAttention(channels=4, f=16)
    B, C, H, W = 2, 4, 16, 16
    f = 16

    key = jax.random.PRNGKey(0)
    ks = jax.random.split(key, 7)
    x = jax.random.normal(ks[0], (B, C, H, W), dtype=jnp.float32)
    w1 = jax.random.normal(ks[1], (f, C), dtype=jnp.float32) / math.sqrt(C)
    b1 = jax.random.normal(ks[2], (f,), dtype=jnp.float32) * 0.1
    w3 = jax.random.normal(ks[3], (f, f, 3, 3), dtype=jnp.float32) / math.sqrt(f * 9)
    b3 = jax.random.normal(ks[4], (f,), dtype=jnp.float32) * 0.1
    w4 = jax.random.normal(ks[5], (C, f, 3, 3), dtype=jnp.float32) / math.sqrt(f * 9)
    b4 = jax.random.normal(ks[6], (C,), dtype=jnp.float32) * 0.1

    out = local_attention(x, w1, b1, w3, b3, w4, b4)
    out = jax.block_until_ready(out)

    # Reference check (independent conv/pool path; same bilinear weight rule).
    Hp, Wp = H - 2, W - 2
    Hq = _conv_out_size(Hp, 3, 2, 1)
    Wq = _conv_out_size(Wp, 3, 2, 1)
    uh = jnp.asarray(_bilinear_matrix(H, Hq))
    uw = jnp.asarray(_bilinear_matrix(W, Wq))
    ref = local_attention_reference(x, w1, b1, w3, b3, w4, b4, uh, uw)
    # Tolerance sized for bf16 MXU operands (f32 accumulation) vs f32-HIGHEST ref.
    np.testing.assert_allclose(np.asarray(out), np.asarray(ref),
                               rtol=4e-2, atol=4e-2)

    print("KERNEL_OK")
</pallas_src>

<mosaic_0001>
module attributes {stable_mosaic.version = 11 : i64} {
  func.func @_local_attention_kernel(%arg0: i32, %arg1: memref<8x256xf32, #tpu.memory_space<vmem>>, %arg2: memref<8x8xf32, #tpu.memory_space<vmem>>, %arg3: memref<32x8xf32, #tpu.memory_space<vmem>>, %arg4: memref<32x1xf32, #tpu.memory_space<vmem>>, %arg5: memref<32x288xbf16, #tpu.memory_space<vmem>>, %arg6: memref<32x1xf32, #tpu.memory_space<vmem>>, %arg7: memref<8x288xbf16, #tpu.memory_space<vmem>>, %arg8: memref<8x1xf32, #tpu.memory_space<vmem>>, %arg9: memref<256x256xbf16, #tpu.memory_space<vmem>>, %arg10: memref<9x256x128xbf16, #tpu.memory_space<vmem>>, %arg11: memref<9x128x128xbf16, #tpu.memory_space<vmem>>, %arg12: memref<128x256xbf16, #tpu.memory_space<vmem>>, %arg13: memref<8x256xf32, #tpu.memory_space<vmem>>, %arg14: memref<288x128xbf16, #tpu.memory_space<vmem>>, %arg15: memref<288x128xbf16, #tpu.memory_space<vmem>>) attributes {dimension_semantics = [#tpu.dimension_semantics<parallel>], iteration_bounds = array<i64: 1>, scalar_prefetch = 0 : i64, scratch_operands = 2 : i64, tpu.core_type = #tpu.core_type<tc>, window_params = [{transform_indices = @transform_0, window_bounds = array<i64: 8, 256>}, {pipeline_mode = #tpu.pipeline_mode<synchronous>, transform_indices = @transform_1, window_bounds = array<i64: 8, 8>}, {pipeline_mode = #tpu.pipeline_mode<synchronous>, transform_indices = @transform_2, window_bounds = array<i64: 32, 8>}, {pipeline_mode = #tpu.pipeline_mode<synchronous>, transform_indices = @transform_3, window_bounds = array<i64: 32, 1>}, {pipeline_mode = #tpu.pipeline_mode<synchronous>, transform_indices = @transform_4, window_bounds = array<i64: 32, 288>}, {pipeline_mode = #tpu.pipeline_mode<synchronous>, transform_indices = @transform_5, window_bounds = array<i64: 32, 1>}, {pipeline_mode = #tpu.pipeline_mode<synchronous>, transform_indices = @transform_6, window_bounds = array<i64: 8, 288>}, {pipeline_mode = #tpu.pipeline_mode<synchronous>, transform_indices = @transform_7, window_bounds = array<i64: 8, 1>}, {pipeline_mode = #tpu.pipeline_mode<synchronous>, transform_indices = @transform_8, window_bounds = array<i64: 256, 256>}, {pipeline_mode = #tpu.pipeline_mode<synchronous>, transform_indices = @transform_9, window_bounds = array<i64: 9, 256, 128>}, {pipeline_mode = #tpu.pipeline_mode<synchronous>, transform_indices = @transform_10, window_bounds = array<i64: 9, 128, 128>}, {pipeline_mode = #tpu.pipeline_mode<synchronous>, transform_indices = @transform_11, window_bounds = array<i64: 128, 256>}, {transform_indices = @transform_12, window_bounds = array<i64: 8, 256>}]} {
    %c0 = arith.constant 0 : index
    %c0_0 = arith.constant 0 : index
    %0 = vector.load %arg1[%c0, %c0_0] : memref<8x256xf32, #tpu.memory_space<vmem>>, vector<8x256xf32>
    %c0_1 = arith.constant 0 : index
    %c0_2 = arith.constant 0 : index
    %1 = vector.load %arg3[%c0_1, %c0_2] : memref<32x8xf32, #tpu.memory_space<vmem>>, vector<32x8xf32>
    %cst = arith.constant dense<0.000000e+00> : vector<32x256xf32>
    %2 = tpu.matmul %1, %0, %cst {dimension_numbers = #tpu.dot_dimension_numbers<[1], [0], [0], [1], [0, 0, 1, 1], [], []>} : vector<32x8xf32>, vector<8x256xf32>, vector<32x256xf32> -> vector<32x256xf32>
    %c0_3 = arith.constant 0 : index
    %c0_4 = arith.constant 0 : index
    %3 = vector.load %arg4[%c0_3, %c0_4] : memref<32x1xf32, #tpu.memory_space<vmem>>, vector<32x1xf32>
    %4 = vector.broadcast %3 : vector<32x1xf32> to vector<32x256xf32>
    %5 = arith.addf %2, %4 : vector<32x256xf32>
    %6 = math.exp %5 : vector<32x256xf32>
    %c0_5 = arith.constant 0 : index
    %c0_6 = arith.constant 0 : index
    %7 = vector.load %arg9[%c0_5, %c0_6] : memref<256x256xbf16, #tpu.memory_space<vmem>>, vector<256x256xbf16>
    %8 = arith.mulf %6, %5 : vector<32x256xf32>
    %9 = arith.truncf %8 : vector<32x256xf32> to vector<32x256xbf16>
    %cst_7 = arith.constant dense<0.000000e+00> : vector<32x256xf32>
    %10 = tpu.matmul %9, %7, %cst_7 {dimension_numbers = #tpu.dot_dimension_numbers<[1], [0], [0], [1], [0, 0, 1, 1], [], []>} : vector<32x256xbf16>, vector<256x256xbf16>, vector<32x256xf32> -> vector<32x256xf32>
    %11 = arith.truncf %6 : vector<32x256xf32> to vector<32x256xbf16>
    %cst_8 = arith.constant dense<0.000000e+00> : vector<32x256xf32>
    %12 = tpu.matmul %11, %7, %cst_8 {dimension_numbers = #tpu.dot_dimension_numbers<[1], [0], [0], [1], [0, 0, 1, 1], [], []>} : vector<32x256xbf16>, vector<256x256xbf16>, vector<32x256xf32> -> vector<32x256xf32>
    %cst_9 = arith.constant 1.000000e-30 : f32
    %13 = vector.broadcast %cst_9 : f32 to vector<32x256xf32>
    %14 = arith.maximumf %12, %13 : vector<32x256xf32>
    %15 = tpu.reciprocal %14 {approx = true} : vector<32x256xf32> -> vector<32x256xf32>
    %16 = arith.mulf %10, %15 : vector<32x256xf32>
    %17 = arith.truncf %16 : vector<32x256xf32> to vector<32x256xbf16>
    %c0_10 = arith.constant 0 : index
    %c0_11 = arith.constant 0 : index
    %c0_12 = arith.constant 0 : index
    %18 = vector.load %arg10[%c0_10, %c0_11, %c0_12] : memref<9x256x128xbf16, #tpu.memory_space<vmem>>, vector<1x256x128xbf16>
    %19 = vector.shape_cast %18 : vector<1x256x128xbf16> to vector<256x128xbf16>
    %cst_13 = arith.constant dense<0.000000e+00> : vector<32x128xf32>
    %20 = tpu.matmul %17, %19, %cst_13 {dimension_numbers = #tpu.dot_dimension_numbers<[1], [0], [0], [1], [0, 0, 1, 1], [], []>} : vector<32x256xbf16>, vector<256x128xbf16>, vector<32x128xf32> -> vector<32x128xf32>
    %21 = arith.truncf %20 : vector<32x128xf32> to vector<32x128xbf16>
    %c0_14 = arith.constant 0 : index
    %c0_15 = arith.constant 0 : index
    %22 = vector.load %arg14[%c0_14, %c0_15] : memref<288x128xbf16, #tpu.memory_space<vmem>>, vector<32x128xbf16>
    tpu.vector_store %arg14[%c0_14, %c0_15], %21 {strides = array<i32>} : memref<288x128xbf16, #tpu.memory_space<vmem>>, vector<32x128xbf16>,
    %c1 = arith.constant 1 : index
    %c0_16 = arith.constant 0 : index
    %c0_17 = arith.constant 0 : index
    %23 = vector.load %arg10[%c1, %c0_16, %c0_17] : memref<9x256x128xbf16, #tpu.memory_space<vmem>>, vector<1x256x128xbf16>
    %24 = vector.shape_cast %23 : vector<1x256x128xbf16> to vector<256x128xbf16>
    %cst_18 = arith.constant dense<0.000000e+00> : vector<32x128xf32>
    %25 = tpu.matmul %17, %24, %cst_18 {dimension_numbers = #tpu.dot_dimension_numbers<[1], [0], [0], [1], [0, 0, 1, 1], [], []>} : vector<32x256xbf16>, vector<256x128xbf16>, vector<32x128xf32> -> vector<32x128xf32>
    %26 = arith.truncf %25 : vector<32x128xf32> to vector<32x128xbf16>
    %c32 = arith.constant 32 : index
    %c0_19 = arith.constant 0 : index
    %27 = vector.load %arg14[%c32, %c0_19] : memref<288x128xbf16, #tpu.memory_space<vmem>>, vector<32x128xbf16>
    tpu.vector_store %arg14[%c32, %c0_19], %26 {strides = array<i32>} : memref<288x128xbf16, #tpu.memory_space<vmem>>, vector<32x128xbf16>,
    %c2 = arith.constant 2 : index
    %c0_20 = arith.constant 0 : index
    %c0_21 = arith.constant 0 : index
    %28 = vector.load %arg10[%c2, %c0_20, %c0_21] : memref<9x256x128xbf16, #tpu.memory_space<vmem>>, vector<1x256x128xbf16>
    %29 = vector.shape_cast %28 : vector<1x256x128xbf16> to vector<256x128xbf16>
    %cst_22 = arith.constant dense<0.000000e+00> : vector<32x128xf32>
    %30 = tpu.matmul %17, %29, %cst_22 {dimension_numbers = #tpu.dot_dimension_numbers<[1], [0], [0], [1], [0, 0, 1, 1], [], []>} : vector<32x256xbf16>, vector<256x128xbf16>, vector<32x128xf32> -> vector<32x128xf32>
    %31 = arith.truncf %30 : vector<32x128xf32> to vector<32x128xbf16>
    %c64 = arith.constant 64 : index
    %c0_23 = arith.constant 0 : index
    %32 = vector.load %arg14[%c64, %c0_23] : memref<288x128xbf16, #tpu.memory_space<vmem>>, vector<32x128xbf16>
    tpu.vector_store %arg14[%c64, %c0_23], %31 {strides = array<i32>} : memref<288x128xbf16, #tpu.memory_space<vmem>>, vector<32x128xbf16>,
    %c3 = arith.constant 3 : index
    %c0_24 = arith.constant 0 : index
    %c0_25 = arith.constant 0 : index
    %33 = vector.load %arg10[%c3, %c0_24, %c0_25] : memref<9x256x128xbf16, #tpu.memory_space<vmem>>, vector<1x256x128xbf16>
    %34 = vector.shape_cast %33 : vector<1x256x128xbf16> to vector<256x128xbf16>
    %cst_26 = arith.constant dense<0.000000e+00> : vector<32x128xf32>
    %35 = tpu.matmul %17, %34, %cst_26 {dimension_numbers = #tpu.dot_dimension_numbers<[1], [0], [0], [1], [0, 0, 1, 1], [], []>} : vector<32x256xbf16>, vector<256x128xbf16>, vector<32x128xf32> -> vector<32x128xf32>
    %36 = arith.truncf %35 : vector<32x128xf32> to vector<32x128xbf16>
    %c96 = arith.constant 96 : index
    %c0_27 = arith.constant 0 : index
    %37 = vector.load %arg14[%c96, %c0_27] : memref<288x128xbf16, #tpu.memory_space<vmem>>, vector<32x128xbf16>
    tpu.vector_store %arg14[%c96, %c0_27], %36 {strides = array<i32>} : memref<288x128xbf16, #tpu.memory_space<vmem>>, vector<32x128xbf16>,
    %c4 = arith.constant 4 : index
    %c0_28 = arith.constant 0 : index
    %c0_29 = arith.constant 0 : index
    %38 = vector.load %arg10[%c4, %c0_28, %c0_29] : memref<9x256x128xbf16, #tpu.memory_space<vmem>>, vector<1x256x128xbf16>
    %39 = vector.shape_cast %38 : vector<1x256x128xbf16> to vector<256x128xbf16>
    %cst_30 = arith.constant dense<0.000000e+00> : vector<32x128xf32>
    %40 = tpu.matmul %17, %39, %cst_30 {dimension_numbers = #tpu.dot_dimension_numbers<[1], [0], [0], [1], [0, 0, 1, 1], [], []>} : vector<32x256xbf16>, vector<256x128xbf16>, vector<32x128xf32> -> vector<32x128xf32>
    %41 = arith.truncf %40 : vector<32x128xf32> to vector<32x128xbf16>
    %c128 = arith.constant 128 : index
    %c0_31 = arith.constant 0 : index
    %42 = vector.load %arg14[%c128, %c0_31] : memref<288x128xbf16, #tpu.memory_space<vmem>>, vector<32x128xbf16>
    tpu.vector_store %arg14[%c128, %c0_31], %41 {strides = array<i32>} : memref<288x128xbf16, #tpu.memory_space<vmem>>, vector<32x128xbf16>,
    %c5 = arith.constant 5 : index
    %c0_32 = arith.constant 0 : index
    %c0_33 = arith.constant 0 : index
    %43 = vector.load %arg10[%c5, %c0_32, %c0_33] : memref<9x256x128xbf16, #tpu.memory_space<vmem>>, vector<1x256x128xbf16>
    %44 = vector.shape_cast %43 : vector<1x256x128xbf16> to vector<256x128xbf16>
    %cst_34 = arith.constant dense<0.000000e+00> : vector<32x128xf32>
    %45 = tpu.matmul %17, %44, %cst_34 {dimension_numbers = #tpu.dot_dimension_numbers<[1], [0], [0], [1], [0, 0, 1, 1], [], []>} : vector<32x256xbf16>, vector<256x128xbf16>, vector<32x128xf32> -> vector<32x128xf32>
    %46 = arith.truncf %45 : vector<32x128xf32> to vector<32x128xbf16>
    %c160 = arith.constant 160 : index
    %c0_35 = arith.constant 0 : index
    %47 = vector.load %arg14[%c160, %c0_35] : memref<288x128xbf16, #tpu.memory_space<vmem>>, vector<32x128xbf16>
    tpu.vector_store %arg14[%c160, %c0_35], %46 {strides = array<i32>} : memref<288x128xbf16, #tpu.memory_space<vmem>>, vector<32x128xbf16>,
    %c6 = arith.constant 6 : index
    %c0_36 = arith.constant 0 : index
    %c0_37 = arith.constant 0 : index
    %48 = vector.load %arg10[%c6, %c0_36, %c0_37] : memref<9x256x128xbf16, #tpu.memory_space<vmem>>, vector<1x256x128xbf16>
    %49 = vector.shape_cast %48 : vector<1x256x128xbf16> to vector<256x128xbf16>
    %cst_38 = arith.constant dense<0.000000e+00> : vector<32x128xf32>
    %50 = tpu.matmul %17, %49, %cst_38 {dimension_numbers = #tpu.dot_dimension_numbers<[1], [0], [0], [1], [0, 0, 1, 1], [], []>} : vector<32x256xbf16>, vector<256x128xbf16>, vector<32x128xf32> -> vector<32x128xf32>
    %51 = arith.truncf %50 : vector<32x128xf32> to vector<32x128xbf16>
    %c192 = arith.constant 192 : index
    %c0_39 = arith.constant 0 : index
    %52 = vector.load %arg14[%c192, %c0_39] : memref<288x128xbf16, #tpu.memory_space<vmem>>, vector<32x128xbf16>
    tpu.vector_store %arg14[%c192, %c0_39], %51 {strides = array<i32>} : memref<288x128xbf16, #tpu.memory_space<vmem>>, vector<32x128xbf16>,
    %c7 = arith.constant 7 : index
    %c0_40 = arith.constant 0 : index
    %c0_41 = arith.constant 0 : index
    %53 = vector.load %arg10[%c7, %c0_40, %c0_41] : memref<9x256x128xbf16, #tpu.memory_space<vmem>>, vector<1x256x128xbf16>
    %54 = vector.shape_cast %53 : vector<1x256x128xbf16> to vector<256x128xbf16>
    %cst_42 = arith.constant dense<0.000000e+00> : vector<32x128xf32>
    %55 = tpu.matmul %17, %54, %cst_42 {dimension_numbers = #tpu.dot_dimension_numbers<[1], [0], [0], [1], [0, 0, 1, 1], [], []>} : vector<32x256xbf16>, vector<256x128xbf16>, vector<32x128xf32> -> vector<32x128xf32>
    %56 = arith.truncf %55 : vector<32x128xf32> to vector<32x128xbf16>
    %c224 = arith.constant 224 : index
    %c0_43 = arith.constant 0 : index
    %57 = vector.load %arg14[%c224, %c0_43] : memref<288x128xbf16, #tpu.memory_space<vmem>>, vector<32x128xbf16>
    tpu.vector_store %arg14[%c224, %c0_43], %56 {strides = array<i32>} : memref<288x128xbf16, #tpu.memory_space<vmem>>, vector<32x128xbf16>,
    %c8 = arith.constant 8 : index
    %c0_44 = arith.constant 0 : index
    %c0_45 = arith.constant 0 : index
    %58 = vector.load %arg10[%c8, %c0_44, %c0_45] : memref<9x256x128xbf16, #tpu.memory_space<vmem>>, vector<1x256x128xbf16>
    %59 = vector.shape_cast %58 : vector<1x256x128xbf16> to vector<256x128xbf16>
    %cst_46 = arith.constant dense<0.000000e+00> : vector<32x128xf32>
    %60 = tpu.matmul %17, %59, %cst_46 {dimension_numbers = #tpu.dot_dimension_numbers<[1], [0], [0], [1], [0, 0, 1, 1], [], []>} : vector<32x256xbf16>, vector<256x128xbf16>, vector<32x128xf32> -> vector<32x128xf32>
    %61 = arith.truncf %60 : vector<32x128xf32> to vector<32x128xbf16>
    %c256 = arith.constant 256 : index
    %c0_47 = arith.constant 0 : index
    %62 = vector.load %arg14[%c256, %c0_47] : memref<288x128xbf16, #tpu.memory_space<vmem>>, vector<32x128xbf16>
    tpu.vector_store %arg14[%c256, %c0_47], %61 {strides = array<i32>} : memref<288x128xbf16, #tpu.memory_space<vmem>>, vector<32x128xbf16>,
    %c0_48 = arith.constant 0 : index
    %c0_49 = arith.constant 0 : index
    %63 = vector.load %arg5[%c0_48, %c0_49] : memref<32x288xbf16, #tpu.memory_space<vmem>>, vector<32x288xbf16>
    %c0_50 = arith.constant 0 : index
    %c0_51 = arith.constant 0 : index
    %64 = vector.load %arg14[%c0_50, %c0_51] : memref<288x128xbf16, #tpu.memory_space<vmem>>, vector<288x128xbf16>
    %cst_52 = arith.constant dense<0.000000e+00> : vector<32x128xf32>
    %65 = tpu.matmul %63, %64, %cst_52 {dimension_numbers = #tpu.dot_dimension_numbers<[1], [0], [0], [1], [0, 0, 1, 1], [], []>} : vector<32x288xbf16>, vector<288x128xbf16>, vector<32x128xf32> -> vector<32x128xf32>
    %c0_53 = arith.constant 0 : index
    %c0_54 = arith.constant 0 : index
    %66 = vector.load %arg6[%c0_53, %c0_54] : memref<32x1xf32, #tpu.memory_space<vmem>>, vector<32x1xf32>
    %67 = vector.broadcast %66 : vector<32x1xf32> to vector<32x128xf32>
    %68 = arith.addf %65, %67 : vector<32x128xf32>
    %69 = arith.truncf %68 : vector<32x128xf32> to vector<32x128xbf16>
    %c0_55 = arith.constant 0 : index
    %c0_56 = arith.constant 0 : index
    %c0_57 = arith.constant 0 : index
    %70 = vector.load %arg11[%c0_55, %c0_56, %c0_57] : memref<9x128x128xbf16, #tpu.memory_space<vmem>>, vector<1x128x128xbf16>
    %71 = vector.shape_cast %70 : vector<1x128x128xbf16> to vector<128x128xbf16>
    %cst_58 = arith.constant dense<0.000000e+00> : vector<32x128xf32>
    %72 = tpu.matmul %69, %71, %cst_58 {dimension_numbers = #tpu.dot_dimension_numbers<[1], [0], [0], [1], [0, 0, 1, 1], [], []>} : vector<32x128xbf16>, vector<128x128xbf16>, vector<32x128xf32> -> vector<32x128xf32>
    %73 = arith.truncf %72 : vector<32x128xf32> to vector<32x128xbf16>
    %c0_59 = arith.constant 0 : index
    %c0_60 = arith.constant 0 : index
    %74 = vector.load %arg15[%c0_59, %c0_60] : memref<288x128xbf16, #tpu.memory_space<vmem>>, vector<32x128xbf16>
    tpu.vector_store %arg15[%c0_59, %c0_60], %73 {strides = array<i32>} : memref<288x128xbf16, #tpu.memory_space<vmem>>, vector<32x128xbf16>,
    %c1_61 = arith.constant 1 : index
    %c0_62 = arith.constant 0 : index
    %c0_63 = arith.constant 0 : index
    %75 = vector.load %arg11[%c1_61, %c0_62, %c0_63] : memref<9x128x128xbf16, #tpu.memory_space<vmem>>, vector<1x128x128xbf16>
    %76 = vector.shape_cast %75 : vector<1x128x128xbf16> to vector<128x128xbf16>
    %cst_64 = arith.constant dense<0.000000e+00> : vector<32x128xf32>
    %77 = tpu.matmul %69, %76, %cst_64 {dimension_numbers = #tpu.dot_dimension_numbers<[1], [0], [0], [1], [0, 0, 1, 1], [], []>} : vector<32x128xbf16>, vector<128x128xbf16>, vector<32x128xf32> -> vector<32x128xf32>
    %78 = arith.truncf %77 : vector<32x128xf32> to vector<32x128xbf16>
    %c32_65 = arith.constant 32 : index
    %c0_66 = arith.constant 0 : index
    %79 = vector.load %arg15[%c32_65, %c0_66] : memref<288x128xbf16, #tpu.memory_space<vmem>>, vector<32x128xbf16>
    tpu.vector_store %arg15[%c32_65, %c0_66], %78 {strides = array<i32>} : memref<288x128xbf16, #tpu.memory_space<vmem>>, vector<32x128xbf16>,
    %c2_67 = arith.constant 2 : index
    %c0_68 = arith.constant 0 : index
    %c0_69 = arith.constant 0 : index
    %80 = vector.load %arg11[%c2_67, %c0_68, %c0_69] : memref<9x128x128xbf16, #tpu.memory_space<vmem>>, vector<1x128x128xbf16>
    %81 = vector.shape_cast %80 : vector<1x128x128xbf16> to vector<128x128xbf16>
    %cst_70 = arith.constant dense<0.000000e+00> : vector<32x128xf32>
    %82 = tpu.matmul %69, %81, %cst_70 {dimension_numbers = #tpu.dot_dimension_numbers<[1], [0], [0], [1], [0, 0, 1, 1], [], []>} : vector<32x128xbf16>, vector<128x128xbf16>, vector<32x128xf32> -> vector<32x128xf32>
    %83 = arith.truncf %82 : vector<32x128xf32> to vector<32x128xbf16>
    %c64_71 = arith.constant 64 : index
    %c0_72 = arith.constant 0 : index
    %84 = vector.load %arg15[%c64_71, %c0_72] : memref<288x128xbf16, #tpu.memory_space<vmem>>, vector<32x128xbf16>
    tpu.vector_store %arg15[%c64_71, %c0_72], %83 {strides = array<i32>} : memref<288x128xbf16, #tpu.memory_space<vmem>>, vector<32x128xbf16>,
    %c3_73 = arith.constant 3 : index
    %c0_74 = arith.constant 0 : index
    %c0_75 = arith.constant 0 : index
    %85 = vector.load %arg11[%c3_73, %c0_74, %c0_75] : memref<9x128x128xbf16, #tpu.memory_space<vmem>>, vector<1x128x128xbf16>
    %86 = vector.shape_cast %85 : vector<1x128x128xbf16> to vector<128x128xbf16>
    %cst_76 = arith.constant dense<0.000000e+00> : vector<32x128xf32>
    %87 = tpu.matmul %69, %86, %cst_76 {dimension_numbers = #tpu.dot_dimension_numbers<[1], [0], [0], [1], [0, 0, 1, 1], [], []>} : vector<32x128xbf16>, vector<128x128xbf16>, vector<32x128xf32> -> vector<32x128xf32>
    %88 = arith.truncf %87 : vector<32x128xf32> to vector<32x128xbf16>
    %c96_77 = arith.constant 96 : index
    %c0_78 = arith.constant 0 : index
    %89 = vector.load %arg15[%c96_77, %c0_78] : memref<288x128xbf16, #tpu.memory_space<vmem>>, vector<32x128xbf16>
    tpu.vector_store %arg15[%c96_77, %c0_78], %88 {strides = array<i32>} : memref<288x128xbf16, #tpu.memory_space<vmem>>, vector<32x128xbf16>,
    %c4_79 = arith.constant 4 : index
    %c0_80 = arith.constant 0 : index
    %c0_81 = arith.constant 0 : index
    %90 = vector.load %arg11[%c4_79, %c0_80, %c0_81] : memref<9x128x128xbf16, #tpu.memory_space<vmem>>, vector<1x128x128xbf16>
    %91 = vector.shape_cast %90 : vector<1x128x128xbf16> to vector<128x128xbf16>
    %cst_82 = arith.constant dense<0.000000e+00> : vector<32x128xf32>
    %92 = tpu.matmul %69, %91, %cst_82 {dimension_numbers = #tpu.dot_dimension_numbers<[1], [0], [0], [1], [0, 0, 1, 1], [], []>} : vector<32x128xbf16>, vector<128x128xbf16>, vector<32x128xf32> -> vector<32x128xf32>
    %93 = arith.truncf %92 : vector<32x128xf32> to vector<32x128xbf16>
    %c128_83 = arith.constant 128 : index
    %c0_84 = arith.constant 0 : index
    %94 = vector.load %arg15[%c128_83, %c0_84] : memref<288x128xbf16, #tpu.memory_space<vmem>>, vector<32x128xbf16>
    tpu.vector_store %arg15[%c128_83, %c0_84], %93 {strides = array<i32>} : memref<288x128xbf16, #tpu.memory_space<vmem>>, vector<32x128xbf16>,
    %c5_85 = arith.constant 5 : index
    %c0_86 = arith.constant 0 : index
    %c0_87 = arith.constant 0 : index
    %95 = vector.load %arg11[%c5_85, %c0_86, %c0_87] : memref<9x128x128xbf16, #tpu.memory_space<vmem>>, vector<1x128x128xbf16>
    %96 = vector.shape_cast %95 : vector<1x128x128xbf16> to vector<128x128xbf16>
    %cst_88 = arith.constant dense<0.000000e+00> : vector<32x128xf32>
    %97 = tpu.matmul %69, %96, %cst_88 {dimension_numbers = #tpu.dot_dimension_numbers<[1], [0], [0], [1], [0, 0, 1, 1], [], []>} : vector<32x128xbf16>, vector<128x128xbf16>, vector<32x128xf32> -> vector<32x128xf32>
    %98 = arith.truncf %97 : vector<32x128xf32> to vector<32x128xbf16>
    %c160_89 = arith.constant 160 : index
    %c0_90 = arith.constant 0 : index
    %99 = vector.load %arg15[%c160_89, %c0_90] : memref<288x128xbf16, #tpu.memory_space<vmem>>, vector<32x128xbf16>
    tpu.vector_store %arg15[%c160_89, %c0_90], %98 {strides = array<i32>} : memref<288x128xbf16, #tpu.memory_space<vmem>>, vector<32x128xbf16>,
    %c6_91 = arith.constant 6 : index
    %c0_92 = arith.constant 0 : index
    %c0_93 = arith.constant 0 : index
    %100 = vector.load %arg11[%c6_91, %c0_92, %c0_93] : memref<9x128x128xbf16, #tpu.memory_space<vmem>>, vector<1x128x128xbf16>
    %101 = vector.shape_cast %100 : vector<1x128x128xbf16> to vector<128x128xbf16>
    %cst_94 = arith.constant dense<0.000000e+00> : vector<32x128xf32>
    %102 = tpu.matmul %69, %101, %cst_94 {dimension_numbers = #tpu.dot_dimension_numbers<[1], [0], [0], [1], [0, 0, 1, 1], [], []>} : vector<32x128xbf16>, vector<128x128xbf16>, vector<32x128xf32> -> vector<32x128xf32>
    %103 = arith.truncf %102 : vector<32x128xf32> to vector<32x128xbf16>
    %c192_95 = arith.constant 192 : index
    %c0_96 = arith.constant 0 : index
    %104 = vector.load %arg15[%c192_95, %c0_96] : memref<288x128xbf16, #tpu.memory_space<vmem>>, vector<32x128xbf16>
    tpu.vector_store %arg15[%c192_95, %c0_96], %103 {strides = array<i32>} : memref<288x128xbf16, #tpu.memory_space<vmem>>, vector<32x128xbf16>,
    %c7_97 = arith.constant 7 : index
    %c0_98 = arith.constant 0 : index
    %c0_99 = arith.constant 0 : index
    %105 = vector.load %arg11[%c7_97, %c0_98, %c0_99] : memref<9x128x128xbf16, #tpu.memory_space<vmem>>, vector<1x128x128xbf16>
    %106 = vector.shape_cast %105 : vector<1x128x128xbf16> to vector<128x128xbf16>
    %cst_100 = arith.constant dense<0.000000e+00> : vector<32x128xf32>
    %107 = tpu.matmul %69, %106, %cst_100 {dimension_numbers = #tpu.dot_dimension_numbers<[1], [0], [0], [1], [0, 0, 1, 1], [], []>} : vector<32x128xbf16>, vector<128x128xbf16>, vector<32x128xf32> -> vector<32x128xf32>
    %108 = arith.truncf %107 : vector<32x128xf32> to vector<32x128xbf16>
    %c224_101 = arith.constant 224 : index
    %c0_102 = arith.constant 0 : index
    %109 = vector.load %arg15[%c224_101, %c0_102] : memref<288x128xbf16, #tpu.memory_space<vmem>>, vector<32x128xbf16>
    tpu.vector_store %arg15[%c224_101, %c0_102], %108 {strides = array<i32>} : memref<288x128xbf16, #tpu.memory_space<vmem>>, vector<32x128xbf16>,
    %c8_103 = arith.constant 8 : index
    %c0_104 = arith.constant 0 : index
    %c0_105 = arith.constant 0 : index
    %110 = vector.load %arg11[%c8_103, %c0_104, %c0_105] : memref<9x128x128xbf16, #tpu.memory_space<vmem>>, vector<1x128x128xbf16>
    %111 = vector.shape_cast %110 : vector<1x128x128xbf16> to vector<128x128xbf16>
    %cst_106 = arith.constant dense<0.000000e+00> : vector<32x128xf32>
    %112 = tpu.matmul %69, %111, %cst_106 {dimension_numbers = #tpu.dot_dimension_numbers<[1], [0], [0], [1], [0, 0, 1, 1], [], []>} : vector<32x128xbf16>, vector<128x128xbf16>, vector<32x128xf32> -> vector<32x128xf32>
    %113 = arith.truncf %112 : vector<32x128xf32> to vector<32x128xbf16>
    %c256_107 = arith.constant 256 : index
    %c0_108 = arith.constant 0 : index
    %114 = vector.load %arg15[%c256_107, %c0_108] : memref<288x128xbf16, #tpu.memory_space<vmem>>, vector<32x128xbf16>
    tpu.vector_store %arg15[%c256_107, %c0_108], %113 {strides = array<i32>} : memref<288x128xbf16, #tpu.memory_space<vmem>>, vector<32x128xbf16>,
    %c0_109 = arith.constant 0 : index
    %c0_110 = arith.constant 0 : index
    %115 = vector.load %arg7[%c0_109, %c0_110] : memref<8x288xbf16, #tpu.memory_space<vmem>>, vector<8x288xbf16>
    %c0_111 = arith.constant 0 : index
    %c0_112 = arith.constant 0 : index
    %116 = vector.load %arg15[%c0_111, %c0_112] : memref<288x128xbf16, #tpu.memory_space<vmem>>, vector<288x128xbf16>
    %cst_113 = arith.constant dense<0.000000e+00> : vector<8x128xf32>
    %117 = tpu.matmul %115, %116, %cst_113 {dimension_numbers = #tpu.dot_dimension_numbers<[1], [0], [0], [1], [0, 0, 1, 1], [], []>} : vector<8x288xbf16>, vector<288x128xbf16>, vector<8x128xf32> -> vector<8x128xf32>
    %c0_114 = arith.constant 0 : index
    %c0_115 = arith.constant 0 : index
    %118 = vector.load %arg8[%c0_114, %c0_115] : memref<8x1xf32, #tpu.memory_space<vmem>>, vector<8x1xf32>
    %119 = vector.broadcast %118 : vector<8x1xf32> to vector<8x128xf32>
    %120 = arith.addf %117, %119 : vector<8x128xf32>
    %121 = arith.negf %120 : vector<8x128xf32>
    %122 = math.exp %121 : vector<8x128xf32>
    %cst_116 = arith.constant 1.000000e+00 : f32
    %123 = vector.broadcast %cst_116 : f32 to vector<8x128xf32>
    %124 = arith.addf %123, %122 : vector<8x128xf32>
    %125 = arith.divf %123, %124 : vector<8x128xf32>
    %126 = arith.truncf %125 : vector<8x128xf32> to vector<8x128xbf16>
    %c0_117 = arith.constant 0 : index
    %c0_118 = arith.constant 0 : index
    %127 = vector.load %arg12[%c0_117, %c0_118] : memref<128x256xbf16, #tpu.memory_space<vmem>>, vector<128x256xbf16>
    %cst_119 = arith.constant dense<0.000000e+00> : vector<8x256xf32>
    %128 = tpu.matmul %126, %127, %cst_119 {dimension_numbers = #tpu.dot_dimension_numbers<[1], [0], [0], [1], [0, 0, 1, 1], [], []>} : vector<8x128xbf16>, vector<128x256xbf16>, vector<8x256xf32> -> vector<8x256xf32>
    %c0_120 = arith.constant 0 : index
    %c0_121 = arith.constant 0 : index
    %129 = vector.load %arg2[%c0_120, %c0_121] : memref<8x8xf32, #tpu.memory_space<vmem>>, vector<8x8xf32>
    %cst_122 = arith.constant dense<0.000000e+00> : vector<8x256xf32>
    %130 = tpu.matmul %129, %0, %cst_122 {dimension_numbers = #tpu.dot_dimension_numbers<[1], [0], [0], [1], [0, 0, 1, 1], [], []>} : vector<8x8xf32>, vector<8x256xf32>, vector<8x256xf32> -> vector<8x256xf32>
    %131 = arith.negf %130 : vector<8x256xf32>
    %132 = math.exp %131 : vector<8x256xf32>
    %cst_123 = arith.constant 1.000000e+00 : f32
    %133 = vector.broadcast %cst_123 : f32 to vector<8x256xf32>
    %134 = arith.addf %133, %132 : vector<8x256xf32>
    %135 = arith.divf %133, %134 : vector<8x256xf32>
    %136 = arith.mulf %0, %128 : vector<8x256xf32>
    %137 = arith.mulf %136, %135 : vector<8x256xf32>
    %c0_124 = arith.constant 0 : index
    %c0_125 = arith.constant 0 : index
    %138 = vector.load %arg13[%c0_124, %c0_125] : memref<8x256xf32, #tpu.memory_space<vmem>>, vector<8x256xf32>
    tpu.vector_store %arg13[%c0_124, %c0_125], %137 {strides = array<i32>} : memref<8x256xf32, #tpu.memory_space<vmem>>, vector<8x256xf32>,
    return
  }
  func.func @transform_0(%arg0: i32) -> (i32, i32) {
    %c0_i32 = arith.constant 0 : i32
    %c0_i32_0 = arith.constant 0 : i32
    return %arg0, %c0_i32 : i32, i32
  }
  func.func @transform_1(%arg0: i32) -> (i32, i32) {
    %c0_i32 = arith.constant 0 : i32
    %c0_i32_0 = arith.constant 0 : i32
    %c0_i32_1 = arith.constant 0 : i32
    return %c0_i32, %c0_i32_0 : i32, i32
  }
  func.func @transform_2(%arg0: i32) -> (i32, i32) {
    %c0_i32 = arith.constant 0 : i32
    %c0_i32_0 = arith.constant 0 : i32
    %c0_i32_1 = arith.constant 0 : i32
    return %c0_i32, %c0_i32_0 : i32, i32
  }
  func.func @transform_3(%arg0: i32) -> (i32, i32) {
    %c0_i32 = arith.constant 0 : i32
    %c0_i32_0 = arith.constant 0 : i32
    %c0_i32_1 = arith.constant 0 : i32
    return %c0_i32, %c0_i32_0 : i32, i32
  }
  func.func @transform_4(%arg0: i32) -> (i32, i32) {
    %c0_i32 = arith.constant 0 : i32
    %c0_i32_0 = arith.constant 0 : i32
    %c0_i32_1 = arith.constant 0 : i32
    return %c0_i32, %c0_i32_0 : i32, i32
  }
  func.func @transform_5(%arg0: i32) -> (i32, i32) {
    %c0_i32 = arith.constant 0 : i32
    %c0_i32_0 = arith.constant 0 : i32
    %c0_i32_1 = arith.constant 0 : i32
    return %c0_i32, %c0_i32_0 : i32, i32
  }
  func.func @transform_6(%arg0: i32) -> (i32, i32) {
    %c0_i32 = arith.constant 0 : i32
    %c0_i32_0 = arith.constant 0 : i32
    %c0_i32_1 = arith.constant 0 : i32
    return %c0_i32, %c0_i32_0 : i32, i32
  }
  func.func @transform_7(%arg0: i32) -> (i32, i32) {
    %c0_i32 = arith.constant 0 : i32
    %c0_i32_0 = arith.constant 0 : i32
    %c0_i32_1 = arith.constant 0 : i32
    return %c0_i32, %c0_i32_0 : i32, i32
  }
  func.func @transform_8(%arg0: i32) -> (i32, i32) {
    %c0_i32 = arith.constant 0 : i32
    %c0_i32_0 = arith.constant 0 : i32
    %c0_i32_1 = arith.constant 0 : i32
    return %c0_i32, %c0_i32_0 : i32, i32
  }
  func.func @transform_9(%arg0: i32) -> (i32, i32, i32) {
    %c0_i32 = arith.constant 0 : i32
    %c0_i32_0 = arith.constant 0 : i32
    %c0_i32_1 = arith.constant 0 : i32
    %c0_i32_2 = arith.constant 0 : i32
    return %c0_i32, %c0_i32_0, %c0_i32_1 : i32, i32, i32
  }
  func.func @transform_10(%arg0: i32) -> (i32, i32, i32) {
    %c0_i32 = arith.constant 0 : i32
    %c0_i32_0 = arith.constant 0 : i32
    %c0_i32_1 = arith.constant 0 : i32
    %c0_i32_2 = arith.constant 0 : i32
    return %c0_i32, %c0_i32_0, %c0_i32_1 : i32, i32, i32
  }
  func.func @transform_11(%arg0: i32) -> (i32, i32) {
    %c0_i32 = arith.constant 0 : i32
    %c0_i32_0 = arith.constant 0 : i32
    %c0_i32_1 = arith.constant 0 : i32
    return %c0_i32, %c0_i32_0 : i32, i32
  }
  func.func @transform_12(%arg0: i32) -> (i32, i32) {
    %c0_i32 = arith.constant 0 : i32
    %c0_i32_0 = arith.constant 0 : i32
    return %arg0, %c0_i32 : i32, i32
  }
}

</mosaic_0001>

<llo_original>
// kernel: tpu_custom_call.1
$region0: #{tpu_custom_call.1}
  #allocation0 [shape = 'u32[]', space=smem, size = 0x4, offset = 0x4, fixed_abs, tag = 'smem constant byte address 0x4 - core index']
  #allocation1 [shape = 'u32[144,128]{1,0:T(1,128)}', space=vmem, size = 0x12000, scoped, tag = 'internal scratch']
  #allocation2 [shape = 'bf16[288,128]{1,0:T(8,128)(2,1)}', space=vmem, size = 0x12000, scoped, tag = 'scratch operand']
  #allocation3 [shape = 'bf16[288,128]{1,0:T(8,128)(2,1)}', space=vmem, size = 0x12000, scoped, tag = 'scratch operand']
  %s0 = inlined_call_operand.hbm [shape: f32[8,256], index: 0, kind: input, shape index: {}]
  %s1 = inlined_call_operand.hbm [shape: f32[8,8], index: 1, kind: input, shape index: {}]
  %s2 = inlined_call_operand.vmem [shape: f32[32,8], index: 2, kind: input, shape index: {}]
  %s3 = inlined_call_operand.vmem [shape: f32[32,1], index: 3, kind: input, shape index: {}]
  %s4 = inlined_call_operand.hbm [shape: bf16[32,288], index: 4, kind: input, shape index: {}]
  %s5 = inlined_call_operand.vmem [shape: f32[32,1], index: 5, kind: input, shape index: {}]
  %s6 = inlined_call_operand.hbm [shape: bf16[8,288], index: 6, kind: input, shape index: {}]
  %s7 = inlined_call_operand.vmem [shape: f32[8,1], index: 7, kind: input, shape index: {}]
  %s8 = inlined_call_operand.hbm [shape: bf16[256,256], index: 8, kind: input, shape index: {}]
  %s9 = inlined_call_operand.hbm [shape: bf16[9,256,128], index: 9, kind: input, shape index: {}]
  %s10 = inlined_call_operand.hbm [shape: bf16[9,128,128], index: 10, kind: input, shape index: {}]
  %s11 = inlined_call_operand.vmem [shape: bf16[128,256], index: 11, kind: input, shape index: {}]
  %s12 = inlined_call_operand.hbm [shape: f32[8,256], index: 12, kind: output, shape index: {}]
  %s13 = sld [smem:[#allocation0]]
  $region86: #{tpu_custom_call.1} parent=0
    _
  %s15 = ssub.s32 1, %s13
  %s16 = scalar_select 0, %s15, %s13
  $region1: #{tpu_custom_call.1} parent=0
    #allocation4 [shape = 'u8[8192]{0}', space=vmem, size = 0x2000, scoped, tag = 'input window, operand 0, single buffered']
    #allocation5 [shape = 's32[1]{0}', space=sflag, size = 0x4, scoped, tag = 'scoped memory for tpu_custom_call.1']
    #allocation6 [shape = 's32[1]{0}', space=sflag, size = 0x4, scoped, tag = 'scoped memory for tpu_custom_call.1']
    #allocation7 [shape = 'u8[4096]{0}', space=vmem, size = 0x1000, scoped, tag = 'input window, operand 1, single buffered']
    #allocation8 [shape = 's32[1]{0}', space=sflag, size = 0x4, scoped, tag = 'scoped memory for tpu_custom_call.1']
    #allocation9 [shape = 'u8[24576]{0}', space=vmem, size = 0x6000, scoped, tag = 'input window, operand 4, single buffered']
    #allocation10 [shape = 'u8[6144]{0}', space=vmem, size = 0x1800, scoped, tag = 'input window, operand 6, single buffered']
    #allocation11 [shape = 's32[1]{0}', space=sflag, size = 0x4, scoped, tag = 'scoped memory for tpu_custom_call.1']
    #allocation12 [shape = 'u8[131072]{0}', space=vmem, size = 0x20000, scoped, tag = 'input window, operand 8, single buffered']
    #allocation13 [shape = 'u8[589824]{0}', space=vmem, size = 0x90000, scoped, tag = 'input window, operand 9, single buffered']
    #allocation14 [shape = 's32[1]{0}', space=sflag, size = 0x4, scoped, tag = 'scoped memory for tpu_custom_call.1']
    #allocation15 [shape = 'u8[294912]{0}', space=vmem, size = 0x48000, scoped, tag = 'input window, operand 10, single buffered']
    #allocation16 [shape = 'u8[8192]{0}', space=vmem, size = 0x2000, scoped, tag = 'output window, operand 0, single buffered']
    %17 = vsyncpa [#allocation5], 0
    %18 = vsyncpa [#allocation8], 0
    %19 = vsyncpa [#allocation11], 0
    %20 = vsyncpa [#allocation14], 0
    %21 = vsyncpa [#allocation6], 0
    // Predicated region
    $region2: #{tpu_custom_call.1} parent=1 // pred_check
      _
    $region3: #{tpu_custom_call.1} parent=1 // pred_check_branch
      %23 = sbr.rel (0) target = $region5
    $region4: #{tpu_custom_call.1} parent=1 // pred_region
      %s25 = ssub.s32 256, 256
      %26 = vsyncadd [#allocation5], %s25
      %s28 = sshll.u32 [#allocation4], 4
      %s29 = int_to_ptr.vmem [resolvable:$true] %s28
      %31 = dma.hbm_to_vmem [thread:$0]  %s0, 256, %s29, [#allocation5]
    $region5: #{tpu_custom_call.1} parent=1 // pred_fallthru
      _
    // Predicated region
    $region6: #{tpu_custom_call.1} parent=1 // pred_check
      _
    $region7: #{tpu_custom_call.1} parent=1 // pred_check_branch
      %33 = sbr.rel (0) target = $region9
    $region8: #{tpu_custom_call.1} parent=1 // pred_region
      %s35 = ssub.s32 128, 128
      %36 = vsyncadd [#allocation8], %s35
      %s38 = sshll.u32 [#allocation7], 4
      %s39 = int_to_ptr.vmem [resolvable:$true] %s38
      %41 = dma.hbm_to_vmem [thread:$0]  %s1, 128, %s39, [#allocation8]
    $region9: #{tpu_custom_call.1} parent=1 // pred_fallthru
      _
    // Predicated region
    $region10: #{tpu_custom_call.1} parent=1 // pred_check
      _
    $region11: #{tpu_custom_call.1} parent=1 // pred_check_branch
      %43 = sbr.rel (0) target = $region13
    $region12: #{tpu_custom_call.1} parent=1 // pred_region
      _
    $region13: #{tpu_custom_call.1} parent=1 // pred_fallthru
      _
    // Predicated region
    $region14: #{tpu_custom_call.1} parent=1 // pred_check
      _
    $region15: #{tpu_custom_call.1} parent=1 // pred_check_branch
      %45 = sbr.rel (0) target = $region17
    $region16: #{tpu_custom_call.1} parent=1 // pred_region
      _
    $region17: #{tpu_custom_call.1} parent=1 // pred_fallthru
      _
    // Predicated region
    $region18: #{tpu_custom_call.1} parent=1 // pred_check
      _
    $region19: #{tpu_custom_call.1} parent=1 // pred_check_branch
      %47 = sbr.rel (0) target = $region21
    $region20: #{tpu_custom_call.1} parent=1 // pred_region
      %s49 = ssub.s32 768, 768
      %50 = vsyncadd [#allocation8], %s49
      %s51 = sshll.u32 [#allocation9], 4
      %s52 = int_to_ptr.vmem [resolvable:$true] %s51
      %57 = dma.hbm_to_vmem [thread:$0]  %s4, 768, %s52, [#allocation8], 192, 192, 12
    $region21: #{tpu_custom_call.1} parent=1 // pred_fallthru
      _
    // Predicated region
    $region22: #{tpu_custom_call.1} parent=1 // pred_check
      _
    $region23: #{tpu_custom_call.1} parent=1 // pred_check_branch
      %59 = sbr.rel (0) target = $region25
    $region24: #{tpu_custom_call.1} parent=1 // pred_region
      _
    $region25: #{tpu_custom_call.1} parent=1 // pred_fallthru
      _
    // Predicated region
    $region26: #{tpu_custom_call.1} parent=1 // pred_check
      _
    $region27: #{tpu_custom_call.1} parent=1 // pred_check_branch
      %61 = sbr.rel (0) target = $region29
    $region28: #{tpu_custom_call.1} parent=1 // pred_region
      %s63 = ssub.s32 192, 192
      %64 = vsyncadd [#allocation11], %s63
      %s66 = sshll.u32 [#allocation10], 4
      %s67 = int_to_ptr.vmem [resolvable:$true] %s66
      %69 = dma.hbm_to_vmem [thread:$0]  %s6, 192, %s67, [#allocation11]
    $region29: #{tpu_custom_call.1} parent=1 // pred_fallthru
      _
    // Predicated region
    $region30: #{tpu_custom_call.1} parent=1 // pred_check
      _
    $region31: #{tpu_custom_call.1} parent=1 // pred_check_branch
      %71 = sbr.rel (0) target = $region33
    $region32: #{tpu_custom_call.1} parent=1 // pred_region
      _
    $region33: #{tpu_custom_call.1} parent=1 // pred_fallthru
      _
    // Predicated region
    $region34: #{tpu_custom_call.1} parent=1 // pred_check
      _
    $region35: #{tpu_custom_call.1} parent=1 // pred_check_branch
      %73 = sbr.rel (0) target = $region37
    $region36: #{tpu_custom_call.1} parent=1 // pred_region
      %s75 = ssub.s32 4096, 4096
      %76 = vsyncadd [#allocation11], %s75
      %s77 = sshll.u32 [#allocation12], 4
      %s78 = int_to_ptr.vmem [resolvable:$true] %s77
      %83 = dma.hbm_to_vmem [thread:$0]  %s8, 4096, %s78, [#allocation11], 128, 128, 8
    $region37: #{tpu_custom_call.1} parent=1 // pred_fallthru
      _
    // Predicated region
    $region38: #{tpu_custom_call.1} parent=1 // pred_check
      _
    $region39: #{tpu_custom_call.1} parent=1 // pred_check_branch
      %85 = sbr.rel (0) target = $region41
    $region40: #{tpu_custom_call.1} parent=1 // pred_region
      %s87 = ssub.s32 18432, 18432
      %88 = vsyncadd [#allocation14], %s87
      %s89 = sshll.u32 [#allocation13], 4
      %s90 = int_to_ptr.vmem [resolvable:$true] %s89
      %95 = dma.hbm_to_vmem [thread:$0]  %s9, 18432, %s90, [#allocation14], 64, 64, 4
    $region41: #{tpu_custom_call.1} parent=1 // pred_fallthru
      _
    // Predicated region
    $region42: #{tpu_custom_call.1} parent=1 // pred_check
      _
    $region43: #{tpu_custom_call.1} parent=1 // pred_check_branch
      %97 = sbr.rel (0) target = $region45
    $region44: #{tpu_custom_call.1} parent=1 // pred_region
      %s99 = ssub.s32 9216, 9216
      %100 = vsyncadd [#allocation14], %s99
      %s101 = sshll.u32 [#allocation15], 4
      %s102 = int_to_ptr.vmem [resolvable:$true] %s101
      %107 = dma.hbm_to_vmem [thread:$0]  %s10, 9216, %s102, [#allocation14], 64, 64, 4
    $region45: #{tpu_custom_call.1} parent=1 // pred_fallthru
      _
    // Predicated region
    $region46: #{tpu_custom_call.1} parent=1 // pred_check
      _
    $region47: #{tpu_custom_call.1} parent=1 // pred_check_branch
      %109 = sbr.rel (0) target = $region49
    $region48: #{tpu_custom_call.1} parent=1 // pred_region
      _
    $region49: #{tpu_custom_call.1} parent=1 // pred_fallthru
      _
    // Predicated region
    $region50: #{tpu_custom_call.1} parent=1 // pred_check
      _
    $region51: #{tpu_custom_call.1} parent=1 // pred_check_branch
      %111 = sbr.rel (0) target = $region53
    $region52: #{tpu_custom_call.1} parent=1 // pred_region
      %112 = dma.done [#allocation5], 256
    $region53: #{tpu_custom_call.1} parent=1 // pred_fallthru
      _
    // Predicated region
    $region54: #{tpu_custom_call.1} parent=1 // pred_check
      _
    $region55: #{tpu_custom_call.1} parent=1 // pred_check_branch
      %114 = sbr.rel (0) target = $region57
    $region56: #{tpu_custom_call.1} parent=1 // pred_region
      %115 = dma.done [#allocation8], 128
    $region57: #{tpu_custom_call.1} parent=1 // pred_fallthru
      _
    // Predicated region
    $region58: #{tpu_custom_call.1} parent=1 // pred_check
      _
    $region59: #{tpu_custom_call.1} parent=1 // pred_check_branch
      %117 = sbr.rel (0) target = $region61
    $region60: #{tpu_custom_call.1} parent=1 // pred_region
      %118 = dma.done [#allocation8], 768
    $region61: #{tpu_custom_call.1} parent=1 // pred_fallthru
      _
    // Predicated region
    $region62: #{tpu_custom_call.1} parent=1 // pred_check
      _
    $region63: #{tpu_custom_call.1} parent=1 // pred_check_branch
      %120 = sbr.rel (0) target = $region65
    $region64: #{tpu_custom_call.1} parent=1 // pred_region
      %121 = dma.done [#allocation11], 192
    $region65: #{tpu_custom_call.1} parent=1 // pred_fallthru
      _
    // Predicated region
    $region66: #{tpu_custom_call.1} parent=1 // pred_check
      _
    $region67: #{tpu_custom_call.1} parent=1 // pred_check_branch
      %123 = sbr.rel (0) target = $region69
    $region68: #{tpu_custom_call.1} parent=1 // pred_region
      %124 = dma.done [#allocation11], 4096
    $region69: #{tpu_custom_call.1} parent=1 // pred_fallthru
      _
    // Predicated region
    $region70: #{tpu_custom_call.1} parent=1 // pred_check
      _
    $region71: #{tpu_custom_call.1} parent=1 // pred_check_branch
      %126 = sbr.rel (0) target = $region73
    $region72: #{tpu_custom_call.1} parent=1 // pred_region
      %127 = dma.done [#allocation14], 18432
    $region73: #{tpu_custom_call.1} parent=1 // pred_fallthru
      _
    // Predicated region
    $region74: #{tpu_custom_call.1} parent=1 // pred_check
      _
    $region75: #{tpu_custom_call.1} parent=1 // pred_check_branch
      %129 = sbr.rel (0) target = $region77
    $region76: #{tpu_custom_call.1} parent=1 // pred_region
      %130 = dma.done [#allocation14], 9216
    $region77: #{tpu_custom_call.1} parent=1 // pred_fallthru
      _
    %v132 = vld [vmem:[#allocation4] sm:$0xff]
    %v133 = vld [vmem:[#allocation4 + $0x8] sm:$0xff]
    %v134 = vld [vmem:[%s2] sm:$0xff]
    %v135 = vld [vmem:[%s2 + $0x8] sm:$0xff]
    %v136 = vld [vmem:[%s2 + $0x10] sm:$0xff]
    %v137 = vld [vmem:[%s2 + $0x18] sm:$0xff]
    %v138 = vld [vmem:[%s3] sm:$0xff]
    %v139 = vld [vmem:[%s3 + $0x8] sm:$0xff]
    %v140 = vld [vmem:[%s3 + $0x10] sm:$0xff]
    %v141 = vld [vmem:[%s3 + $0x18] sm:$0xff]
    %143 = vset.pattern.permute.xlu0 0
    %144 = vperm.xlu0 %143, %v138
    %v145 = vpop.permute.xlu0 %144
    %148 = vset.pattern.permute.xlu0 0
    %149 = vperm.xlu0 %148, %v139
    %v150 = vpop.permute.xlu0 %149
    %153 = vset.pattern.permute.xlu0 0
    %154 = vperm.xlu0 %153, %v140
    %v155 = vpop.permute.xlu0 %154
    %158 = vset.pattern.permute.xlu0 0
    %159 = vperm.xlu0 %158, %v141
    %v160 = vpop.permute.xlu0 %159
    %vm162 = vcmask 64512
    %v164 = vsel %vm162, %v134, 0
    %v167 = vsel %vm162, %v135, 0
    %v170 = vsel %vm162, %v136, 0
    %v173 = vsel %vm162, %v137, 0
    %175 = vmatprep.subr.mxu0 0.0
    %176 = vmatpush1.msra.mxu0 0.0
    %177 = vmatprep.subr.mxu0 0.0
    %178 = vmatpush1.msra.mxu0 0.0
    %179 = vmatprep.subr.mxu0 0.0
    %180 = vmatpush1.msra.mxu0 0.0
    %181 = vmatprep.subr.mxu0 0.0
    %182 = vmatpush1.msra.mxu0 0.0
    %183 = vmatprep.subr.mxu0 0.0
    %184 = vmatpush1.msra.mxu0 0.0
    %185 = vmatprep.subr.mxu0 0.0
    %186 = vmatpush1.msra.mxu0 0.0
    %187 = vmatprep.subr.mxu0 0.0
    %188 = vmatpush1.msra.mxu0 0.0
    %189 = vmatprep.subr.mxu0 0.0
    %190 = vmatpush1.msra.mxu0 0.0
    %191 = vmatprep.subr.mxu0 0.0
    %192 = vmatpush1.msra.mxu0 0.0
    %193 = vmatprep.subr.mxu0 0.0
    %194 = vmatpush1.msra.mxu0 0.0
    %195 = vmatprep.subr.mxu0 0.0
    %196 = vmatpush1.msra.mxu0 0.0
    %197 = vmatprep.subr.mxu0 0.0
    %198 = vmatpush1.msra.mxu0 0.0
    %199 = vmatprep.subr.mxu0 0.0
    %200 = vmatpush1.msra.mxu0 0.0
    %201 = vmatprep.subr.mxu0 0.0
    %202 = vmatpush1.msra.mxu0 0.0
    %203 = vmatprep.subr.mxu0 0.0
    %204 = vmatpush1.msra.mxu0 0.0
    %205 = vmatprep.subr.mxu0 %v133
    %206 = vmatpush1.msra.mxu0 %v132
    %207 = vmatprep.subr.mxu0 0.0
    %208 = vmatpush2.msra.mxu0 0.0
    %209 = vmatprep.subr.mxu0 0.0
    %210 = vmatpush2.msra.mxu0 0.0
    %211 = vmatprep.subr.mxu0 0.0
    %212 = vmatpush2.msra.mxu0 0.0
    %213 = vmatprep.subr.mxu0 0.0
    %214 = vmatpush2.msra.mxu0 0.0
    %215 = vmatprep.subr.mxu0 0.0
    %216 = vmatpush2.msra.mxu0 0.0
    %217 = vmatprep.subr.mxu0 0.0
    %218 = vmatpush2.msra.mxu0 0.0
    %219 = vmatprep.subr.mxu0 0.0
    %220 = vmatpush2.msra.mxu0 0.0
    %221 = vmatprep.subr.mxu0 0.0
    %222 = vmatpush2.msra.mxu0 0.0
    %223 = vmatprep.subr.mxu0 0.0
    %224 = vmatpush2.msra.mxu0 0.0
    %225 = vmatprep.subr.mxu0 0.0
    %226 = vmatpush2.msra.mxu0 0.0
    %227 = vmatprep.subr.mxu0 0.0
    %228 = vmatpush2.msra.mxu0 0.0
    %229 = vmatprep.subr.mxu0 0.0
    %230 = vmatpush2.msra.mxu0 0.0
    %231 = vmatprep.subr.mxu0 0.0
    %232 = vmatpush2.msra.mxu0 0.0
    %233 = vmatprep.subr.mxu0 0.0
    %234 = vmatpush2.msra.mxu0 0.0
    %235 = vmatprep.subr.mxu0 0.0
    %236 = vmatpush2.msra.mxu0 0.0
    %237 = vmatprep.subr.mxu0 0.0
    %238 = vmatpush2.msra.mxu0 0.0
    %239 = vmatprep.mubr.f32.mxu0 0.0
    %240 = vmatmul.mubr.f32.gmra.mxu0 %v164
    %v241 = vpop.f32.mrf.mxu0
    %v242 = vadd.f32 %v145, %v241
    %v243 = vpop.f32.mrf.mxu0
    %v244 = vadd.f32 %v145, %v243
    %245 = vmatprep.mubr.f32.mxu0 0.0
    %246 = vmatmul.mubr.f32.gmra.mxu0 %v167
    %v247 = vpop.f32.mrf.mxu0
    %v248 = vadd.f32 %v150, %v247
    %v249 = vpop.f32.mrf.mxu0
    %v250 = vadd.f32 %v150, %v249
    %251 = vmatprep.mubr.f32.mxu0 0.0
    %252 = vmatmul.mubr.f32.gmra.mxu0 %v170
    %v253 = vpop.f32.mrf.mxu0
    %v254 = vadd.f32 %v155, %v253
    %v255 = vpop.f32.mrf.mxu0
    %v256 = vadd.f32 %v155, %v255
    %257 = vmatprep.mubr.f32.mxu0 0.0
    %258 = vmatmul.mubr.f32.gmra.mxu0 %v173
    %v259 = vpop.f32.mrf.mxu0
    %v260 = vadd.f32 %v160, %v259
    %v261 = vpop.f32.mrf.mxu0
    %v262 = vadd.f32 %v160, %v261
    %263 = vdwg.mxu0
    %v264 = vmul.f32 %v242, 1.442695
    %v265 = vpow.pop %v264
    %v266 = vmul.f32 %v244, 1.442695
    %v267 = vpow.pop %v266
    %v268 = vmul.f32 %v248, 1.442695
    %v269 = vpow.pop %v268
    %v270 = vmul.f32 %v250, 1.442695
    %v271 = vpow.pop %v270
    %v272 = vmul.f32 %v254, 1.442695
    %v273 = vpow.pop %v272
    %v274 = vmul.f32 %v256, 1.442695
    %v275 = vpow.pop %v274
    %v276 = vmul.f32 %v260, 1.442695
    %v277 = vpow.pop %v276
    %v278 = vmul.f32 %v262, 1.442695
    %v279 = vpow.pop %v278
    %v280 = vld [vmem:[#allocation12] sm:$0xff]
    %v281 = vld [vmem:[#allocation12 + $0x8] sm:$0xff]
    %v282 = vld [vmem:[#allocation12 + $0x10] sm:$0xff]
    %v283 = vld [vmem:[#allocation12 + $0x18] sm:$0xff]
    %v284 = vld [vmem:[#allocation12 + $0x20] sm:$0xff]
    %v285 = vld [vmem:[#allocation12 + $0x28] sm:$0xff]
    %v286 = vld [vmem:[#allocation12 + $0x30] sm:$0xff]
    %v287 = vld [vmem:[#allocation12 + $0x38] sm:$0xff]
    %v288 = vld [vmem:[#allocation12 + $0x40] sm:$0xff]
    %v289 = vld [vmem:[#allocation12 + $0x48] sm:$0xff]
    %v290 = vld [vmem:[#allocation12 + $0x50] sm:$0xff]
    %v291 = vld [vmem:[#allocation12 + $0x58] sm:$0xff]
    %v292 = vld [vmem:[#allocation12 + $0x60] sm:$0xff]
    %v293 = vld [vmem:[#allocation12 + $0x68] sm:$0xff]
    %v294 = vld [vmem:[#allocation12 + $0x70] sm:$0xff]
    %v295 = vld [vmem:[#allocation12 + $0x78] sm:$0xff]
    %v296 = vld [vmem:[#allocation12 + $0x80] sm:$0xff]
    %v297 = vld [vmem:[#allocation12 + $0x88] sm:$0xff]
    %v298 = vld [vmem:[#allocation12 + $0x90] sm:$0xff]
    %v299 = vld [vmem:[#allocation12 + $0x98] sm:$0xff]
    %v300 = vld [vmem:[#allocation12 + $0xa0] sm:$0xff]
    %v301 = vld [vmem:[#allocation12 + $0xa8] sm:$0xff]
    %v302 = vld [vmem:[#allocation12 + $0xb0] sm:$0xff]
    %v303 = vld [vmem:[#allocation12 + $0xb8] sm:$0xff]
    %v304 = vld [vmem:[#allocation12 + $0xc0] sm:$0xff]
    %v305 = vld [vmem:[#allocation12 + $0xc8] sm:$0xff]
    %v306 = vld [vmem:[#allocation12 + $0xd0] sm:$0xff]
    %v307 = vld [vmem:[#allocation12 + $0xd8] sm:$0xff]
    %v308 = vld [vmem:[#allocation12 + $0xe0] sm:$0xff]
    %v309 = vld [vmem:[#allocation12 + $0xe8] sm:$0xff]
    %v310 = vld [vmem:[#allocation12 + $0xf0] sm:$0xff]
    %v311 = vld [vmem:[#allocation12 + $0xf8] sm:$0xff]
    %v312 = vmul.f32 %v265, %v242
    %v313 = vmul.f32 %v267, %v244
    %v314 = vmul.f32 %v269, %v248
    %v315 = vmul.f32 %v271, %v250
    %v316 = vmul.f32 %v273, %v254
    %v317 = vmul.f32 %v275, %v256
    %v318 = vmul.f32 %v277, %v260
    %v319 = vmul.f32 %v279, %v262
    %v320 = vpack.c.bf16 %v314, %v312
    %v321 = vpack.c.bf16 %v315, %v313
    %v322 = vpack.c.bf16 %v318, %v316
    %v323 = vpack.c.bf16 %v319, %v317
    %v356 = vunpack.c.l.b16 %v280
    %v357 = vunpack.c.h.b16 %v280
    %v358 = vunpack.c.l.b16 %v281
    %v359 = vunpack.c.h.b16 %v281
    %v360 = vunpack.c.l.b16 %v282
    %v361 = vunpack.c.h.b16 %v282
    %v362 = vunpack.c.l.b16 %v283
    %v363 = vunpack.c.h.b16 %v283
    %v364 = vunpack.c.l.b16 %v284
    %v365 = vunpack.c.h.b16 %v284
    %v366 = vunpack.c.l.b16 %v285
    %v367 = vunpack.c.h.b16 %v285
    %v368 = vunpack.c.l.b16 %v286
    %v369 = vunpack.c.h.b16 %v286
    %v370 = vunpack.c.l.b16 %v287
    %v371 = vunpack.c.h.b16 %v287
    %v372 = vunpack.c.l.b16 %v288
    %v373 = vunpack.c.h.b16 %v288
    %v374 = vunpack.c.l.b16 %v289
    %v375 = vunpack.c.h.b16 %v289
    %v376 = vunpack.c.l.b16 %v290
    %v377 = vunpack.c.h.b16 %v290
    %v378 = vunpack.c.l.b16 %v291
    %v379 = vunpack.c.h.b16 %v291
    %v380 = vunpack.c.l.b16 %v292
    %v381 = vunpack.c.h.b16 %v292
    %v382 = vunpack.c.l.b16 %v293
    %v383 = vunpack.c.h.b16 %v293
    %v384 = vunpack.c.l.b16 %v294
    %v385 = vunpack.c.h.b16 %v294
    %v386 = vunpack.c.l.b16 %v295
    %v387 = vunpack.c.h.b16 %v295
    %v388 = vunpack.c.l.b16 %v296
    %v389 = vunpack.c.h.b16 %v296
    %v390 = vunpack.c.l.b16 %v297
    %v391 = vunpack.c.h.b16 %v297
    %v392 = vunpack.c.l.b16 %v298
    %v393 = vunpack.c.h.b16 %v298
    %v394 = vunpack.c.l.b16 %v299
    %v395 = vunpack.c.h.b16 %v299
    %v396 = vunpack.c.l.b16 %v300
    %v397 = vunpack.c.h.b16 %v300
    %v398 = vunpack.c.l.b16 %v301
    %v399 = vunpack.c.h.b16 %v301
    %v400 = vunpack.c.l.b16 %v302
    %v401 = vunpack.c.h.b16 %v302
    %v402 = vunpack.c.l.b16 %v303
    %v403 = vunpack.c.h.b16 %v303
    %v404 = vunpack.c.l.b16 %v304
    %v405 = vunpack.c.h.b16 %v304
    %v406 = vunpack.c.l.b16 %v305
    %v407 = vunpack.c.h.b16 %v305
    %v408 = vunpack.c.l.b16 %v306
    %v409 = vunpack.c.h.b16 %v306
    %v410 = vunpack.c.l.b16 %v307
    %v411 = vunpack.c.h.b16 %v307
    %v412 = vunpack.c.l.b16 %v308
    %v413 = vunpack.c.h.b16 %v308
    %v414 = vunpack.c.l.b16 %v309
    %v415 = vunpack.c.h.b16 %v309
    %v416 = vunpack.c.l.b16 %v310
    %v417 = vunpack.c.h.b16 %v310
    %v418 = vunpack.c.l.b16 %v311
    %v419 = vunpack.c.h.b16 %v311
    %v420 = vpack.c.b16 %v358, %v356
    %v421 = vpack.c.b16 %v359, %v357
    %v422 = vpack.c.b16 %v362, %v360
    %v423 = vpack.c.b16 %v363, %v361
    %v424 = vpack.c.b16 %v366, %v364
    %v425 = vpack.c.b16 %v367, %v365
    %v426 = vpack.c.b16 %v370, %v368
    %v427 = vpack.c.b16 %v371, %v369
    %v428 = vpack.c.b16 %v374, %v372
    %v429 = vpack.c.b16 %v375, %v373
    %v430 = vpack.c.b16 %v378, %v376
    %v431 = vpack.c.b16 %v379, %v377
    %v432 = vpack.c.b16 %v382, %v380
    %v433 = vpack.c.b16 %v383, %v381
    %v434 = vpack.c.b16 %v386, %v384
    %v435 = vpack.c.b16 %v387, %v385
    %v436 = vpack.c.b16 %v390, %v388
    %v437 = vpack.c.b16 %v391, %v389
    %v438 = vpack.c.b16 %v394, %v392
    %v439 = vpack.c.b16 %v395, %v393
    %v440 = vpack.c.b16 %v398, %v396
    %v441 = vpack.c.b16 %v399, %v397
    %v442 = vpack.c.b16 %v402, %v400
    %v443 = vpack.c.b16 %v403, %v401
    %v444 = vpack.c.b16 %v406, %v404
    %v445 = vpack.c.b16 %v407, %v405
    %v446 = vpack.c.b16 %v410, %v408
    %v447 = vpack.c.b16 %v411, %v409
    %v448 = vpack.c.b16 %v414, %v412
    %v449 = vpack.c.b16 %v415, %v413
    %v450 = vpack.c.b16 %v418, %v416
    %v451 = vpack.c.b16 %v419, %v417
    %484 = vmatprep.subr.bf16.mxu0 %v435
    %485 = vmatpush1.bf16.msra.mxu0 %v434
    %486 = vmatprep.subr.bf16.mxu0 %v433
    %487 = vmatpush1.bf16.msra.mxu0 %v432
    %488 = vmatprep.subr.bf16.mxu0 %v431
    %489 = vmatpush1.bf16.msra.mxu0 %v430
    %490 = vmatprep.subr.bf16.mxu0 %v429
    %491 = vmatpush1.bf16.msra.mxu0 %v428
    %492 = vmatprep.subr.bf16.mxu0 %v427
    %493 = vmatpush1.bf16.msra.mxu0 %v426
    %494 = vmatprep.subr.bf16.mxu0 %v425
    %495 = vmatpush1.bf16.msra.mxu0 %v424
    %496 = vmatprep.subr.bf16.mxu0 %v423
    %497 = vmatpush1.bf16.msra.mxu0 %v422
    %498 = vmatprep.subr.bf16.mxu0 %v421
    %499 = vmatpush1.bf16.msra.mxu0 %v420
    %500 = vmatprep.subr.bf16.mxu0 %v451
    %501 = vmatpush2.bf16.msra.mxu0 %v450
    %502 = vmatprep.subr.bf16.mxu0 %v449
    %503 = vmatpush2.bf16.msra.mxu0 %v448
    %504 = vmatprep.subr.bf16.mxu0 %v447
    %505 = vmatpush2.bf16.msra.mxu0 %v446
    %506 = vmatprep.subr.bf16.mxu0 %v445
    %507 = vmatpush2.bf16.msra.mxu0 %v444
    %508 = vmatprep.subr.bf16.mxu0 %v443
    %509 = vmatpush2.bf16.msra.mxu0 %v442
    %510 = vmatprep.subr.bf16.mxu0 %v441
    %511 = vmatpush2.bf16.msra.mxu0 %v440
    %512 = vmatprep.subr.bf16.mxu0 %v439
    %513 = vmatpush2.bf16.msra.mxu0 %v438
    %514 = vmatprep.subr.bf16.mxu0 %v437
    %515 = vmatpush2.bf16.msra.mxu0 %v436
    %516 = vmatprep.mubr.bf16.mxu0 %v321
    %517 = vmatmul.mubr.bf16.gmra.mxu0 %v320
    %v518 = vpop.f32.mrf.mxu0
    %v519 = vadd.f32 0.0, %v518
    %v520 = vpop.f32.mrf.mxu0
    %v521 = vadd.f32 0.0, %v520
    %v522 = vpop.f32.mrf.mxu0
    %v523 = vadd.f32 0.0, %v522
    %v524 = vpop.f32.mrf.mxu0
    %v525 = vadd.f32 0.0, %v524
    %526 = vmatprep.mubr.bf16.mxu0 %v323
    %527 = vmatmul.mubr.bf16.gmra.mxu0 %v322
    %v528 = vpop.f32.mrf.mxu0
    %v529 = vadd.f32 0.0, %v528
    %v530 = vpop.f32.mrf.mxu0
    %v531 = vadd.f32 0.0, %v530
    %v532 = vpop.f32.mrf.mxu0
    %v533 = vadd.f32 0.0, %v532
    %v534 = vpop.f32.mrf.mxu0
    %v535 = vadd.f32 0.0, %v534
    %536 = vdwg.mxu0
    %v537 = vpack.c.bf16 %v269, %v265
    %v538 = vpack.c.bf16 %v271, %v267
    %v539 = vpack.c.bf16 %v277, %v273
    %v540 = vpack.c.bf16 %v279, %v275
    %541 = vmatprep.subr.bf16.mxu0 %v435
    %542 = vmatpush1.bf16.msra.mxu0 %v434
    %543 = vmatprep.subr.bf16.mxu0 %v433
    %544 = vmatpush1.bf16.msra.mxu0 %v432
    %545 = vmatprep.subr.bf16.mxu0 %v431
    %546 = vmatpush1.bf16.msra.mxu0 %v430
    %547 = vmatprep.subr.bf16.mxu0 %v429
    %548 = vmatpush1.bf16.msra.mxu0 %v428
    %549 = vmatprep.subr.bf16.mxu0 %v427
    %550 = vmatpush1.bf16.msra.mxu0 %v426
    %551 = vmatprep.subr.bf16.mxu0 %v425
    %552 = vmatpush1.bf16.msra.mxu0 %v424
    %553 = vmatprep.subr.bf16.mxu0 %v423
    %554 = vmatpush1.bf16.msra.mxu0 %v422
    %555 = vmatprep.subr.bf16.mxu0 %v421
    %556 = vmatpush1.bf16.msra.mxu0 %v420
    %557 = vmatprep.subr.bf16.mxu0 %v451
    %558 = vmatpush2.bf16.msra.mxu0 %v450
    %559 = vmatprep.subr.bf16.mxu0 %v449
    %560 = vmatpush2.bf16.msra.mxu0 %v448
    %561 = vmatprep.subr.bf16.mxu0 %v447
    %562 = vmatpush2.bf16.msra.mxu0 %v446
    %563 = vmatprep.subr.bf16.mxu0 %v445
    %564 = vmatpush2.bf16.msra.mxu0 %v444
    %565 = vmatprep.subr.bf16.mxu0 %v443
    %566 = vmatpush2.bf16.msra.mxu0 %v442
    %567 = vmatprep.subr.bf16.mxu0 %v441
    %568 = vmatpush2.bf16.msra.mxu0 %v440
    %569 = vmatprep.subr.bf16.mxu0 %v439
    %570 = vmatpush2.bf16.msra.mxu0 %v438
    %571 = vmatprep.subr.bf16.mxu0 %v437
    %572 = vmatpush2.bf16.msra.mxu0 %v436
    %573 = vmatprep.mubr.bf16.mxu0 %v538
    %574 = vmatmul.mubr.bf16.gmra.mxu0 %v537
    %v575 = vpop.f32.mrf.mxu0
    %v576 = vadd.f32 0.0, %v575
    %v577 = vpop.f32.mrf.mxu0
    %v578 = vadd.f32 0.0, %v577
    %v579 = vpop.f32.mrf.mxu0
    %v580 = vadd.f32 0.0, %v579
    %v581 = vpop.f32.mrf.mxu0
    %v582 = vadd.f32 0.0, %v581
    %583 = vmatprep.mubr.bf16.mxu0 %v540
    %584 = vmatmul.mubr.bf16.gmra.mxu0 %v539
    %v585 = vpop.f32.mrf.mxu0
    %v586 = vadd.f32 0.0, %v585
    %v587 = vpop.f32.mrf.mxu0
    %v588 = vadd.f32 0.0, %v587
    %v589 = vpop.f32.mrf.mxu0
    %v590 = vadd.f32 0.0, %v589
    %v591 = vpop.f32.mrf.mxu0
    %v592 = vadd.f32 0.0, %v591
    %593 = vdwg.mxu0
    %v594 = vmax.f32 %v576, 1e-30
    %v595 = vmax.f32 %v578, 1e-30
    %v596 = vmax.f32 %v580, 1e-30
    %v597 = vmax.f32 %v582, 1e-30
    %v598 = vmax.f32 %v586, 1e-30
    %v599 = vmax.f32 %v588, 1e-30
    %v600 = vmax.f32 %v590, 1e-30
    %v601 = vmax.f32 %v592, 1e-30
    %v602 = vrcp.pop %v594
    %v603 = vrcp.pop %v595
    %v604 = vrcp.pop %v596
    %v605 = vrcp.pop %v597
    %v606 = vrcp.pop %v598
    %v607 = vrcp.pop %v599
    %v608 = vrcp.pop %v600
    %v609 = vrcp.pop %v601
    %v610 = vmul.f32 %v519, %v602
    %v611 = vmul.f32 %v521, %v603
    %v612 = vmul.f32 %v523, %v604
    %v613 = vmul.f32 %v525, %v605
    %v614 = vmul.f32 %v529, %v606
    %v615 = vmul.f32 %v531, %v607
    %v616 = vmul.f32 %v533, %v608
    %v617 = vmul.f32 %v535, %v609
    %v618 = vpack.c.bf16 %v612, %v610
    %v619 = vpack.c.bf16 %v613, %v611
    %v620 = vpack.c.bf16 %v616, %v614
    %v621 = vpack.c.bf16 %v617, %v615
    %v622 = vld [vmem:[#allocation13] sm:$0xf]
    %v623 = vld [vmem:[#allocation13 + $0x4] sm:$0xf]
    %v624 = vld [vmem:[#allocation13 + $0x8] sm:$0xf]
    %v625 = vld [vmem:[#allocation13 + $0xc] sm:$0xf]
    %v626 = vld [vmem:[#allocation13 + $0x10] sm:$0xf]
    %v627 = vld [vmem:[#allocation13 + $0x14] sm:$0xf]
    %v628 = vld [vmem:[#allocation13 + $0x18] sm:$0xf]
    %v629 = vld [vmem:[#allocation13 + $0x1c] sm:$0xf]
    %v630 = vld [vmem:[#allocation13 + $0x20] sm:$0xf]
    %v631 = vld [vmem:[#allocation13 + $0x24] sm:$0xf]
    %v632 = vld [vmem:[#allocation13 + $0x28] sm:$0xf]
    %v633 = vld [vmem:[#allocation13 + $0x2c] sm:$0xf]
    %v634 = vld [vmem:[#allocation13 + $0x30] sm:$0xf]
    %v635 = vld [vmem:[#allocation13 + $0x34] sm:$0xf]
    %v636 = vld [vmem:[#allocation13 + $0x38] sm:$0xf]
    %v637 = vld [vmem:[#allocation13 + $0x3c] sm:$0xf]
    %v638 = vld [vmem:[#allocation13 + $0x40] sm:$0xf]
    %v639 = vld [vmem:[#allocation13 + $0x44] sm:$0xf]
    %v640 = vld [vmem:[#allocation13 + $0x48] sm:$0xf]
    %v641 = vld [vmem:[#allocation13 + $0x4c] sm:$0xf]
    %v642 = vld [vmem:[#allocation13 + $0x50] sm:$0xf]
    %v643 = vld [vmem:[#allocation13 + $0x54] sm:$0xf]
    %v644 = vld [vmem:[#allocation13 + $0x58] sm:$0xf]
    %v645 = vld [vmem:[#allocation13 + $0x5c] sm:$0xf]
    %v646 = vld [vmem:[#allocation13 + $0x60] sm:$0xf]
    %v647 = vld [vmem:[#allocation13 + $0x64] sm:$0xf]
    %v648 = vld [vmem:[#allocation13 + $0x68] sm:$0xf]
    %v649 = vld [vmem:[#allocation13 + $0x6c] sm:$0xf]
    %v650 = vld [vmem:[#allocation13 + $0x70] sm:$0xf]
    %v651 = vld [vmem:[#allocation13 + $0x74] sm:$0xf]
    %v652 = vld [vmem:[#allocation13 + $0x78] sm:$0xf]
    %v653 = vld [vmem:[#allocation13 + $0x7c] sm:$0xf]
    %v686 = vunpack.c.l.b16 %v622
    %v687 = vunpack.c.l.b16 %v623
    %v688 = vunpack.c.l.b16 %v624
    %v689 = vunpack.c.l.b16 %v625
    %v690 = vunpack.c.l.b16 %v626
    %v691 = vunpack.c.l.b16 %v627
    %v692 = vunpack.c.l.b16 %v628
    %v693 = vunpack.c.l.b16 %v629
    %v694 = vunpack.c.l.b16 %v630
    %v695 = vunpack.c.l.b16 %v631
    %v696 = vunpack.c.l.b16 %v632
    %v697 = vunpack.c.l.b16 %v633
    %v698 = vunpack.c.l.b16 %v634
    %v699 = vunpack.c.l.b16 %v635
    %v700 = vunpack.c.l.b16 %v636
    %v701 = vunpack.c.l.b16 %v637
    %v702 = vunpack.c.l.b16 %v638
    %v703 = vunpack.c.l.b16 %v639
    %v704 = vunpack.c.l.b16 %v640
    %v705 = vunpack.c.l.b16 %v641
    %v706 = vunpack.c.l.b16 %v642
    %v707 = vunpack.c.l.b16 %v643
    %v708 = vunpack.c.l.b16 %v644
    %v709 = vunpack.c.l.b16 %v645
    %v710 = vunpack.c.l.b16 %v646
    %v711 = vunpack.c.l.b16 %v647
    %v712 = vunpack.c.l.b16 %v648
    %v713 = vunpack.c.l.b16 %v649
    %v714 = vunpack.c.l.b16 %v650
    %v715 = vunpack.c.l.b16 %v651
    %v716 = vunpack.c.l.b16 %v652
    %v717 = vunpack.c.l.b16 %v653
    %v718 = vpack.c.b16 %v687, %v686
    %v719 = vpack.c.b16 %v689, %v688
    %v720 = vpack.c.b16 %v691, %v690
    %v721 = vpack.c.b16 %v693, %v692
    %v722 = vpack.c.b16 %v695, %v694
    %v723 = vpack.c.b16 %v697, %v696
    %v724 = vpack.c.b16 %v699, %v698
    %v725 = vpack.c.b16 %v701, %v700
    %v726 = vpack.c.b16 %v703, %v702
    %v727 = vpack.c.b16 %v705, %v704
    %v728 = vpack.c.b16 %v707, %v706
    %v729 = vpack.c.b16 %v709, %v708
    %v730 = vpack.c.b16 %v711, %v710
    %v731 = vpack.c.b16 %v713, %v712
    %v732 = vpack.c.b16 %v715, %v714
    %v733 = vpack.c.b16 %v717, %v716
    %750 = vmatprep.subr.bf16.mxu0 0
    %751 = vmatpush1.bf16.msra.mxu0 %v725
    %752 = vmatprep.subr.bf16.mxu0 0
    %753 = vmatpush1.bf16.msra.mxu0 %v724
    %754 = vmatprep.subr.bf16.mxu0 0
    %755 = vmatpush1.bf16.msra.mxu0 %v723
    %756 = vmatprep.subr.bf16.mxu0 0
    %757 = vmatpush1.bf16.msra.mxu0 %v722
    %758 = vmatprep.subr.bf16.mxu0 0
    %759 = vmatpush1.bf16.msra.mxu0 %v721
    %760 = vmatprep.subr.bf16.mxu0 0
    %761 = vmatpush1.bf16.msra.mxu0 %v720
    %762 = vmatprep.subr.bf16.mxu0 0
    %763 = vmatpush1.bf16.msra.mxu0 %v719
    %764 = vmatprep.subr.bf16.mxu0 0
    %765 = vmatpush1.bf16.msra.mxu0 %v718
    %766 = vmatprep.subr.bf16.mxu0 0
    %767 = vmatpush2.bf16.msra.mxu0 %v733
    %768 = vmatprep.subr.bf16.mxu0 0
    %769 = vmatpush2.bf16.msra.mxu0 %v732
    %770 = vmatprep.subr.bf16.mxu0 0
    %771 = vmatpush2.bf16.msra.mxu0 %v731
    %772 = vmatprep.subr.bf16.mxu0 0
    %773 = vmatpush2.bf16.msra.mxu0 %v730
    %774 = vmatprep.subr.bf16.mxu0 0
    %775 = vmatpush2.bf16.msra.mxu0 %v729
    %776 = vmatprep.subr.bf16.mxu0 0
    %777 = vmatpush2.bf16.msra.mxu0 %v728
    %778 = vmatprep.subr.bf16.mxu0 0
    %779 = vmatpush2.bf16.msra.mxu0 %v727
    %780 = vmatprep.subr.bf16.mxu0 0
    %781 = vmatpush2.bf16.msra.mxu0 %v726
    %782 = vmatprep.mubr.bf16.mxu0 %v619
    %783 = vmatmul.mubr.bf16.gmra.mxu0 %v618
    %v784 = vpop.f32.mrf.mxu0
    %v785 = vadd.f32 0.0, %v784
    %v786 = vpop.f32.mrf.mxu0
    %v787 = vpop.f32.mrf.mxu0
    %v788 = vadd.f32 0.0, %v787
    %v789 = vpop.f32.mrf.mxu0
    %790 = vmatprep.mubr.bf16.mxu0 %v621
    %791 = vmatmul.mubr.bf16.gmra.mxu0 %v620
    %v792 = vpop.f32.mrf.mxu0
    %v793 = vadd.f32 0.0, %v792
    %v794 = vpop.f32.mrf.mxu0
    %v795 = vpop.f32.mrf.mxu0
    %v796 = vadd.f32 0.0, %v795
    %v797 = vpop.f32.mrf.mxu0
    %798 = vdwg.mxu0
    %v799 = vpack.c.bf16 %v788, %v785
    %v800 = vpack.c.bf16 %v796, %v793
    %v803 = vunpack.c.l.b16 %v799
    %v804 = vunpack.c.h.b16 %v799
    %v805 = vunpack.c.l.b16 %v800
    %v806 = vunpack.c.h.b16 %v800
    %v807 = vpack.c.b16 %v803, %v803
    %v808 = vpack.c.b16 %v804, %v804
    %v809 = vpack.c.b16 %v805, %v805
    %v810 = vpack.c.b16 %v806, %v806
    %815 = vst [vmem:[#allocation2] sm:$0xf] %v807
    %816 = vst [vmem:[#allocation2 + $0x4] sm:$0xf] %v808
    %817 = vst [vmem:[#allocation2 + $0x8] sm:$0xf] %v809
    %818 = vst [vmem:[#allocation2 + $0xc] sm:$0xf] %v810
    %s819 = scalar_lea.vmem [#allocation13], 128
    %v820 = vld [vmem:[%s819] sm:$0xf]
    %v821 = vld [vmem:[%s819 + $0x4] sm:$0xf]
    %v822 = vld [vmem:[%s819 + $0x8] sm:$0xf]
    %v823 = vld [vmem:[%s819 + $0xc] sm:$0xf]
    %v824 = vld [vmem:[%s819 + $0x10] sm:$0xf]
    %v825 = vld [vmem:[%s819 + $0x14] sm:$0xf]
    %v826 = vld [vmem:[%s819 + $0x18] sm:$0xf]
    %v827 = vld [vmem:[%s819 + $0x1c] sm:$0xf]
    %v828 = vld [vmem:[%s819 + $0x20] sm:$0xf]
    %v829 = vld [vmem:[%s819 + $0x24] sm:$0xf]
    %v830 = vld [vmem:[%s819 + $0x28] sm:$0xf]
    %v831 = vld [vmem:[%s819 + $0x2c] sm:$0xf]
    %v832 = vld [vmem:[%s819 + $0x30] sm:$0xf]
    %v833 = vld [vmem:[%s819 + $0x34] sm:$0xf]
    %v834 = vld [vmem:[%s819 + $0x38] sm:$0xf]
    %v835 = vld [vmem:[%s819 + $0x3c] sm:$0xf]
    %v836 = vld [vmem:[%s819 + $0x40] sm:$0xf]
    %v837 = vld [vmem:[%s819 + $0x44] sm:$0xf]
    %v838 = vld [vmem:[%s819 + $0x48] sm:$0xf]
    %v839 = vld [vmem:[%s819 + $0x4c] sm:$0xf]
    %v840 = vld [vmem:[%s819 + $0x50] sm:$0xf]
    %v841 = vld [vmem:[%s819 + $0x54] sm:$0xf]
    %v842 = vld [vmem:[%s819 + $0x58] sm:$0xf]
    %v843 = vld [vmem:[%s819 + $0x5c] sm:$0xf]
    %v844 = vld [vmem:[%s819 + $0x60] sm:$0xf]
    %v845 = vld [vmem:[%s819 + $0x64] sm:$0xf]
    %v846 = vld [vmem:[%s819 + $0x68] sm:$0xf]
    %v847 = vld [vmem:[%s819 + $0x6c] sm:$0xf]
    %v848 = vld [vmem:[%s819 + $0x70] sm:$0xf]
    %v849 = vld [vmem:[%s819 + $0x74] sm:$0xf]
    %v850 = vld [vmem:[%s819 + $0x78] sm:$0xf]
    %v851 = vld [vmem:[%s819 + $0x7c] sm:$0xf]
    %v884 = vunpack.c.l.b16 %v820
    %v885 = vunpack.c.l.b16 %v821
    %v886 = vunpack.c.l.b16 %v822
    %v887 = vunpack.c.l.b16 %v823
    %v888 = vunpack.c.l.b16 %v824
    %v889 = vunpack.c.l.b16 %v825
    %v890 = vunpack.c.l.b16 %v826
    %v891 = vunpack.c.l.b16 %v827
    %v892 = vunpack.c.l.b16 %v828
    %v893 = vunpack.c.l.b16 %v829
    %v894 = vunpack.c.l.b16 %v830
    %v895 = vunpack.c.l.b16 %v831
    %v896 = vunpack.c.l.b16 %v832
    %v897 = vunpack.c.l.b16 %v833
    %v898 = vunpack.c.l.b16 %v834
    %v899 = vunpack.c.l.b16 %v835
    %v900 = vunpack.c.l.b16 %v836
    %v901 = vunpack.c.l.b16 %v837
    %v902 = vunpack.c.l.b16 %v838
    %v903 = vunpack.c.l.b16 %v839
    %v904 = vunpack.c.l.b16 %v840
    %v905 = vunpack.c.l.b16 %v841
    %v906 = vunpack.c.l.b16 %v842
    %v907 = vunpack.c.l.b16 %v843
    %v908 = vunpack.c.l.b16 %v844
    %v909 = vunpack.c.l.b16 %v845
    %v910 = vunpack.c.l.b16 %v846
    %v911 = vunpack.c.l.b16 %v847
    %v912 = vunpack.c.l.b16 %v848
    %v913 = vunpack.c.l.b16 %v849
    %v914 = vunpack.c.l.b16 %v850
    %v915 = vunpack.c.l.b16 %v851
    %v916 = vpack.c.b16 %v885, %v884
    %v917 = vpack.c.b16 %v887, %v886
    %v918 = vpack.c.b16 %v889, %v888
    %v919 = vpack.c.b16 %v891, %v890
    %v920 = vpack.c.b16 %v893, %v892
    %v921 = vpack.c.b16 %v895, %v894
    %v922 = vpack.c.b16 %v897, %v896
    %v923 = vpack.c.b16 %v899, %v898
    %v924 = vpack.c.b16 %v901, %v900
    %v925 = vpack.c.b16 %v903, %v902
    %v926 = vpack.c.b16 %v905, %v904
    %v927 = vpack.c.b16 %v907, %v906
    %v928 = vpack.c.b16 %v909, %v908
    %v929 = vpack.c.b16 %v911, %v910
    %v930 = vpack.c.b16 %v913, %v912
    %v931 = vpack.c.b16 %v915, %v914
    %948 = vmatprep.subr.bf16.mxu0 0
    %949 = vmatpush1.bf16.msra.mxu0 %v923
    %950 = vmatprep.subr.bf16.mxu0 0
    %951 = vmatpush1.bf16.msra.mxu0 %v922
    %952 = vmatprep.subr.bf16.mxu0 0
    %953 = vmatpush1.bf16.msra.mxu0 %v921
    %954 = vmatprep.subr.bf16.mxu0 0
    %955 = vmatpush1.bf16.msra.mxu0 %v920
    %956 = vmatprep.subr.bf16.mxu0 0
    %957 = vmatpush1.bf16.msra.mxu0 %v919
    %958 = vmatprep.subr.bf16.mxu0 0
    %959 = vmatpush1.bf16.msra.mxu0 %v918
    %960 = vmatprep.subr.bf16.mxu0 0
    %961 = vmatpush1.bf16.msra.mxu0 %v917
    %962 = vmatprep.subr.bf16.mxu0 0
    %963 = vmatpush1.bf16.msra.mxu0 %v916
    %964 = vmatprep.subr.bf16.mxu0 0
    %965 = vmatpush2.bf16.msra.mxu0 %v931
    %966 = vmatprep.subr.bf16.mxu0 0
    %967 = vmatpush2.bf16.msra.mxu0 %v930
    %968 = vmatprep.subr.bf16.mxu0 0
    %969 = vmatpush2.bf16.msra.mxu0 %v929
    %970 = vmatprep.subr.bf16.mxu0 0
    %971 = vmatpush2.bf16.msra.mxu0 %v928
    %972 = vmatprep.subr.bf16.mxu0 0
    %973 = vmatpush2.bf16.msra.mxu0 %v927
    %974 = vmatprep.subr.bf16.mxu0 0
    %975 = vmatpush2.bf16.msra.mxu0 %v926
    %976 = vmatprep.subr.bf16.mxu0 0
    %977 = vmatpush2.bf16.msra.mxu0 %v925
    %978 = vmatprep.subr.bf16.mxu0 0
    %979 = vmatpush2.bf16.msra.mxu0 %v924
    %980 = vmatprep.mubr.bf16.mxu0 %v619
    %981 = vmatmul.mubr.bf16.gmra.mxu0 %v618
    %v982 = vpop.f32.mrf.mxu0
    %v983 = vadd.f32 0.0, %v982
    %v984 = vpop.f32.mrf.mxu0
    %v985 = vpop.f32.mrf.mxu0
    %v986 = vadd.f32 0.0, %v985
    %v987 = vpop.f32.mrf.mxu0
    %988 = vmatprep.mubr.bf16.mxu0 %v621
    %989 = vmatmul.mubr.bf16.gmra.mxu0 %v620
    %v990 = vpop.f32.mrf.mxu0
    %v991 = vadd.f32 0.0, %v990
    %v992 = vpop.f32.mrf.mxu0
    %v993 = vpop.f32.mrf.mxu0
    %v994 = vadd.f32 0.0, %v993
    %v995 = vpop.f32.mrf.mxu0
    %996 = vdwg.mxu0
    %v997 = vpack.c.bf16 %v986, %v983
    %v998 = vpack.c.bf16 %v994, %v991
    %v1001 = vunpack.c.l.b16 %v997
    %v1002 = vunpack.c.h.b16 %v997
    %v1003 = vunpack.c.l.b16 %v998
    %v1004 = vunpack.c.h.b16 %v998
    %v1005 = vpack.c.b16 %v1001, %v1001
    %v1006 = vpack.c.b16 %v1002, %v1002
    %v1007 = vpack.c.b16 %v1003, %v1003
    %v1008 = vpack.c.b16 %v1004, %v1004
    %1013 = vst [vmem:[#allocation2 + $0x10] sm:$0xf] %v1005
    %1014 = vst [vmem:[#allocation2 + $0x14] sm:$0xf] %v1006
    %1015 = vst [vmem:[#allocation2 + $0x18] sm:$0xf] %v1007
    %1016 = vst [vmem:[#allocation2 + $0x1c] sm:$0xf] %v1008
    %s1017 = scalar_lea.vmem [#allocation13], 256
    %v1018 = vld [vmem:[%s1017] sm:$0xf]
    %v1019 = vld [vmem:[%s1017 + $0x4] sm:$0xf]
    %v1020 = vld [vmem:[%s1017 + $0x8] sm:$0xf]
    %v1021 = vld [vmem:[%s1017 + $0xc] sm:$0xf]
    %v1022 = vld [vmem:[%s1017 + $0x10] sm:$0xf]
    %v1023 = vld [vmem:[%s1017 + $0x14] sm:$0xf]
    %v1024 = vld [vmem:[%s1017 + $0x18] sm:$0xf]
    %v1025 = vld [vmem:[%s1017 + $0x1c] sm:$0xf]
    %v1026 = vld [vmem:[%s1017 + $0x20] sm:$0xf]
    %v1027 = vld [vmem:[%s1017 + $0x24] sm:$0xf]
    %v1028 = vld [vmem:[%s1017 + $0x28] sm:$0xf]
    %v1029 = vld [vmem:[%s1017 + $0x2c] sm:$0xf]
    %v1030 = vld [vmem:[%s1017 + $0x30] sm:$0xf]
    %v1031 = vld [vmem:[%s1017 + $0x34] sm:$0xf]
    %v1032 = vld [vmem:[%s1017 + $0x38] sm:$0xf]
    %v1033 = vld [vmem:[%s1017 + $0x3c] sm:$0xf]
    %v1034 = vld [vmem:[%s1017 + $0x40] sm:$0xf]
    %v1035 = vld [vmem:[%s1017 + $0x44] sm:$0xf]
    %v1036 = vld [vmem:[%s1017 + $0x48] sm:$0xf]
    %v1037 = vld [vmem:[%s1017 + $0x4c] sm:$0xf]
    %v1038 = vld [vmem:[%s1017 + $0x50] sm:$0xf]
    %v1039 = vld [vmem:[%s1017 + $0x54] sm:$0xf]
    %v1040 = vld [vmem:[%s1017 + $0x58] sm:$0xf]
    %v1041 = vld [vmem:[%s1017 + $0x5c] sm:$0xf]
    %v1042 = vld [vmem:[%s1017 + $0x60] sm:$0xf]
    %v1043 = vld [vmem:[%s1017 + $0x64] sm:$0xf]
    %v1044 = vld [vmem:[%s1017 + $0x68] sm:$0xf]
    %v1045 = vld [vmem:[%s1017 + $0x6c] sm:$0xf]
    %v1046 = vld [vmem:[%s1017 + $0x70] sm:$0xf]
    %v1047 = vld [vmem:[%s1017 + $0x74] sm:$0xf]
    %v1048 = vld [vmem:[%s1017 + $0x78] sm:$0xf]
    %v1049 = vld [vmem:[%s1017 + $0x7c] sm:$0xf]
    %v1082 = vunpack.c.l.b16 %v1018
    %v1083 = vunpack.c.l.b16 %v1019
    %v1084 = vunpack.c.l.b16 %v1020
    %v1085 = vunpack.c.l.b16 %v1021
    %v1086 = vunpack.c.l.b16 %v1022
    %v1087 = vunpack.c.l.b16 %v1023
    %v1088 = vunpack.c.l.b16 %v1024
    %v1089 = vunpack.c.l.b16 %v1025
    %v1090 = vunpack.c.l.b16 %v1026
    %v1091 = vunpack.c.l.b16 %v1027
    %v1092 = vunpack.c.l.b16 %v1028
    %v1093 = vunpack.c.l.b16 %v1029
    %v1094 = vunpack.c.l.b16 %v1030
    %v1095 = vunpack.c.l.b16 %v1031
    %v1096 = vunpack.c.l.b16 %v1032
    %v1097 = vunpack.c.l.b16 %v1033
    %v1098 = vunpack.c.l.b16 %v1034
    %v1099 = vunpack.c.l.b16 %v1035
    %v1100 = vunpack.c.l.b16 %v1036
    %v1101 = vunpack.c.l.b16 %v1037
    %v1102 = vunpack.c.l.b16 %v1038
    %v1103 = vunpack.c.l.b16 %v1039
    %v1104 = vunpack.c.l.b16 %v1040
    %v1105 = vunpack.c.l.b16 %v1041
    %v1106 = vunpack.c.l.b16 %v1042
    %v1107 = vunpack.c.l.b16 %v1043
    %v1108 = vunpack.c.l.b16 %v1044
    %v1109 = vunpack.c.l.b16 %v1045
    %v1110 = vunpack.c.l.b16 %v1046
    %v1111 = vunpack.c.l.b16 %v1047
    %v1112 = vunpack.c.l.b16 %v1048
    %v1113 = vunpack.c.l.b16 %v1049
    %v1114 = vpack.c.b16 %v1083, %v1082
    %v1115 = vpack.c.b16 %v1085, %v1084
    %v1116 = vpack.c.b16 %v1087, %v1086
    %v1117 = vpack.c.b16 %v1089, %v1088
    %v1118 = vpack.c.b16 %v1091, %v1090
    %v1119 = vpack.c.b16 %v1093, %v1092
    %v1120 = vpack.c.b16 %v1095, %v1094
    %v1121 = vpack.c.b16 %v1097, %v1096
    %v1122 = vpack.c.b16 %v1099, %v1098
    %v1123 = vpack.c.b16 %v1101, %v1100
    %v1124 = vpack.c.b16 %v1103, %v1102
    %v1125 = vpack.c.b16 %v1105, %v1104
    %v1126 = vpack.c.b16 %v1107, %v1106
    %v1127 = vpack.c.b16 %v1109, %v1108
    %v1128 = vpack.c.b16 %v1111, %v1110
    %v1129 = vpack.c.b16 %v1113, %v1112
    %1146 = vmatprep.subr.bf16.mxu0 0
    %1147 = vmatpush1.bf16.msra.mxu0 %v1121
    %1148 = vmatprep.subr.bf16.mxu0 0
    %1149 = vmatpush1.bf16.msra.mxu0 %v1120
    %1150 = vmatprep.subr.bf16.mxu0 0
    %1151 = vmatpush1.bf16.msra.mxu0 %v1119
    %1152 = vmatprep.subr.bf16.mxu0 0
    %1153 = vmatpush1.bf16.msra.mxu0 %v1118
    %1154 = vmatprep.subr.bf16.mxu0 0
    %1155 = vmatpush1.bf16.msra.mxu0 %v1117
    %1156 = vmatprep.subr.bf16.mxu0 0
    %1157 = vmatpush1.bf16.msra.mxu0 %v1116
    %1158 = vmatprep.subr.bf16.mxu0 0
    %1159 = vmatpush1.bf16.msra.mxu0 %v1115
    %1160 = vmatprep.subr.bf16.mxu0 0
    %1161 = vmatpush1.bf16.msra.mxu0 %v1114
    %1162 = vmatprep.subr.bf16.mxu0 0
    %1163 = vmatpush2.bf16.msra.mxu0 %v1129
    %1164 = vmatprep.subr.bf16.mxu0 0
    %1165 = vmatpush2.bf16.msra.mxu0 %v1128
    %1166 = vmatprep.subr.bf16.mxu0 0
    %1167 = vmatpush2.bf16.msra.mxu0 %v1127
    %1168 = vmatprep.subr.bf16.mxu0 0
    %1169 = vmatpush2.bf16.msra.mxu0 %v1126
    %1170 = vmatprep.subr.bf16.mxu0 0
    %1171 = vmatpush2.bf16.msra.mxu0 %v1125
    %1172 = vmatprep.subr.bf16.mxu0 0
    %1173 = vmatpush2.bf16.msra.mxu0 %v1124
    %1174 = vmatprep.subr.bf16.mxu0 0
    %1175 = vmatpush2.bf16.msra.mxu0 %v1123
    %1176 = vmatprep.subr.bf16.mxu0 0
    %1177 = vmatpush2.bf16.msra.mxu0 %v1122
    %1178 = vmatprep.mubr.bf16.mxu0 %v619
    %1179 = vmatmul.mubr.bf16.gmra.mxu0 %v618
    %v1180 = vpop.f32.mrf.mxu0
    %v1181 = vadd.f32 0.0, %v1180
    %v1182 = vpop.f32.mrf.mxu0
    %v1183 = vpop.f32.mrf.mxu0
    %v1184 = vadd.f32 0.0, %v1183
    %v1185 = vpop.f32.mrf.mxu0
    %1186 = vmatprep.mubr.bf16.mxu0 %v621
    %1187 = vmatmul.mubr.bf16.gmra.mxu0 %v620
    %v1188 = vpop.f32.mrf.mxu0
    %v1189 = vadd.f32 0.0, %v1188
    %v1190 = vpop.f32.mrf.mxu0
    %v1191 = vpop.f32.mrf.mxu0
    %v1192 = vadd.f32 0.0, %v1191
    %v1193 = vpop.f32.mrf.mxu0
    %1194 = vdwg.mxu0
    %v1195 = vpack.c.bf16 %v1184, %v1181
    %v1196 = vpack.c.bf16 %v1192, %v1189
    %v1199 = vunpack.c.l.b16 %v1195
    %v1200 = vunpack.c.h.b16 %v1195
    %v1201 = vunpack.c.l.b16 %v1196
    %v1202 = vunpack.c.h.b16 %v1196
    %v1203 = vpack.c.b16 %v1199, %v1199
    %v1204 = vpack.c.b16 %v1200, %v1200
    %v1205 = vpack.c.b16 %v1201, %v1201
    %v1206 = vpack.c.b16 %v1202, %v1202
    %1211 = vst [vmem:[#allocation2 + $0x20] sm:$0xf] %v1203
    %1212 = vst [vmem:[#allocation2 + $0x24] sm:$0xf] %v1204
    %1213 = vst [vmem:[#allocation2 + $0x28] sm:$0xf] %v1205
    %1214 = vst [vmem:[#allocation2 + $0x2c] sm:$0xf] %v1206
    %s1215 = scalar_lea.vmem [#allocation13], 384
    %v1216 = vld [vmem:[%s1215] sm:$0xf]
    %v1217 = vld [vmem:[%s1215 + $0x4] sm:$0xf]
    %v1218 = vld [vmem:[%s1215 + $0x8] sm:$0xf]
    %v1219 = vld [vmem:[%s1215 + $0xc] sm:$0xf]
    %v1220 = vld [vmem:[%s1215 + $0x10] sm:$0xf]
    %v1221 = vld [vmem:[%s1215 + $0x14] sm:$0xf]
    %v1222 = vld [vmem:[%s1215 + $0x18] sm:$0xf]
    %v1223 = vld [vmem:[%s1215 + $0x1c] sm:$0xf]
    %v1224 = vld [vmem:[%s1215 + $0x20] sm:$0xf]
    %v1225 = vld [vmem:[%s1215 + $0x24] sm:$0xf]
    %v1226 = vld [vmem:[%s1215 + $0x28] sm:$0xf]
    %v1227 = vld [vmem:[%s1215 + $0x2c] sm:$0xf]
    %v1228 = vld [vmem:[%s1215 + $0x30] sm:$0xf]
    %v1229 = vld [vmem:[%s1215 + $0x34] sm:$0xf]
    %v1230 = vld [vmem:[%s1215 + $0x38] sm:$0xf]
    %v1231 = vld [vmem:[%s1215 + $0x3c] sm:$0xf]
    %v1232 = vld [vmem:[%s1215 + $0x40] sm:$0xf]
    %v1233 = vld [vmem:[%s1215 + $0x44] sm:$0xf]
    %v1234 = vld [vmem:[%s1215 + $0x48] sm:$0xf]
    %v1235 = vld [vmem:[%s1215 + $0x4c] sm:$0xf]
    %v1236 = vld [vmem:[%s1215 + $0x50] sm:$0xf]
    %v1237 = vld [vmem:[%s1215 + $0x54] sm:$0xf]
    %v1238 = vld [vmem:[%s1215 + $0x58] sm:$0xf]
    %v1239 = vld [vmem:[%s1215 + $0x5c] sm:$0xf]
    %v1240 = vld [vmem:[%s1215 + $0x60] sm:$0xf]
    %v1241 = vld [vmem:[%s1215 + $0x64] sm:$0xf]
    %v1242 = vld [vmem:[%s1215 + $0x68] sm:$0xf]
    %v1243 = vld [vmem:[%s1215 + $0x6c] sm:$0xf]
    %v1244 = vld [vmem:[%s1215 + $0x70] sm:$0xf]
    %v1245 = vld [vmem:[%s1215 + $0x74] sm:$0xf]
    %v1246 = vld [vmem:[%s1215 + $0x78] sm:$0xf]
    %v1247 = vld [vmem:[%s1215 + $0x7c] sm:$0xf]
    %v1280 = vunpack.c.l.b16 %v1216
    %v1281 = vunpack.c.l.b16 %v1217
    %v1282 = vunpack.c.l.b16 %v1218
    %v1283 = vunpack.c.l.b16 %v1219
    %v1284 = vunpack.c.l.b16 %v1220
    %v1285 = vunpack.c.l.b16 %v1221
    %v1286 = vunpack.c.l.b16 %v1222
    %v1287 = vunpack.c.l.b16 %v1223
    %v1288 = vunpack.c.l.b16 %v1224
    %v1289 = vunpack.c.l.b16 %v1225
    %v1290 = vunpack.c.l.b16 %v1226
    %v1291 = vunpack.c.l.b16 %v1227
    %v1292 = vunpack.c.l.b16 %v1228
    %v1293 = vunpack.c.l.b16 %v1229
    %v1294 = vunpack.c.l.b16 %v1230
    %v1295 = vunpack.c.l.b16 %v1231
    %v1296 = vunpack.c.l.b16 %v1232
    %v1297 = vunpack.c.l.b16 %v1233
    %v1298 = vunpack.c.l.b16 %v1234
    %v1299 = vunpack.c.l.b16 %v1235
    %v1300 = vunpack.c.l.b16 %v1236
    %v1301 = vunpack.c.l.b16 %v1237
    %v1302 = vunpack.c.l.b16 %v1238
    %v1303 = vunpack.c.l.b16 %v1239
    %v1304 = vunpack.c.l.b16 %v1240
    %v1305 = vunpack.c.l.b16 %v1241
    %v1306 = vunpack.c.l.b16 %v1242
    %v1307 = vunpack.c.l.b16 %v1243
    %v1308 = vunpack.c.l.b16 %v1244
    %v1309 = vunpack.c.l.b16 %v1245
    %v1310 = vunpack.c.l.b16 %v1246
    %v1311 = vunpack.c.l.b16 %v1247
    %v1312 = vpack.c.b16 %v1281, %v1280
    %v1313 = vpack.c.b16 %v1283, %v1282
    %v1314 = vpack.c.b16 %v1285, %v1284
    %v1315 = vpack.c.b16 %v1287, %v1286
    %v1316 = vpack.c.b16 %v1289, %v1288
    %v1317 = vpack.c.b16 %v1291, %v1290
    %v1318 = vpack.c.b16 %v1293, %v1292
    %v1319 = vpack.c.b16 %v1295, %v1294
    %v1320 = vpack.c.b16 %v1297, %v1296
    %v1321 = vpack.c.b16 %v1299, %v1298
    %v1322 = vpack.c.b16 %v1301, %v1300
    %v1323 = vpack.c.b16 %v1303, %v1302
    %v1324 = vpack.c.b16 %v1305, %v1304
    %v1325 = vpack.c.b16 %v1307, %v1306
    %v1326 = vpack.c.b16 %v1309, %v1308
    %v1327 = vpack.c.b16 %v1311, %v1310
    %1344 = vmatprep.subr.bf16.mxu0 0
    %1345 = vmatpush1.bf16.msra.mxu0 %v1319
    %1346 = vmatprep.subr.bf16.mxu0 0
    %1347 = vmatpush1.bf16.msra.mxu0 %v1318
    %1348 = vmatprep.subr.bf16.mxu0 0
    %1349 = vmatpush1.bf16.msra.mxu0 %v1317
    %1350 = vmatprep.subr.bf16.mxu0 0
    %1351 = vmatpush1.bf16.msra.mxu0 %v1316
    %1352 = vmatprep.subr.bf16.mxu0 0
    %1353 = vmatpush1.bf16.msra.mxu0 %v1315
    %1354 = vmatprep.subr.bf16.mxu0 0
    %1355 = vmatpush1.bf16.msra.mxu0 %v1314
    %1356 = vmatprep.subr.bf16.mxu0 0
    %1357 = vmatpush1.bf16.msra.mxu0 %v1313
    %1358 = vmatprep.subr.bf16.mxu0 0
    %1359 = vmatpush1.bf16.msra.mxu0 %v1312
    %1360 = vmatprep.subr.bf16.mxu0 0
    %1361 = vmatpush2.bf16.msra.mxu0 %v1327
    %1362 = vmatprep.subr.bf16.mxu0 0
    %1363 = vmatpush2.bf16.msra.mxu0 %v1326
    %1364 = vmatprep.subr.bf16.mxu0 0
    %1365 = vmatpush2.bf16.msra.mxu0 %v1325
    %1366 = vmatprep.subr.bf16.mxu0 0
    %1367 = vmatpush2.bf16.msra.mxu0 %v1324
    %1368 = vmatprep.subr.bf16.mxu0 0
    %1369 = vmatpush2.bf16.msra.mxu0 %v1323
    %1370 = vmatprep.subr.bf16.mxu0 0
    %1371 = vmatpush2.bf16.msra.mxu0 %v1322
    %1372 = vmatprep.subr.bf16.mxu0 0
    %1373 = vmatpush2.bf16.msra.mxu0 %v1321
    %1374 = vmatprep.subr.bf16.mxu0 0
    %1375 = vmatpush2.bf16.msra.mxu0 %v1320
    %1376 = vmatprep.mubr.bf16.mxu0 %v619
    %1377 = vmatmul.mubr.bf16.gmra.mxu0 %v618
    %v1378 = vpop.f32.mrf.mxu0
    %v1379 = vadd.f32 0.0, %v1378
    %v1380 = vpop.f32.mrf.mxu0
    %v1381 = vpop.f32.mrf.mxu0
    %v1382 = vadd.f32 0.0, %v1381
    %v1383 = vpop.f32.mrf.mxu0
    %1384 = vmatprep.mubr.bf16.mxu0 %v621
    %1385 = vmatmul.mubr.bf16.gmra.mxu0 %v620
    %v1386 = vpop.f32.mrf.mxu0
    %v1387 = vadd.f32 0.0, %v1386
    %v1388 = vpop.f32.mrf.mxu0
    %v1389 = vpop.f32.mrf.mxu0
    %v1390 = vadd.f32 0.0, %v1389
    %v1391 = vpop.f32.mrf.mxu0
    %1392 = vdwg.mxu0
    %v1393 = vpack.c.bf16 %v1382, %v1379
    %v1394 = vpack.c.bf16 %v1390, %v1387
    %v1397 = vunpack.c.l.b16 %v1393
    %v1398 = vunpack.c.h.b16 %v1393
    %v1399 = vunpack.c.l.b16 %v1394
    %v1400 = vunpack.c.h.b16 %v1394
    %v1401 = vpack.c.b16 %v1397, %v1397
    %v1402 = vpack.c.b16 %v1398, %v1398
    %v1403 = vpack.c.b16 %v1399, %v1399
    %v1404 = vpack.c.b16 %v1400, %v1400
    %1409 = vst [vmem:[#allocation2 + $0x30] sm:$0xf] %v1401
    %1410 = vst [vmem:[#allocation2 + $0x34] sm:$0xf] %v1402
    %1411 = vst [vmem:[#allocation2 + $0x38] sm:$0xf] %v1403
    %1412 = vst [vmem:[#allocation2 + $0x3c] sm:$0xf] %v1404
    %s1413 = scalar_lea.vmem [#allocation13], 512
    %v1414 = vld [vmem:[%s1413] sm:$0xf]
    %v1415 = vld [vmem:[%s1413 + $0x4] sm:$0xf]
    %v1416 = vld [vmem:[%s1413 + $0x8] sm:$0xf]
    %v1417 = vld [vmem:[%s1413 + $0xc] sm:$0xf]
    %v1418 = vld [vmem:[%s1413 + $0x10] sm:$0xf]
    %v1419 = vld [vmem:[%s1413 + $0x14] sm:$0xf]
    %v1420 = vld [vmem:[%s1413 + $0x18] sm:$0xf]
    %v1421 = vld [vmem:[%s1413 + $0x1c] sm:$0xf]
    %v1422 = vld [vmem:[%s1413 + $0x20] sm:$0xf]
    %v1423 = vld [vmem:[%s1413 + $0x24] sm:$0xf]
    %v1424 = vld [vmem:[%s1413 + $0x28] sm:$0xf]
    %v1425 = vld [vmem:[%s1413 + $0x2c] sm:$0xf]
    %v1426 = vld [vmem:[%s1413 + $0x30] sm:$0xf]
    %v1427 = vld [vmem:[%s1413 + $0x34] sm:$0xf]
    %v1428 = vld [vmem:[%s1413 + $0x38] sm:$0xf]
    %v1429 = vld [vmem:[%s1413 + $0x3c] sm:$0xf]
    %v1430 = vld [vmem:[%s1413 + $0x40] sm:$0xf]
    %v1431 = vld [vmem:[%s1413 + $0x44] sm:$0xf]
    %v1432 = vld [vmem:[%s1413 + $0x48] sm:$0xf]
    %v1433 = vld [vmem:[%s1413 + $0x4c] sm:$0xf]
    %v1434 = vld [vmem:[%s1413 + $0x50] sm:$0xf]
    %v1435 = vld [vmem:[%s1413 + $0x54] sm:$0xf]
    %v1436 = vld [vmem:[%s1413 + $0x58] sm:$0xf]
    %v1437 = vld [vmem:[%s1413 + $0x5c] sm:$0xf]
    %v1438 = vld [vmem:[%s1413 + $0x60] sm:$0xf]
    %v1439 = vld [vmem:[%s1413 + $0x64] sm:$0xf]
    %v1440 = vld [vmem:[%s1413 + $0x68] sm:$0xf]
    %v1441 = vld [vmem:[%s1413 + $0x6c] sm:$0xf]
    %v1442 = vld [vmem:[%s1413 + $0x70] sm:$0xf]
    %v1443 = vld [vmem:[%s1413 + $0x74] sm:$0xf]
    %v1444 = vld [vmem:[%s1413 + $0x78] sm:$0xf]
    %v1445 = vld [vmem:[%s1413 + $0x7c] sm:$0xf]
    %v1478 = vunpack.c.l.b16 %v1414
    %v1479 = vunpack.c.l.b16 %v1415
    %v1480 = vunpack.c.l.b16 %v1416
    %v1481 = vunpack.c.l.b16 %v1417
    %v1482 = vunpack.c.l.b16 %v1418
    %v1483 = vunpack.c.l.b16 %v1419
    %v1484 = vunpack.c.l.b16 %v1420
    %v1485 = vunpack.c.l.b16 %v1421
    %v1486 = vunpack.c.l.b16 %v1422
    %v1487 = vunpack.c.l.b16 %v1423
    %v1488 = vunpack.c.l.b16 %v1424
    %v1489 = vunpack.c.l.b16 %v1425
    %v1490 = vunpack.c.l.b16 %v1426
    %v1491 = vunpack.c.l.b16 %v1427
    %v1492 = vunpack.c.l.b16 %v1428
    %v1493 = vunpack.c.l.b16 %v1429
    %v1494 = vunpack.c.l.b16 %v1430
    %v1495 = vunpack.c.l.b16 %v1431
    %v1496 = vunpack.c.l.b16 %v1432
    %v1497 = vunpack.c.l.b16 %v1433
    %v1498 = vunpack.c.l.b16 %v1434
    %v1499 = vunpack.c.l.b16 %v1435
    %v1500 = vunpack.c.l.b16 %v1436
    %v1501 = vunpack.c.l.b16 %v1437
    %v1502 = vunpack.c.l.b16 %v1438
    %v1503 = vunpack.c.l.b16 %v1439
    %v1504 = vunpack.c.l.b16 %v1440
    %v1505 = vunpack.c.l.b16 %v1441
    %v1506 = vunpack.c.l.b16 %v1442
    %v1507 = vunpack.c.l.b16 %v1443
    %v1508 = vunpack.c.l.b16 %v1444
    %v1509 = vunpack.c.l.b16 %v1445
    %v1510 = vpack.c.b16 %v1479, %v1478
    %v1511 = vpack.c.b16 %v1481, %v1480
    %v1512 = vpack.c.b16 %v1483, %v1482
    %v1513 = vpack.c.b16 %v1485, %v1484
    %v1514 = vpack.c.b16 %v1487, %v1486
    %v1515 = vpack.c.b16 %v1489, %v1488
    %v1516 = vpack.c.b16 %v1491, %v1490
    %v1517 = vpack.c.b16 %v1493, %v1492
    %v1518 = vpack.c.b16 %v1495, %v1494
    %v1519 = vpack.c.b16 %v1497, %v1496
    %v1520 = vpack.c.b16 %v1499, %v1498
    %v1521 = vpack.c.b16 %v1501, %v1500
    %v1522 = vpack.c.b16 %v1503, %v1502
    %v1523 = vpack.c.b16 %v1505, %v1504
    %v1524 = vpack.c.b16 %v1507, %v1506
    %v1525 = vpack.c.b16 %v1509, %v1508
    %1542 = vmatprep.subr.bf16.mxu0 0
    %1543 = vmatpush1.bf16.msra.mxu0 %v1517
    %1544 = vmatprep.subr.bf16.mxu0 0
    %1545 = vmatpush1.bf16.msra.mxu0 %v1516
    %1546 = vmatprep.subr.bf16.mxu0 0
    %1547 = vmatpush1.bf16.msra.mxu0 %v1515
    %1548 = vmatprep.subr.bf16.mxu0 0
    %1549 = vmatpush1.bf16.msra.mxu0 %v1514
    %1550 = vmatprep.subr.bf16.mxu0 0
    %1551 = vmatpush1.bf16.msra.mxu0 %v1513
    %1552 = vmatprep.subr.bf16.mxu0 0
    %1553 = vmatpush1.bf16.msra.mxu0 %v1512
    %1554 = vmatprep.subr.bf16.mxu0 0
    %1555 = vmatpush1.bf16.msra.mxu0 %v1511
    %1556 = vmatprep.subr.bf16.mxu0 0
    %1557 = vmatpush1.bf16.msra.mxu0 %v1510
    %1558 = vmatprep.subr.bf16.mxu0 0
    %1559 = vmatpush2.bf16.msra.mxu0 %v1525
    %1560 = vmatprep.subr.bf16.mxu0 0
    %1561 = vmatpush2.bf16.msra.mxu0 %v1524
    %1562 = vmatprep.subr.bf16.mxu0 0
    %1563 = vmatpush2.bf16.msra.mxu0 %v1523
    %1564 = vmatprep.subr.bf16.mxu0 0
    %1565 = vmatpush2.bf16.msra.mxu0 %v1522
    %1566 = vmatprep.subr.bf16.mxu0 0
    %1567 = vmatpush2.bf16.msra.mxu0 %v1521
    %1568 = vmatprep.subr.bf16.mxu0 0
    %1569 = vmatpush2.bf16.msra.mxu0 %v1520
    %1570 = vmatprep.subr.bf16.mxu0 0
    %1571 = vmatpush2.bf16.msra.mxu0 %v1519
    %1572 = vmatprep.subr.bf16.mxu0 0
    %1573 = vmatpush2.bf16.msra.mxu0 %v1518
    %1574 = vmatprep.mubr.bf16.mxu0 %v619
    %1575 = vmatmul.mubr.bf16.gmra.mxu0 %v618
    %v1576 = vpop.f32.mrf.mxu0
    %v1577 = vadd.f32 0.0, %v1576
    %v1578 = vpop.f32.mrf.mxu0
    %v1579 = vpop.f32.mrf.mxu0
    %v1580 = vadd.f32 0.0, %v1579
    %v1581 = vpop.f32.mrf.mxu0
    %1582 = vmatprep.mubr.bf16.mxu0 %v621
    %1583 = vmatmul.mubr.bf16.gmra.mxu0 %v620
    %v1584 = vpop.f32.mrf.mxu0
    %v1585 = vadd.f32 0.0, %v1584
    %v1586 = vpop.f32.mrf.mxu0
    %v1587 = vpop.f32.mrf.mxu0
    %v1588 = vadd.f32 0.0, %v1587
    %v1589 = vpop.f32.mrf.mxu0
    %1590 = vdwg.mxu0
    %v1591 = vpack.c.bf16 %v1580, %v1577
    %v1592 = vpack.c.bf16 %v1588, %v1585
    %v1595 = vunpack.c.l.b16 %v1591
    %v1596 = vunpack.c.h.b16 %v1591
    %v1597 = vunpack.c.l.b16 %v1592
    %v1598 = vunpack.c.h.b16 %v1592
    %v1599 = vpack.c.b16 %v1595, %v1595
    %v1600 = vpack.c.b16 %v1596, %v1596
    %v1601 = vpack.c.b16 %v1597, %v1597
    %v1602 = vpack.c.b16 %v1598, %v1598
    %1607 = vst [vmem:[#allocation2 + $0x40] sm:$0xf] %v1599
    %1608 = vst [vmem:[#allocation2 + $0x44] sm:$0xf] %v1600
    %1609 = vst [vmem:[#allocation2 + $0x48] sm:$0xf] %v1601
    %1610 = vst [vmem:[#allocation2 + $0x4c] sm:$0xf] %v1602
    %s1611 = scalar_lea.vmem [#allocation13], 640
    %v1612 = vld [vmem:[%s1611] sm:$0xf]
    %v1613 = vld [vmem:[%s1611 + $0x4] sm:$0xf]
    %v1614 = vld [vmem:[%s1611 + $0x8] sm:$0xf]
    %v1615 = vld [vmem:[%s1611 + $0xc] sm:$0xf]
    %v1616 = vld [vmem:[%s1611 + $0x10] sm:$0xf]
    %v1617 = vld [vmem:[%s1611 + $0x14] sm:$0xf]
    %v1618 = vld [vmem:[%s1611 + $0x18] sm:$0xf]
    %v1619 = vld [vmem:[%s1611 + $0x1c] sm:$0xf]
    %v1620 = vld [vmem:[%s1611 + $0x20] sm:$0xf]
    %v1621 = vld [vmem:[%s1611 + $0x24] sm:$0xf]
    %v1622 = vld [vmem:[%s1611 + $0x28] sm:$0xf]
    %v1623 = vld [vmem:[%s1611 + $0x2c] sm:$0xf]
    %v1624 = vld [vmem:[%s1611 + $0x30] sm:$0xf]
    %v1625 = vld [vmem:[%s1611 + $0x34] sm:$0xf]
    %v1626 = vld [vmem:[%s1611 + $0x38] sm:$0xf]
    %v1627 = vld [vmem:[%s1611 + $0x3c] sm:$0xf]
    %v1628 = vld [vmem:[%s1611 + $0x40] sm:$0xf]
    %v1629 = vld [vmem:[%s1611 + $0x44] sm:$0xf]
    %v1630 = vld [vmem:[%s1611 + $0x48] sm:$0xf]
    %v1631 = vld [vmem:[%s1611 + $0x4c] sm:$0xf]
    %v1632 = vld [vmem:[%s1611 + $0x50] sm:$0xf]
    %v1633 = vld [vmem:[%s1611 + $0x54] sm:$0xf]
    %v1634 = vld [vmem:[%s1611 + $0x58] sm:$0xf]
    %v1635 = vld [vmem:[%s1611 + $0x5c] sm:$0xf]
    %v1636 = vld [vmem:[%s1611 + $0x60] sm:$0xf]
    %v1637 = vld [vmem:[%s1611 + $0x64] sm:$0xf]
    %v1638 = vld [vmem:[%s1611 + $0x68] sm:$0xf]
    %v1639 = vld [vmem:[%s1611 + $0x6c] sm:$0xf]
    %v1640 = vld [vmem:[%s1611 + $0x70] sm:$0xf]
    %v1641 = vld [vmem:[%s1611 + $0x74] sm:$0xf]
    %v1642 = vld [vmem:[%s1611 + $0x78] sm:$0xf]
    %v1643 = vld [vmem:[%s1611 + $0x7c] sm:$0xf]
    %v1676 = vunpack.c.l.b16 %v1612
    %v1677 = vunpack.c.l.b16 %v1613
    %v1678 = vunpack.c.l.b16 %v1614
    %v1679 = vunpack.c.l.b16 %v1615
    %v1680 = vunpack.c.l.b16 %v1616
    %v1681 = vunpack.c.l.b16 %v1617
    %v1682 = vunpack.c.l.b16 %v1618
    %v1683 = vunpack.c.l.b16 %v1619
    %v1684 = vunpack.c.l.b16 %v1620
    %v1685 = vunpack.c.l.b16 %v1621
    %v1686 = vunpack.c.l.b16 %v1622
    %v1687 = vunpack.c.l.b16 %v1623
    %v1688 = vunpack.c.l.b16 %v1624
    %v1689 = vunpack.c.l.b16 %v1625
    %v1690 = vunpack.c.l.b16 %v1626
    %v1691 = vunpack.c.l.b16 %v1627
    %v1692 = vunpack.c.l.b16 %v1628
    %v1693 = vunpack.c.l.b16 %v1629
    %v1694 = vunpack.c.l.b16 %v1630
    %v1695 = vunpack.c.l.b16 %v1631
    %v1696 = vunpack.c.l.b16 %v1632
    %v1697 = vunpack.c.l.b16 %v1633
    %v1698 = vunpack.c.l.b16 %v1634
    %v1699 = vunpack.c.l.b16 %v1635
    %v1700 = vunpack.c.l.b16 %v1636
    %v1701 = vunpack.c.l.b16 %v1637
    %v1702 = vunpack.c.l.b16 %v1638
    %v1703 = vunpack.c.l.b16 %v1639
    %v1704 = vunpack.c.l.b16 %v1640
    %v1705 = vunpack.c.l.b16 %v1641
    %v1706 = vunpack.c.l.b16 %v1642
    %v1707 = vunpack.c.l.b16 %v1643
    %v1708 = vpack.c.b16 %v1677, %v1676
    %v1709 = vpack.c.b16 %v1679, %v1678
    %v1710 = vpack.c.b16 %v1681, %v1680
    %v1711 = vpack.c.b16 %v1683, %v1682
    %v1712 = vpack.c.b16 %v1685, %v1684
    %v1713 = vpack.c.b16 %v1687, %v1686
    %v1714 = vpack.c.b16 %v1689, %v1688
    %v1715 = vpack.c.b16 %v1691, %v1690
    %v1716 = vpack.c.b16 %v1693, %v1692
    %v1717 = vpack.c.b16 %v1695, %v1694
    %v1718 = vpack.c.b16 %v1697, %v1696
    %v1719 = vpack.c.b16 %v1699, %v1698
    %v1720 = vpack.c.b16 %v1701, %v1700
    %v1721 = vpack.c.b16 %v1703, %v1702
    %v1722 = vpack.c.b16 %v1705, %v1704
    %v1723 = vpack.c.b16 %v1707, %v1706
    %1740 = vmatprep.subr.bf16.mxu0 0
    %1741 = vmatpush1.bf16.msra.mxu0 %v1715
    %1742 = vmatprep.subr.bf16.mxu0 0
    %1743 = vmatpush1.bf16.msra.mxu0 %v1714
    %1744 = vmatprep.subr.bf16.mxu0 0
    %1745 = vmatpush1.bf16.msra.mxu0 %v1713
    %1746 = vmatprep.subr.bf16.mxu0 0
    %1747 = vmatpush1.bf16.msra.mxu0 %v1712
    %1748 = vmatprep.subr.bf16.mxu0 0
    %1749 = vmatpush1.bf16.msra.mxu0 %v1711
    %1750 = vmatprep.subr.bf16.mxu0 0
    %1751 = vmatpush1.bf16.msra.mxu0 %v1710
    %1752 = vmatprep.subr.bf16.mxu0 0
    %1753 = vmatpush1.bf16.msra.mxu0 %v1709
    %1754 = vmatprep.subr.bf16.mxu0 0
    %1755 = vmatpush1.bf16.msra.mxu0 %v1708
    %1756 = vmatprep.subr.bf16.mxu0 0
    %1757 = vmatpush2.bf16.msra.mxu0 %v1723
    %1758 = vmatprep.subr.bf16.mxu0 0
    %1759 = vmatpush2.bf16.msra.mxu0 %v1722
    %1760 = vmatprep.subr.bf16.mxu0 0
    %1761 = vmatpush2.bf16.msra.mxu0 %v1721
    %1762 = vmatprep.subr.bf16.mxu0 0
    %1763 = vmatpush2.bf16.msra.mxu0 %v1720
    %1764 = vmatprep.subr.bf16.mxu0 0
    %1765 = vmatpush2.bf16.msra.mxu0 %v1719
    %1766 = vmatprep.subr.bf16.mxu0 0
    %1767 = vmatpush2.bf16.msra.mxu0 %v1718
    %1768 = vmatprep.subr.bf16.mxu0 0
    %1769 = vmatpush2.bf16.msra.mxu0 %v1717
    %1770 = vmatprep.subr.bf16.mxu0 0
    %1771 = vmatpush2.bf16.msra.mxu0 %v1716
    %1772 = vmatprep.mubr.bf16.mxu0 %v619
    %1773 = vmatmul.mubr.bf16.gmra.mxu0 %v618
    %v1774 = vpop.f32.mrf.mxu0
    %v1775 = vadd.f32 0.0, %v1774
    %v1776 = vpop.f32.mrf.mxu0
    %v1777 = vpop.f32.mrf.mxu0
    %v1778 = vadd.f32 0.0, %v1777
    %v1779 = vpop.f32.mrf.mxu0
    %1780 = vmatprep.mubr.bf16.mxu0 %v621
    %1781 = vmatmul.mubr.bf16.gmra.mxu0 %v620
    %v1782 = vpop.f32.mrf.mxu0
    %v1783 = vadd.f32 0.0, %v1782
    %v1784 = vpop.f32.mrf.mxu0
    %v1785 = vpop.f32.mrf.mxu0
    %v1786 = vadd.f32 0.0, %v1785
    %v1787 = vpop.f32.mrf.mxu0
    %1788 = vdwg.mxu0
    %v1789 = vpack.c.bf16 %v1778, %v1775
    %v1790 = vpack.c.bf16 %v1786, %v1783
    %v1793 = vunpack.c.l.b16 %v1789
    %v1794 = vunpack.c.h.b16 %v1789
    %v1795 = vunpack.c.l.b16 %v1790
    %v1796 = vunpack.c.h.b16 %v1790
    %v1797 = vpack.c.b16 %v1793, %v1793
    %v1798 = vpack.c.b16 %v1794, %v1794
    %v1799 = vpack.c.b16 %v1795, %v1795
    %v1800 = vpack.c.b16 %v1796, %v1796
    %1805 = vst [vmem:[#allocation2 + $0x50] sm:$0xf] %v1797
    %1806 = vst [vmem:[#allocation2 + $0x54] sm:$0xf] %v1798
    %1807 = vst [vmem:[#allocation2 + $0x58] sm:$0xf] %v1799
    %1808 = vst [vmem:[#allocation2 + $0x5c] sm:$0xf] %v1800
    %s1809 = scalar_lea.vmem [#allocation13], 768
    %v1810 = vld [vmem:[%s1809] sm:$0xf]
    %v1811 = vld [vmem:[%s1809 + $0x4] sm:$0xf]
    %v1812 = vld [vmem:[%s1809 + $0x8] sm:$0xf]
    %v1813 = vld [vmem:[%s1809 + $0xc] sm:$0xf]
    %v1814 = vld [vmem:[%s1809 + $0x10] sm:$0xf]
    %v1815 = vld [vmem:[%s1809 + $0x14] sm:$0xf]
    %v1816 = vld [vmem:[%s1809 + $0x18] sm:$0xf]
    %v1817 = vld [vmem:[%s1809 + $0x1c] sm:$0xf]
    %v1818 = vld [vmem:[%s1809 + $0x20] sm:$0xf]
    %v1819 = vld [vmem:[%s1809 + $0x24] sm:$0xf]
    %v1820 = vld [vmem:[%s1809 + $0x28] sm:$0xf]
    %v1821 = vld [vmem:[%s1809 + $0x2c] sm:$0xf]
    %v1822 = vld [vmem:[%s1809 + $0x30] sm:$0xf]
    %v1823 = vld [vmem:[%s1809 + $0x34] sm:$0xf]
    %v1824 = vld [vmem:[%s1809 + $0x38] sm:$0xf]
    %v1825 = vld [vmem:[%s1809 + $0x3c] sm:$0xf]
    %v1826 = vld [vmem:[%s1809 + $0x40] sm:$0xf]
    %v1827 = vld [vmem:[%s1809 + $0x44] sm:$0xf]
    %v1828 = vld [vmem:[%s1809 + $0x48] sm:$0xf]
    %v1829 = vld [vmem:[%s1809 + $0x4c] sm:$0xf]
    %v1830 = vld [vmem:[%s1809 + $0x50] sm:$0xf]
    %v1831 = vld [vmem:[%s1809 + $0x54] sm:$0xf]
    %v1832 = vld [vmem:[%s1809 + $0x58] sm:$0xf]
    %v1833 = vld [vmem:[%s1809 + $0x5c] sm:$0xf]
    %v1834 = vld [vmem:[%s1809 + $0x60] sm:$0xf]
    %v1835 = vld [vmem:[%s1809 + $0x64] sm:$0xf]
    %v1836 = vld [vmem:[%s1809 + $0x68] sm:$0xf]
    %v1837 = vld [vmem:[%s1809 + $0x6c] sm:$0xf]
    %v1838 = vld [vmem:[%s1809 + $0x70] sm:$0xf]
    %v1839 = vld [vmem:[%s1809 + $0x74] sm:$0xf]
    %v1840 = vld [vmem:[%s1809 + $0x78] sm:$0xf]
    %v1841 = vld [vmem:[%s1809 + $0x7c] sm:$0xf]
    %v1874 = vunpack.c.l.b16 %v1810
    %v1875 = vunpack.c.l.b16 %v1811
    %v1876 = vunpack.c.l.b16 %v1812
    %v1877 = vunpack.c.l.b16 %v1813
    %v1878 = vunpack.c.l.b16 %v1814
    %v1879 = vunpack.c.l.b16 %v1815
    %v1880 = vunpack.c.l.b16 %v1816
    %v1881 = vunpack.c.l.b16 %v1817
    %v1882 = vunpack.c.l.b16 %v1818
    %v1883 = vunpack.c.l.b16 %v1819
    %v1884 = vunpack.c.l.b16 %v1820
    %v1885 = vunpack.c.l.b16 %v1821
    %v1886 = vunpack.c.l.b16 %v1822
    %v1887 = vunpack.c.l.b16 %v1823
    %v1888 = vunpack.c.l.b16 %v1824
    %v1889 = vunpack.c.l.b16 %v1825
    %v1890 = vunpack.c.l.b16 %v1826
    %v1891 = vunpack.c.l.b16 %v1827
    %v1892 = vunpack.c.l.b16 %v1828
    %v1893 = vunpack.c.l.b16 %v1829
    %v1894 = vunpack.c.l.b16 %v1830
    %v1895 = vunpack.c.l.b16 %v1831
    %v1896 = vunpack.c.l.b16 %v1832
    %v1897 = vunpack.c.l.b16 %v1833
    %v1898 = vunpack.c.l.b16 %v1834
    %v1899 = vunpack.c.l.b16 %v1835
    %v1900 = vunpack.c.l.b16 %v1836
    %v1901 = vunpack.c.l.b16 %v1837
    %v1902 = vunpack.c.l.b16 %v1838
    %v1903 = vunpack.c.l.b16 %v1839
    %v1904 = vunpack.c.l.b16 %v1840
    %v1905 = vunpack.c.l.b16 %v1841
    %v1906 = vpack.c.b16 %v1875, %v1874
    %v1907 = vpack.c.b16 %v1877, %v1876
    %v1908 = vpack.c.b16 %v1879, %v1878
    %v1909 = vpack.c.b16 %v1881, %v1880
    %v1910 = vpack.c.b16 %v1883, %v1882
    %v1911 = vpack.c.b16 %v1885, %v1884
    %v1912 = vpack.c.b16 %v1887, %v1886
    %v1913 = vpack.c.b16 %v1889, %v1888
    %v1914 = vpack.c.b16 %v1891, %v1890
    %v1915 = vpack.c.b16 %v1893, %v1892
    %v1916 = vpack.c.b16 %v1895, %v1894
    %v1917 = vpack.c.b16 %v1897, %v1896
    %v1918 = vpack.c.b16 %v1899, %v1898
    %v1919 = vpack.c.b16 %v1901, %v1900
    %v1920 = vpack.c.b16 %v1903, %v1902
    %v1921 = vpack.c.b16 %v1905, %v1904
    %1938 = vmatprep.subr.bf16.mxu0 0
    %1939 = vmatpush1.bf16.msra.mxu0 %v1913
    %1940 = vmatprep.subr.bf16.mxu0 0
    %1941 = vmatpush1.bf16.msra.mxu0 %v1912
    %1942 = vmatprep.subr.bf16.mxu0 0
    %1943 = vmatpush1.bf16.msra.mxu0 %v1911
    %1944 = vmatprep.subr.bf16.mxu0 0
    %1945 = vmatpush1.bf16.msra.mxu0 %v1910
    %1946 = vmatprep.subr.bf16.mxu0 0
    %1947 = vmatpush1.bf16.msra.mxu0 %v1909
    %1948 = vmatprep.subr.bf16.mxu0 0
    %1949 = vmatpush1.bf16.msra.mxu0 %v1908
    %1950 = vmatprep.subr.bf16.mxu0 0
    %1951 = vmatpush1.bf16.msra.mxu0 %v1907
    %1952 = vmatprep.subr.bf16.mxu0 0
    %1953 = vmatpush1.bf16.msra.mxu0 %v1906
    %1954 = vmatprep.subr.bf16.mxu0 0
    %1955 = vmatpush2.bf16.msra.mxu0 %v1921
    %1956 = vmatprep.subr.bf16.mxu0 0
    %1957 = vmatpush2.bf16.msra.mxu0 %v1920
    %1958 = vmatprep.subr.bf16.mxu0 0
    %1959 = vmatpush2.bf16.msra.mxu0 %v1919
    %1960 = vmatprep.subr.bf16.mxu0 0
    %1961 = vmatpush2.bf16.msra.mxu0 %v1918
    %1962 = vmatprep.subr.bf16.mxu0 0
    %1963 = vmatpush2.bf16.msra.mxu0 %v1917
    %1964 = vmatprep.subr.bf16.mxu0 0
    %1965 = vmatpush2.bf16.msra.mxu0 %v1916
    %1966 = vmatprep.subr.bf16.mxu0 0
    %1967 = vmatpush2.bf16.msra.mxu0 %v1915
    %1968 = vmatprep.subr.bf16.mxu0 0
    %1969 = vmatpush2.bf16.msra.mxu0 %v1914
    %1970 = vmatprep.mubr.bf16.mxu0 %v619
    %1971 = vmatmul.mubr.bf16.gmra.mxu0 %v618
    %v1972 = vpop.f32.mrf.mxu0
    %v1973 = vadd.f32 0.0, %v1972
    %v1974 = vpop.f32.mrf.mxu0
    %v1975 = vpop.f32.mrf.mxu0
    %v1976 = vadd.f32 0.0, %v1975
    %v1977 = vpop.f32.mrf.mxu0
    %1978 = vmatprep.mubr.bf16.mxu0 %v621
    %1979 = vmatmul.mubr.bf16.gmra.mxu0 %v620
    %v1980 = vpop.f32.mrf.mxu0
    %v1981 = vadd.f32 0.0, %v1980
    %v1982 = vpop.f32.mrf.mxu0
    %v1983 = vpop.f32.mrf.mxu0
    %v1984 = vadd.f32 0.0, %v1983
    %v1985 = vpop.f32.mrf.mxu0
    %1986 = vdwg.mxu0
    %v1987 = vpack.c.bf16 %v1976, %v1973
    %v1988 = vpack.c.bf16 %v1984, %v1981
    %v1991 = vunpack.c.l.b16 %v1987
    %v1992 = vunpack.c.h.b16 %v1987
    %v1993 = vunpack.c.l.b16 %v1988
    %v1994 = vunpack.c.h.b16 %v1988
    %v1995 = vpack.c.b16 %v1991, %v1991
    %v1996 = vpack.c.b16 %v1992, %v1992
    %v1997 = vpack.c.b16 %v1993, %v1993
    %v1998 = vpack.c.b16 %v1994, %v1994
    %2003 = vst [vmem:[#allocation2 + $0x60] sm:$0xf] %v1995
    %2004 = vst [vmem:[#allocation2 + $0x64] sm:$0xf] %v1996
    %2005 = vst [vmem:[#allocation2 + $0x68] sm:$0xf] %v1997
    %2006 = vst [vmem:[#allocation2 + $0x6c] sm:$0xf] %v1998
    %s2007 = scalar_lea.vmem [#allocation13], 896
    %v2008 = vld [vmem:[%s2007] sm:$0xf]
    %v2009 = vld [vmem:[%s2007 + $0x4] sm:$0xf]
    %v2010 = vld [vmem:[%s2007 + $0x8] sm:$0xf]
    %v2011 = vld [vmem:[%s2007 + $0xc] sm:$0xf]
    %v2012 = vld [vmem:[%s2007 + $0x10] sm:$0xf]
    %v2013 = vld [vmem:[%s2007 + $0x14] sm:$0xf]
    %v2014 = vld [vmem:[%s2007 + $0x18] sm:$0xf]
    %v2015 = vld [vmem:[%s2007 + $0x1c] sm:$0xf]
    %v2016 = vld [vmem:[%s2007 + $0x20] sm:$0xf]
    %v2017 = vld [vmem:[%s2007 + $0x24] sm:$0xf]
    %v2018 = vld [vmem:[%s2007 + $0x28] sm:$0xf]
    %v2019 = vld [vmem:[%s2007 + $0x2c] sm:$0xf]
    %v2020 = vld [vmem:[%s2007 + $0x30] sm:$0xf]
    %v2021 = vld [vmem:[%s2007 + $0x34] sm:$0xf]
    %v2022 = vld [vmem:[%s2007 + $0x38] sm:$0xf]
    %v2023 = vld [vmem:[%s2007 + $0x3c] sm:$0xf]
    %v2024 = vld [vmem:[%s2007 + $0x40] sm:$0xf]
    %v2025 = vld [vmem:[%s2007 + $0x44] sm:$0xf]
    %v2026 = vld [vmem:[%s2007 + $0x48] sm:$0xf]
    %v2027 = vld [vmem:[%s2007 + $0x4c] sm:$0xf]
    %v2028 = vld [vmem:[%s2007 + $0x50] sm:$0xf]
    %v2029 = vld [vmem:[%s2007 + $0x54] sm:$0xf]
    %v2030 = vld [vmem:[%s2007 + $0x58] sm:$0xf]
    %v2031 = vld [vmem:[%s2007 + $0x5c] sm:$0xf]
    %v2032 = vld [vmem:[%s2007 + $0x60] sm:$0xf]
    %v2033 = vld [vmem:[%s2007 + $0x64] sm:$0xf]
    %v2034 = vld [vmem:[%s2007 + $0x68] sm:$0xf]
    %v2035 = vld [vmem:[%s2007 + $0x6c] sm:$0xf]
    %v2036 = vld [vmem:[%s2007 + $0x70] sm:$0xf]
    %v2037 = vld [vmem:[%s2007 + $0x74] sm:$0xf]
    %v2038 = vld [vmem:[%s2007 + $0x78] sm:$0xf]
    %v2039 = vld [vmem:[%s2007 + $0x7c] sm:$0xf]
    %v2072 = vunpack.c.l.b16 %v2008
    %v2073 = vunpack.c.l.b16 %v2009
    %v2074 = vunpack.c.l.b16 %v2010
    %v2075 = vunpack.c.l.b16 %v2011
    %v2076 = vunpack.c.l.b16 %v2012
    %v2077 = vunpack.c.l.b16 %v2013
    %v2078 = vunpack.c.l.b16 %v2014
    %v2079 = vunpack.c.l.b16 %v2015
    %v2080 = vunpack.c.l.b16 %v2016
    %v2081 = vunpack.c.l.b16 %v2017
    %v2082 = vunpack.c.l.b16 %v2018
    %v2083 = vunpack.c.l.b16 %v2019
    %v2084 = vunpack.c.l.b16 %v2020
    %v2085 = vunpack.c.l.b16 %v2021
    %v2086 = vunpack.c.l.b16 %v2022
    %v2087 = vunpack.c.l.b16 %v2023
    %v2088 = vunpack.c.l.b16 %v2024
    %v2089 = vunpack.c.l.b16 %v2025
    %v2090 = vunpack.c.l.b16 %v2026
    %v2091 = vunpack.c.l.b16 %v2027
    %v2092 = vunpack.c.l.b16 %v2028
    %v2093 = vunpack.c.l.b16 %v2029
    %v2094 = vunpack.c.l.b16 %v2030
    %v2095 = vunpack.c.l.b16 %v2031
    %v2096 = vunpack.c.l.b16 %v2032
    %v2097 = vunpack.c.l.b16 %v2033
    %v2098 = vunpack.c.l.b16 %v2034
    %v2099 = vunpack.c.l.b16 %v2035
    %v2100 = vunpack.c.l.b16 %v2036
    %v2101 = vunpack.c.l.b16 %v2037
    %v2102 = vunpack.c.l.b16 %v2038
    %v2103 = vunpack.c.l.b16 %v2039
    %v2104 = vpack.c.b16 %v2073, %v2072
    %v2105 = vpack.c.b16 %v2075, %v2074
    %v2106 = vpack.c.b16 %v2077, %v2076
    %v2107 = vpack.c.b16 %v2079, %v2078
    %v2108 = vpack.c.b16 %v2081, %v2080
    %v2109 = vpack.c.b16 %v2083, %v2082
    %v2110 = vpack.c.b16 %v2085, %v2084
    %v2111 = vpack.c.b16 %v2087, %v2086
    %v2112 = vpack.c.b16 %v2089, %v2088
    %v2113 = vpack.c.b16 %v2091, %v2090
    %v2114 = vpack.c.b16 %v2093, %v2092
    %v2115 = vpack.c.b16 %v2095, %v2094
    %v2116 = vpack.c.b16 %v2097, %v2096
    %v2117 = vpack.c.b16 %v2099, %v2098
    %v2118 = vpack.c.b16 %v2101, %v2100
    %v2119 = vpack.c.b16 %v2103, %v2102
    %2136 = vmatprep.subr.bf16.mxu0 0
    %2137 = vmatpush1.bf16.msra.mxu0 %v2111
    %2138 = vmatprep.subr.bf16.mxu0 0
    %2139 = vmatpush1.bf16.msra.mxu0 %v2110
    %2140 = vmatprep.subr.bf16.mxu0 0
    %2141 = vmatpush1.bf16.msra.mxu0 %v2109
    %2142 = vmatprep.subr.bf16.mxu0 0
    %2143 = vmatpush1.bf16.msra.mxu0 %v2108
    %2144 = vmatprep.subr.bf16.mxu0 0
    %2145 = vmatpush1.bf16.msra.mxu0 %v2107
    %2146 = vmatprep.subr.bf16.mxu0 0
    %2147 = vmatpush1.bf16.msra.mxu0 %v2106
    %2148 = vmatprep.subr.bf16.mxu0 0
    %2149 = vmatpush1.bf16.msra.mxu0 %v2105
    %2150 = vmatprep.subr.bf16.mxu0 0
    %2151 = vmatpush1.bf16.msra.mxu0 %v2104
    %2152 = vmatprep.subr.bf16.mxu0 0
    %2153 = vmatpush2.bf16.msra.mxu0 %v2119
    %2154 = vmatprep.subr.bf16.mxu0 0
    %2155 = vmatpush2.bf16.msra.mxu0 %v2118
    %2156 = vmatprep.subr.bf16.mxu0 0
    %2157 = vmatpush2.bf16.msra.mxu0 %v2117
    %2158 = vmatprep.subr.bf16.mxu0 0
    %2159 = vmatpush2.bf16.msra.mxu0 %v2116
    %2160 = vmatprep.subr.bf16.mxu0 0
    %2161 = vmatpush2.bf16.msra.mxu0 %v2115
    %2162 = vmatprep.subr.bf16.mxu0 0
    %2163 = vmatpush2.bf16.msra.mxu0 %v2114
    %2164 = vmatprep.subr.bf16.mxu0 0
    %2165 = vmatpush2.bf16.msra.mxu0 %v2113
    %2166 = vmatprep.subr.bf16.mxu0 0
    %2167 = vmatpush2.bf16.msra.mxu0 %v2112
    %2168 = vmatprep.mubr.bf16.mxu0 %v619
    %2169 = vmatmul.mubr.bf16.gmra.mxu0 %v618
    %v2170 = vpop.f32.mrf.mxu0
    %v2171 = vadd.f32 0.0, %v2170
    %v2172 = vpop.f32.mrf.mxu0
    %v2173 = vpop.f32.mrf.mxu0
    %v2174 = vadd.f32 0.0, %v2173
    %v2175 = vpop.f32.mrf.mxu0
    %2176 = vmatprep.mubr.bf16.mxu0 %v621
    %2177 = vmatmul.mubr.bf16.gmra.mxu0 %v620
    %v2178 = vpop.f32.mrf.mxu0
    %v2179 = vadd.f32 0.0, %v2178
    %v2180 = vpop.f32.mrf.mxu0
    %v2181 = vpop.f32.mrf.mxu0
    %v2182 = vadd.f32 0.0, %v2181
    %v2183 = vpop.f32.mrf.mxu0
    %2184 = vdwg.mxu0
    %v2185 = vpack.c.bf16 %v2174, %v2171
    %v2186 = vpack.c.bf16 %v2182, %v2179
    %v2189 = vunpack.c.l.b16 %v2185
    %v2190 = vunpack.c.h.b16 %v2185
    %v2191 = vunpack.c.l.b16 %v2186
    %v2192 = vunpack.c.h.b16 %v2186
    %v2193 = vpack.c.b16 %v2189, %v2189
    %v2194 = vpack.c.b16 %v2190, %v2190
    %v2195 = vpack.c.b16 %v2191, %v2191
    %v2196 = vpack.c.b16 %v2192, %v2192
    %2201 = vst [vmem:[#allocation2 + $0x70] sm:$0xf] %v2193
    %2202 = vst [vmem:[#allocation2 + $0x74] sm:$0xf] %v2194
    %2203 = vst [vmem:[#allocation2 + $0x78] sm:$0xf] %v2195
    %2204 = vst [vmem:[#allocation2 + $0x7c] sm:$0xf] %v2196
    %s2205 = scalar_lea.vmem [#allocation13], 1024
    %v2206 = vld [vmem:[%s2205] sm:$0xf]
    %v2207 = vld [vmem:[%s2205 + $0x4] sm:$0xf]
    %v2208 = vld [vmem:[%s2205 + $0x8] sm:$0xf]
    %v2209 = vld [vmem:[%s2205 + $0xc] sm:$0xf]
    %v2210 = vld [vmem:[%s2205 + $0x10] sm:$0xf]
    %v2211 = vld [vmem:[%s2205 + $0x14] sm:$0xf]
    %v2212 = vld [vmem:[%s2205 + $0x18] sm:$0xf]
    %v2213 = vld [vmem:[%s2205 + $0x1c] sm:$0xf]
    %v2214 = vld [vmem:[%s2205 + $0x20] sm:$0xf]
    %v2215 = vld [vmem:[%s2205 + $0x24] sm:$0xf]
    %v2216 = vld [vmem:[%s2205 + $0x28] sm:$0xf]
    %v2217 = vld [vmem:[%s2205 + $0x2c] sm:$0xf]
    %v2218 = vld [vmem:[%s2205 + $0x30] sm:$0xf]
    %v2219 = vld [vmem:[%s2205 + $0x34] sm:$0xf]
    %v2220 = vld [vmem:[%s2205 + $0x38] sm:$0xf]
    %v2221 = vld [vmem:[%s2205 + $0x3c] sm:$0xf]
    %v2222 = vld [vmem:[%s2205 + $0x40] sm:$0xf]
    %v2223 = vld [vmem:[%s2205 + $0x44] sm:$0xf]
    %v2224 = vld [vmem:[%s2205 + $0x48] sm:$0xf]
    %v2225 = vld [vmem:[%s2205 + $0x4c] sm:$0xf]
    %v2226 = vld [vmem:[%s2205 + $0x50] sm:$0xf]
    %v2227 = vld [vmem:[%s2205 + $0x54] sm:$0xf]
    %v2228 = vld [vmem:[%s2205 + $0x58] sm:$0xf]
    %v2229 = vld [vmem:[%s2205 + $0x5c] sm:$0xf]
    %v2230 = vld [vmem:[%s2205 + $0x60] sm:$0xf]
    %v2231 = vld [vmem:[%s2205 + $0x64] sm:$0xf]
    %v2232 = vld [vmem:[%s2205 + $0x68] sm:$0xf]
    %v2233 = vld [vmem:[%s2205 + $0x6c] sm:$0xf]
    %v2234 = vld [vmem:[%s2205 + $0x70] sm:$0xf]
    %v2235 = vld [vmem:[%s2205 + $0x74] sm:$0xf]
    %v2236 = vld [vmem:[%s2205 + $0x78] sm:$0xf]
    %v2237 = vld [vmem:[%s2205 + $0x7c] sm:$0xf]
    %v2270 = vunpack.c.l.b16 %v2206
    %v2271 = vunpack.c.l.b16 %v2207
    %v2272 = vunpack.c.l.b16 %v2208
    %v2273 = vunpack.c.l.b16 %v2209
    %v2274 = vunpack.c.l.b16 %v2210
    %v2275 = vunpack.c.l.b16 %v2211
    %v2276 = vunpack.c.l.b16 %v2212
    %v2277 = vunpack.c.l.b16 %v2213
    %v2278 = vunpack.c.l.b16 %v2214
    %v2279 = vunpack.c.l.b16 %v2215
    %v2280 = vunpack.c.l.b16 %v2216
    %v2281 = vunpack.c.l.b16 %v2217
    %v2282 = vunpack.c.l.b16 %v2218
    %v2283 = vunpack.c.l.b16 %v2219
    %v2284 = vunpack.c.l.b16 %v2220
    %v2285 = vunpack.c.l.b16 %v2221
    %v2286 = vunpack.c.l.b16 %v2222
    %v2287 = vunpack.c.l.b16 %v2223
    %v2288 = vunpack.c.l.b16 %v2224
    %v2289 = vunpack.c.l.b16 %v2225
    %v2290 = vunpack.c.l.b16 %v2226
    %v2291 = vunpack.c.l.b16 %v2227
    %v2292 = vunpack.c.l.b16 %v2228
    %v2293 = vunpack.c.l.b16 %v2229
    %v2294 = vunpack.c.l.b16 %v2230
    %v2295 = vunpack.c.l.b16 %v2231
    %v2296 = vunpack.c.l.b16 %v2232
    %v2297 = vunpack.c.l.b16 %v2233
    %v2298 = vunpack.c.l.b16 %v2234
    %v2299 = vunpack.c.l.b16 %v2235
    %v2300 = vunpack.c.l.b16 %v2236
    %v2301 = vunpack.c.l.b16 %v2237
    %v2302 = vpack.c.b16 %v2271, %v2270
    %v2303 = vpack.c.b16 %v2273, %v2272
    %v2304 = vpack.c.b16 %v2275, %v2274
    %v2305 = vpack.c.b16 %v2277, %v2276
    %v2306 = vpack.c.b16 %v2279, %v2278
    %v2307 = vpack.c.b16 %v2281, %v2280
    %v2308 = vpack.c.b16 %v2283, %v2282
    %v2309 = vpack.c.b16 %v2285, %v2284
    %v2310 = vpack.c.b16 %v2287, %v2286
    %v2311 = vpack.c.b16 %v2289, %v2288
    %v2312 = vpack.c.b16 %v2291, %v2290
    %v2313 = vpack.c.b16 %v2293, %v2292
    %v2314 = vpack.c.b16 %v2295, %v2294
    %v2315 = vpack.c.b16 %v2297, %v2296
    %v2316 = vpack.c.b16 %v2299, %v2298
    %v2317 = vpack.c.b16 %v2301, %v2300
    %2334 = vmatprep.subr.bf16.mxu0 0
    %2335 = vmatpush1.bf16.msra.mxu0 %v2309
    %2336 = vmatprep.subr.bf16.mxu0 0
    %2337 = vmatpush1.bf16.msra.mxu0 %v2308
    %2338 = vmatprep.subr.bf16.mxu0 0
    %2339 = vmatpush1.bf16.msra.mxu0 %v2307
    %2340 = vmatprep.subr.bf16.mxu0 0
    %2341 = vmatpush1.bf16.msra.mxu0 %v2306
    %2342 = vmatprep.subr.bf16.mxu0 0
    %2343 = vmatpush1.bf16.msra.mxu0 %v2305
    %2344 = vmatprep.subr.bf16.mxu0 0
    %2345 = vmatpush1.bf16.msra.mxu0 %v2304
    %2346 = vmatprep.subr.bf16.mxu0 0
    %2347 = vmatpush1.bf16.msra.mxu0 %v2303
    %2348 = vmatprep.subr.bf16.mxu0 0
    %2349 = vmatpush1.bf16.msra.mxu0 %v2302
    %2350 = vmatprep.subr.bf16.mxu0 0
    %2351 = vmatpush2.bf16.msra.mxu0 %v2317
    %2352 = vmatprep.subr.bf16.mxu0 0
    %2353 = vmatpush2.bf16.msra.mxu0 %v2316
    %2354 = vmatprep.subr.bf16.mxu0 0
    %2355 = vmatpush2.bf16.msra.mxu0 %v2315
    %2356 = vmatprep.subr.bf16.mxu0 0
    %2357 = vmatpush2.bf16.msra.mxu0 %v2314
    %2358 = vmatprep.subr.bf16.mxu0 0
    %2359 = vmatpush2.bf16.msra.mxu0 %v2313
    %2360 = vmatprep.subr.bf16.mxu0 0
    %2361 = vmatpush2.bf16.msra.mxu0 %v2312
    %2362 = vmatprep.subr.bf16.mxu0 0
    %2363 = vmatpush2.bf16.msra.mxu0 %v2311
    %2364 = vmatprep.subr.bf16.mxu0 0
    %2365 = vmatpush2.bf16.msra.mxu0 %v2310
    %2366 = vmatprep.mubr.bf16.mxu0 %v619
    %2367 = vmatmul.mubr.bf16.gmra.mxu0 %v618
    %v2368 = vpop.f32.mrf.mxu0
    %v2369 = vadd.f32 0.0, %v2368
    %v2370 = vpop.f32.mrf.mxu0
    %v2371 = vpop.f32.mrf.mxu0
    %v2372 = vadd.f32 0.0, %v2371
    %v2373 = vpop.f32.mrf.mxu0
    %2374 = vmatprep.mubr.bf16.mxu0 %v621
    %2375 = vmatmul.mubr.bf16.gmra.mxu0 %v620
    %v2376 = vpop.f32.mrf.mxu0
    %v2377 = vadd.f32 0.0, %v2376
    %v2378 = vpop.f32.mrf.mxu0
    %v2379 = vpop.f32.mrf.mxu0
    %v2380 = vadd.f32 0.0, %v2379
    %v2381 = vpop.f32.mrf.mxu0
    %2382 = vdwg.mxu0
    %v2383 = vpack.c.bf16 %v2372, %v2369
    %v2384 = vpack.c.bf16 %v2380, %v2377
    %v2387 = vunpack.c.l.b16 %v2383
    %v2388 = vunpack.c.h.b16 %v2383
    %v2389 = vunpack.c.l.b16 %v2384
    %v2390 = vunpack.c.h.b16 %v2384
    %v2391 = vpack.c.b16 %v2387, %v2387
    %v2392 = vpack.c.b16 %v2388, %v2388
    %v2393 = vpack.c.b16 %v2389, %v2389
    %v2394 = vpack.c.b16 %v2390, %v2390
    %2399 = vst [vmem:[#allocation2 + $0x80] sm:$0xf] %v2391
    %2400 = vst [vmem:[#allocation2 + $0x84] sm:$0xf] %v2392
    %2401 = vst [vmem:[#allocation2 + $0x88] sm:$0xf] %v2393
    %2402 = vst [vmem:[#allocation2 + $0x8c] sm:$0xf] %v2394
    %v2403 = vld [vmem:[#allocation9] sm:$0xff]
    %v2404 = vld [vmem:[#allocation9 + $0x8] sm:$0xf]
    %v2405 = vld [vmem:[#allocation9 + $0xc] sm:$0xff]
    %v2406 = vld [vmem:[#allocation9 + $0x14] sm:$0xf]
    %v2407 = vld [vmem:[#allocation9 + $0x18] sm:$0xff]
    %v2408 = vld [vmem:[#allocation9 + $0x20] sm:$0xf]
    %v2409 = vld [vmem:[#allocation9 + $0x24] sm:$0xff]
    %v2410 = vld [vmem:[#allocation9 + $0x2c] sm:$0xf]
    %v2411 = vld [vmem:[#allocation2] sm:$0xf]
    %v2412 = vld [vmem:[#allocation2 + $0x4] sm:$0xf]
    %v2413 = vld [vmem:[#allocation2 + $0x8] sm:$0xf]
    %v2414 = vld [vmem:[#allocation2 + $0xc] sm:$0xf]
    %v2415 = vld [vmem:[#allocation2 + $0x10] sm:$0xf]
    %v2416 = vld [vmem:[#allocation2 + $0x14] sm:$0xf]
    %v2417 = vld [vmem:[#allocation2 + $0x18] sm:$0xf]
    %v2418 = vld [vmem:[#allocation2 + $0x1c] sm:$0xf]
    %v2419 = vld [vmem:[#allocation2 + $0x20] sm:$0xf]
    %v2420 = vld [vmem:[#allocation2 + $0x24] sm:$0xf]
    %v2421 = vld [vmem:[#allocation2 + $0x28] sm:$0xf]
    %v2422 = vld [vmem:[#allocation2 + $0x2c] sm:$0xf]
    %v2423 = vld [vmem:[#allocation2 + $0x30] sm:$0xf]
    %v2424 = vld [vmem:[#allocation2 + $0x34] sm:$0xf]
    %v2425 = vld [vmem:[#allocation2 + $0x38] sm:$0xf]
    %v2426 = vld [vmem:[#allocation2 + $0x3c] sm:$0xf]
    %v2427 = vld [vmem:[#allocation2 + $0x40] sm:$0xf]
    %v2428 = vld [vmem:[#allocation2 + $0x44] sm:$0xf]
    %v2429 = vld [vmem:[#allocation2 + $0x48] sm:$0xf]
    %v2430 = vld [vmem:[#allocation2 + $0x4c] sm:$0xf]
    %v2431 = vld [vmem:[#allocation2 + $0x50] sm:$0xf]
    %v2432 = vld [vmem:[#allocation2 + $0x54] sm:$0xf]
    %v2433 = vld [vmem:[#allocation2 + $0x58] sm:$0xf]
    %v2434 = vld [vmem:[#allocation2 + $0x5c] sm:$0xf]
    %v2435 = vld [vmem:[#allocation2 + $0x60] sm:$0xf]
    %v2436 = vld [vmem:[#allocation2 + $0x64] sm:$0xf]
    %v2437 = vld [vmem:[#allocation2 + $0x68] sm:$0xf]
    %v2438 = vld [vmem:[#allocation2 + $0x6c] sm:$0xf]
    %v2439 = vld [vmem:[#allocation2 + $0x70] sm:$0xf]
    %v2440 = vld [vmem:[#allocation2 + $0x74] sm:$0xf]
    %v2441 = vld [vmem:[#allocation2 + $0x78] sm:$0xf]
    %v2442 = vld [vmem:[#allocation2 + $0x7c] sm:$0xf]
    %v2443 = vld [vmem:[#allocation2 + $0x80] sm:$0xf]
    %v2444 = vld [vmem:[#allocation2 + $0x84] sm:$0xf]
    %v2445 = vld [vmem:[#allocation2 + $0x88] sm:$0xf]
    %v2446 = vld [vmem:[#allocation2 + $0x8c] sm:$0xf]
    %v2447 = vld [vmem:[%s5] sm:$0xff]
    %v2448 = vld [vmem:[%s5 + $0x8] sm:$0xff]
    %v2449 = vld [vmem:[%s5 + $0x10] sm:$0xff]
    %v2450 = vld [vmem:[%s5 + $0x18] sm:$0xff]
    %2452 = vset.pattern.permute.xlu0 0
    %2453 = vperm.xlu0 %2452, %v2447
    %v2454 = vpop.permute.xlu0 %2453
    %2457 = vset.pattern.permute.xlu0 0
    %2458 = vperm.xlu0 %2457, %v2448
    %v2459 = vpop.permute.xlu0 %2458
    %2462 = vset.pattern.permute.xlu0 0
    %2463 = vperm.xlu0 %2462, %v2449
    %v2464 = vpop.permute.xlu0 %2463
    %2467 = vset.pattern.permute.xlu0 0
    %2468 = vperm.xlu0 %2467, %v2450
    %v2469 = vpop.permute.xlu0 %2468
    %v2479 = vunpack.c.l.b16 %v2403
    %v2480 = vunpack.c.h.b16 %v2403
    %v2481 = vunpack.c.l.b16 %v2404
    %v2482 = vunpack.c.l.b16 %v2405
    %v2483 = vunpack.c.h.b16 %v2405
    %v2484 = vunpack.c.l.b16 %v2406
    %v2485 = vunpack.c.l.b16 %v2407
    %v2486 = vunpack.c.h.b16 %v2407
    %v2487 = vunpack.c.l.b16 %v2408
    %v2488 = vunpack.c.l.b16 %v2409
    %v2489 = vunpack.c.h.b16 %v2409
    %v2490 = vunpack.c.l.b16 %v2410
    %v2491 = vpack.c.b16 %v2482, %v2479
    %v2492 = vpack.c.b16 %v2483, %v2480
    %v2493 = vpack.c.b16 %v2484, %v2481
    %v2494 = vpack.c.b16 %v2488, %v2485
    %v2495 = vpack.c.b16 %v2489, %v2486
    %v2496 = vpack.c.b16 %v2490, %v2487
    %v2537 = vunpack.c.l.b16 %v2411
    %v2538 = vunpack.c.l.b16 %v2412
    %v2539 = vunpack.c.l.b16 %v2413
    %v2540 = vunpack.c.l.b16 %v2414
    %v2541 = vunpack.c.l.b16 %v2415
    %v2542 = vunpack.c.l.b16 %v2416
    %v2543 = vunpack.c.l.b16 %v2417
    %v2544 = vunpack.c.l.b16 %v2418
    %v2545 = vunpack.c.l.b16 %v2419
    %v2546 = vunpack.c.l.b16 %v2420
    %v2547 = vunpack.c.l.b16 %v2421
    %v2548 = vunpack.c.l.b16 %v2422
    %v2549 = vunpack.c.l.b16 %v2423
    %v2550 = vunpack.c.l.b16 %v2424
    %v2551 = vunpack.c.l.b16 %v2425
    %v2552 = vunpack.c.l.b16 %v2426
    %v2553 = vunpack.c.l.b16 %v2427
    %v2554 = vunpack.c.l.b16 %v2428
    %v2555 = vunpack.c.l.b16 %v2429
    %v2556 = vunpack.c.l.b16 %v2430
    %v2557 = vunpack.c.l.b16 %v2431
    %v2558 = vunpack.c.l.b16 %v2432
    %v2559 = vunpack.c.l.b16 %v2433
    %v2560 = vunpack.c.l.b16 %v2434
    %v2561 = vunpack.c.l.b16 %v2435
    %v2562 = vunpack.c.l.b16 %v2436
    %v2563 = vunpack.c.l.b16 %v2437
    %v2564 = vunpack.c.l.b16 %v2438
    %v2565 = vunpack.c.l.b16 %v2439
    %v2566 = vunpack.c.l.b16 %v2440
    %v2567 = vunpack.c.l.b16 %v2441
    %v2568 = vunpack.c.l.b16 %v2442
    %v2569 = vunpack.c.l.b16 %v2443
    %v2570 = vunpack.c.l.b16 %v2444
    %v2571 = vunpack.c.l.b16 %v2445
    %v2572 = vunpack.c.l.b16 %v2446
    %v2573 = vpack.c.b16 %v2538, %v2537
    %v2574 = vpack.c.b16 %v2540, %v2539
    %v2575 = vpack.c.b16 %v2542, %v2541
    %v2576 = vpack.c.b16 %v2544, %v2543
    %v2577 = vpack.c.b16 %v2546, %v2545
    %v2578 = vpack.c.b16 %v2548, %v2547
    %v2579 = vpack.c.b16 %v2550, %v2549
    %v2580 = vpack.c.b16 %v2552, %v2551
    %v2581 = vpack.c.b16 %v2554, %v2553
    %v2582 = vpack.c.b16 %v2556, %v2555
    %v2583 = vpack.c.b16 %v2558, %v2557
    %v2584 = vpack.c.b16 %v2560, %v2559
    %v2585 = vpack.c.b16 %v2562, %v2561
    %v2586 = vpack.c.b16 %v2564, %v2563
    %v2587 = vpack.c.b16 %v2566, %v2565
    %v2588 = vpack.c.b16 %v2568, %v2567
    %v2589 = vpack.c.b16 %v2570, %v2569
    %v2590 = vpack.c.b16 %v2572, %v2571
    %vm2609 = vcmask 261120
    %v2611 = vsel %vm2609, %v2493, 0
    %v2614 = vsel %vm2609, %v2496, 0
    %2616 = vmatprep.subr.bf16.mxu0 0
    %2617 = vmatpush1.bf16.msra.mxu0 %v2580
    %2618 = vmatprep.subr.bf16.mxu0 0
    %2619 = vmatpush1.bf16.msra.mxu0 %v2579
    %2620 = vmatprep.subr.bf16.mxu0 0
    %2621 = vmatpush1.bf16.msra.mxu0 %v2578
    %2622 = vmatprep.subr.bf16.mxu0 0
    %2623 = vmatpush1.bf16.msra.mxu0 %v2577
    %2624 = vmatprep.subr.bf16.mxu0 0
    %2625 = vmatpush1.bf16.msra.mxu0 %v2576
    %2626 = vmatprep.subr.bf16.mxu0 0
    %2627 = vmatpush1.bf16.msra.mxu0 %v2575
    %2628 = vmatprep.subr.bf16.mxu0 0
    %2629 = vmatpush1.bf16.msra.mxu0 %v2574
    %2630 = vmatprep.subr.bf16.mxu0 0
    %2631 = vmatpush1.bf16.msra.mxu0 %v2573
    %2632 = vmatprep.subr.bf16.mxu0 0
    %2633 = vmatpush2.bf16.msra.mxu0 %v2588
    %2634 = vmatprep.subr.bf16.mxu0 0
    %2635 = vmatpush2.bf16.msra.mxu0 %v2587
    %2636 = vmatprep.subr.bf16.mxu0 0
    %2637 = vmatpush2.bf16.msra.mxu0 %v2586
    %2638 = vmatprep.subr.bf16.mxu0 0
    %2639 = vmatpush2.bf16.msra.mxu0 %v2585
    %2640 = vmatprep.subr.bf16.mxu0 0
    %2641 = vmatpush2.bf16.msra.mxu0 %v2584
    %2642 = vmatprep.subr.bf16.mxu0 0
    %2643 = vmatpush2.bf16.msra.mxu0 %v2583
    %2644 = vmatprep.subr.bf16.mxu0 0
    %2645 = vmatpush2.bf16.msra.mxu0 %v2582
    %2646 = vmatprep.subr.bf16.mxu0 0
    %2647 = vmatpush2.bf16.msra.mxu0 %v2581
    %2648 = vmatprep.mubr.bf16.mxu0 %v2492
    %2649 = vmatmul.mubr.bf16.gmra.mxu0 %v2491
    %v2650 = vpop.f32.mrf.mxu0
    %v2651 = vadd.f32 %v2454, %v2650
    %v2652 = vpop.f32.mrf.mxu0
    %v2653 = vpop.f32.mrf.mxu0
    %v2654 = vadd.f32 %v2459, %v2653
    %v2655 = vpop.f32.mrf.mxu0
    %2656 = vmatprep.mubr.bf16.mxu0 %v2495
    %2657 = vmatmul.mubr.bf16.gmra.mxu0 %v2494
    %v2658 = vpop.f32.mrf.mxu0
    %v2659 = vadd.f32 %v2464, %v2658
    %v2660 = vpop.f32.mrf.mxu0
    %v2661 = vpop.f32.mrf.mxu0
    %v2662 = vadd.f32 %v2469, %v2661
    %v2663 = vpop.f32.mrf.mxu0
    %2664 = vdwg.mxu0
    %2665 = vmatprep.subr.bf16.mxu0 0
    %2666 = vmatpush1.bf16.msra.mxu0 0
    %2667 = vmatprep.subr.bf16.mxu0 0
    %2668 = vmatpush1.bf16.msra.mxu0 0
    %2669 = vmatprep.subr.bf16.mxu0 0
    %2670 = vmatpush1.bf16.msra.mxu0 0
    %2671 = vmatprep.subr.bf16.mxu0 0
    %2672 = vmatpush1.bf16.msra.mxu0 0
    %2673 = vmatprep.subr.bf16.mxu0 0
    %2674 = vmatpush1.bf16.msra.mxu0 0
    %2675 = vmatprep.subr.bf16.mxu0 0
    %2676 = vmatpush1.bf16.msra.mxu0 0
    %2677 = vmatprep.subr.bf16.mxu0 0
    %2678 = vmatpush1.bf16.msra.mxu0 %v2590
    %2679 = vmatprep.subr.bf16.mxu0 0
    %2680 = vmatpush1.bf16.msra.mxu0 %v2589
    %2681 = vmatprep.subr.bf16.mxu0 0
    %2682 = vmatpush2.bf16.msra.mxu0 0
    %2683 = vmatprep.subr.bf16.mxu0 0
    %2684 = vmatpush2.bf16.msra.mxu0 0
    %2685 = vmatprep.subr.bf16.mxu0 0
    %2686 = vmatpush2.bf16.msra.mxu0 0
    %2687 = vmatprep.subr.bf16.mxu0 0
    %2688 = vmatpush2.bf16.msra.mxu0 0
    %2689 = vmatprep.subr.bf16.mxu0 0
    %2690 = vmatpush2.bf16.msra.mxu0 0
    %2691 = vmatprep.subr.bf16.mxu0 0
    %2692 = vmatpush2.bf16.msra.mxu0 0
    %2693 = vmatprep.subr.bf16.mxu0 0
    %2694 = vmatpush2.bf16.msra.mxu0 0
    %2695 = vmatprep.subr.bf16.mxu0 0
    %2696 = vmatpush2.bf16.msra.mxu0 0
    %2697 = vmatprep.mubr.bf16.mxu0 0
    %2698 = vmatmul.mubr.bf16.gmra.mxu0 %v2611
    %v2699 = vpop.f32.mrf.mxu0
    %v2700 = vadd.f32 %v2651, %v2699
    %v2701 = vpop.f32.mrf.mxu0
    %v2702 = vpop.f32.mrf.mxu0
    %v2703 = vadd.f32 %v2654, %v2702
    %v2704 = vpop.f32.mrf.mxu0
    %2705 = vmatprep.mubr.bf16.mxu0 0
    %2706 = vmatmul.mubr.bf16.gmra.mxu0 %v2614
    %v2707 = vpop.f32.mrf.mxu0
    %v2708 = vadd.f32 %v2659, %v2707
    %v2709 = vpop.f32.mrf.mxu0
    %v2710 = vpop.f32.mrf.mxu0
    %v2711 = vadd.f32 %v2662, %v2710
    %v2712 = vpop.f32.mrf.mxu0
    %2713 = vdwg.mxu0
    %v2714 = vpack.c.bf16 %v2703, %v2700
    %v2715 = vpack.c.bf16 %v2711, %v2708
    %v2716 = vld [vmem:[#allocation15] sm:$0xf]
    %v2717 = vld [vmem:[#allocation15 + $0x4] sm:$0xf]
    %v2718 = vld [vmem:[#allocation15 + $0x8] sm:$0xf]
    %v2719 = vld [vmem:[#allocation15 + $0xc] sm:$0xf]
    %v2720 = vld [vmem:[#allocation15 + $0x10] sm:$0xf]
    %v2721 = vld [vmem:[#allocation15 + $0x14] sm:$0xf]
    %v2722 = vld [vmem:[#allocation15 + $0x18] sm:$0xf]
    %v2723 = vld [vmem:[#allocation15 + $0x1c] sm:$0xf]
    %v2724 = vld [vmem:[#allocation15 + $0x20] sm:$0xf]
    %v2725 = vld [vmem:[#allocation15 + $0x24] sm:$0xf]
    %v2726 = vld [vmem:[#allocation15 + $0x28] sm:$0xf]
    %v2727 = vld [vmem:[#allocation15 + $0x2c] sm:$0xf]
    %v2728 = vld [vmem:[#allocation15 + $0x30] sm:$0xf]
    %v2729 = vld [vmem:[#allocation15 + $0x34] sm:$0xf]
    %v2730 = vld [vmem:[#allocation15 + $0x38] sm:$0xf]
    %v2731 = vld [vmem:[#allocation15 + $0x3c] sm:$0xf]
    %v2748 = vunpack.c.l.b16 %v2716
    %v2749 = vunpack.c.l.b16 %v2717
    %v2750 = vunpack.c.l.b16 %v2718
    %v2751 = vunpack.c.l.b16 %v2719
    %v2752 = vunpack.c.l.b16 %v2720
    %v2753 = vunpack.c.l.b16 %v2721
    %v2754 = vunpack.c.l.b16 %v2722
    %v2755 = vunpack.c.l.b16 %v2723
    %v2756 = vunpack.c.l.b16 %v2724
    %v2757 = vunpack.c.l.b16 %v2725
    %v2758 = vunpack.c.l.b16 %v2726
    %v2759 = vunpack.c.l.b16 %v2727
    %v2760 = vunpack.c.l.b16 %v2728
    %v2761 = vunpack.c.l.b16 %v2729
    %v2762 = vunpack.c.l.b16 %v2730
    %v2763 = vunpack.c.l.b16 %v2731
    %v2764 = vpack.c.b16 %v2749, %v2748
    %v2765 = vpack.c.b16 %v2751, %v2750
    %v2766 = vpack.c.b16 %v2753, %v2752
    %v2767 = vpack.c.b16 %v2755, %v2754
    %v2768 = vpack.c.b16 %v2757, %v2756
    %v2769 = vpack.c.b16 %v2759, %v2758
    %v2770 = vpack.c.b16 %v2761, %v2760
    %v2771 = vpack.c.b16 %v2763, %v2762
    %2780 = vmatprep.subr.bf16.mxu0 0
    %2781 = vmatpush1.bf16.msra.mxu0 %v2771
    %2782 = vmatprep.subr.bf16.mxu0 0
    %2783 = vmatpush1.bf16.msra.mxu0 %v2770
    %2784 = vmatprep.subr.bf16.mxu0 0
    %2785 = vmatpush1.bf16.msra.mxu0 %v2769
    %2786 = vmatprep.subr.bf16.mxu0 0
    %2787 = vmatpush1.bf16.msra.mxu0 %v2768
    %2788 = vmatprep.subr.bf16.mxu0 0
    %2789 = vmatpush1.bf16.msra.mxu0 %v2767
    %2790 = vmatprep.subr.bf16.mxu0 0
    %2791 = vmatpush1.bf16.msra.mxu0 %v2766
    %2792 = vmatprep.subr.bf16.mxu0 0
    %2793 = vmatpush1.bf16.msra.mxu0 %v2765
    %2794 = vmatprep.subr.bf16.mxu0 0
    %2795 = vmatpush1.bf16.msra.mxu0 %v2764
    %2796 = vmatprep.subr.bf16.mxu0 0
    %2797 = vmatpush2.bf16.msra.mxu0 0
    %2798 = vmatprep.subr.bf16.mxu0 0
    %2799 = vmatpush2.bf16.msra.mxu0 0
    %2800 = vmatprep.subr.bf16.mxu0 0
    %2801 = vmatpush2.bf16.msra.mxu0 0
    %2802 = vmatprep.subr.bf16.mxu0 0
    %2803 = vmatpush2.bf16.msra.mxu0 0
    %2804 = vmatprep.subr.bf16.mxu0 0
    %2805 = vmatpush2.bf16.msra.mxu0 0
    %2806 = vmatprep.subr.bf16.mxu0 0
    %2807 = vmatpush2.bf16.msra.mxu0 0
    %2808 = vmatprep.subr.bf16.mxu0 0
    %2809 = vmatpush2.bf16.msra.mxu0 0
    %2810 = vmatprep.subr.bf16.mxu0 0
    %2811 = vmatpush2.bf16.msra.mxu0 0
    %2812 = vmatprep.mubr.bf16.mxu0 0
    %2813 = vmatmul.mubr.bf16.gmra.mxu0 %v2714
    %v2814 = vpop.f32.mrf.mxu0
    %v2815 = vadd.f32 0.0, %v2814
    %v2816 = vpop.f32.mrf.mxu0
    %v2817 = vpop.f32.mrf.mxu0
    %v2818 = vadd.f32 0.0, %v2817
    %v2819 = vpop.f32.mrf.mxu0
    %2820 = vmatprep.mubr.bf16.mxu0 0
    %2821 = vmatmul.mubr.bf16.gmra.mxu0 %v2715
    %v2822 = vpop.f32.mrf.mxu0
    %v2823 = vadd.f32 0.0, %v2822
    %v2824 = vpop.f32.mrf.mxu0
    %v2825 = vpop.f32.mrf.mxu0
    %v2826 = vadd.f32 0.0, %v2825
    %v2827 = vpop.f32.mrf.mxu0
    %2828 = vdwg.mxu0
    %v2829 = vpack.c.bf16 %v2818, %v2815
    %v2830 = vpack.c.bf16 %v2826, %v2823
    %v2833 = vunpack.c.l.b16 %v2829
    %v2834 = vunpack.c.h.b16 %v2829
    %v2835 = vunpack.c.l.b16 %v2830
    %v2836 = vunpack.c.h.b16 %v2830
    %v2837 = vpack.c.b16 %v2833, %v2833
    %v2838 = vpack.c.b16 %v2834, %v2834
    %v2839 = vpack.c.b16 %v2835, %v2835
    %v2840 = vpack.c.b16 %v2836, %v2836
    %2845 = vst [vmem:[#allocation3] sm:$0xf] %v2837
    %2846 = vst [vmem:[#allocation3 + $0x4] sm:$0xf] %v2838
    %2847 = vst [vmem:[#allocation3 + $0x8] sm:$0xf] %v2839
    %2848 = vst [vmem:[#allocation3 + $0xc] sm:$0xf] %v2840
    %s2849 = scalar_lea.vmem [#allocation15], 64
    %v2850 = vld [vmem:[%s2849] sm:$0xf]
    %v2851 = vld [vmem:[%s2849 + $0x4] sm:$0xf]
    %v2852 = vld [vmem:[%s2849 + $0x8] sm:$0xf]
    %v2853 = vld [vmem:[%s2849 + $0xc] sm:$0xf]
    %v2854 = vld [vmem:[%s2849 + $0x10] sm:$0xf]
    %v2855 = vld [vmem:[%s2849 + $0x14] sm:$0xf]
    %v2856 = vld [vmem:[%s2849 + $0x18] sm:$0xf]
    %v2857 = vld [vmem:[%s2849 + $0x1c] sm:$0xf]
    %v2858 = vld [vmem:[%s2849 + $0x20] sm:$0xf]
    %v2859 = vld [vmem:[%s2849 + $0x24] sm:$0xf]
    %v2860 = vld [vmem:[%s2849 + $0x28] sm:$0xf]
    %v2861 = vld [vmem:[%s2849 + $0x2c] sm:$0xf]
    %v2862 = vld [vmem:[%s2849 + $0x30] sm:$0xf]
    %v2863 = vld [vmem:[%s2849 + $0x34] sm:$0xf]
    %v2864 = vld [vmem:[%s2849 + $0x38] sm:$0xf]
    %v2865 = vld [vmem:[%s2849 + $0x3c] sm:$0xf]
    %v2882 = vunpack.c.l.b16 %v2850
    %v2883 = vunpack.c.l.b16 %v2851
    %v2884 = vunpack.c.l.b16 %v2852
    %v2885 = vunpack.c.l.b16 %v2853
    %v2886 = vunpack.c.l.b16 %v2854
    %v2887 = vunpack.c.l.b16 %v2855
    %v2888 = vunpack.c.l.b16 %v2856
    %v2889 = vunpack.c.l.b16 %v2857
    %v2890 = vunpack.c.l.b16 %v2858
    %v2891 = vunpack.c.l.b16 %v2859
    %v2892 = vunpack.c.l.b16 %v2860
    %v2893 = vunpack.c.l.b16 %v2861
    %v2894 = vunpack.c.l.b16 %v2862
    %v2895 = vunpack.c.l.b16 %v2863
    %v2896 = vunpack.c.l.b16 %v2864
    %v2897 = vunpack.c.l.b16 %v2865
    %v2898 = vpack.c.b16 %v2883, %v2882
    %v2899 = vpack.c.b16 %v2885, %v2884
    %v2900 = vpack.c.b16 %v2887, %v2886
    %v2901 = vpack.c.b16 %v2889, %v2888
    %v2902 = vpack.c.b16 %v2891, %v2890
    %v2903 = vpack.c.b16 %v2893, %v2892
    %v2904 = vpack.c.b16 %v2895, %v2894
    %v2905 = vpack.c.b16 %v2897, %v2896
    %2914 = vmatprep.subr.bf16.mxu0 0
    %2915 = vmatpush1.bf16.msra.mxu0 %v2905
    %2916 = vmatprep.subr.bf16.mxu0 0
    %2917 = vmatpush1.bf16.msra.mxu0 %v2904
    %2918 = vmatprep.subr.bf16.mxu0 0
    %2919 = vmatpush1.bf16.msra.mxu0 %v2903
    %2920 = vmatprep.subr.bf16.mxu0 0
    %2921 = vmatpush1.bf16.msra.mxu0 %v2902
    %2922 = vmatprep.subr.bf16.mxu0 0
    %2923 = vmatpush1.bf16.msra.mxu0 %v2901
    %2924 = vmatprep.subr.bf16.mxu0 0
    %2925 = vmatpush1.bf16.msra.mxu0 %v2900
    %2926 = vmatprep.subr.bf16.mxu0 0
    %2927 = vmatpush1.bf16.msra.mxu0 %v2899
    %2928 = vmatprep.subr.bf16.mxu0 0
    %2929 = vmatpush1.bf16.msra.mxu0 %v2898
    %2930 = vmatprep.subr.bf16.mxu0 0
    %2931 = vmatpush2.bf16.msra.mxu0 0
    %2932 = vmatprep.subr.bf16.mxu0 0
    %2933 = vmatpush2.bf16.msra.mxu0 0
    %2934 = vmatprep.subr.bf16.mxu0 0
    %2935 = vmatpush2.bf16.msra.mxu0 0
    %2936 = vmatprep.subr.bf16.mxu0 0
    %2937 = vmatpush2.bf16.msra.mxu0 0
    %2938 = vmatprep.subr.bf16.mxu0 0
    %2939 = vmatpush2.bf16.msra.mxu0 0
    %2940 = vmatprep.subr.bf16.mxu0 0
    %2941 = vmatpush2.bf16.msra.mxu0 0
    %2942 = vmatprep.subr.bf16.mxu0 0
    %2943 = vmatpush2.bf16.msra.mxu0 0
    %2944 = vmatprep.subr.bf16.mxu0 0
    %2945 = vmatpush2.bf16.msra.mxu0 0
    %2946 = vmatprep.mubr.bf16.mxu0 0
    %2947 = vmatmul.mubr.bf16.gmra.mxu0 %v2714
    %v2948 = vpop.f32.mrf.mxu0
    %v2949 = vadd.f32 0.0, %v2948
    %v2950 = vpop.f32.mrf.mxu0
    %v2951 = vpop.f32.mrf.mxu0
    %v2952 = vadd.f32 0.0, %v2951
    %v2953 = vpop.f32.mrf.mxu0
    %2954 = vmatprep.mubr.bf16.mxu0 0
    %2955 = vmatmul.mubr.bf16.gmra.mxu0 %v2715
    %v2956 = vpop.f32.mrf.mxu0
    %v2957 = vadd.f32 0.0, %v2956
    %v2958 = vpop.f32.mrf.mxu0
    %v2959 = vpop.f32.mrf.mxu0
    %v2960 = vadd.f32 0.0, %v2959
    %v2961 = vpop.f32.mrf.mxu0
    %2962 = vdwg.mxu0
    %v2963 = vpack.c.bf16 %v2952, %v2949
    %v2964 = vpack.c.bf16 %v2960, %v2957
    %v2967 = vunpack.c.l.b16 %v2963
    %v2968 = vunpack.c.h.b16 %v2963
    %v2969 = vunpack.c.l.b16 %v2964
    %v2970 = vunpack.c.h.b16 %v2964
    %v2971 = vpack.c.b16 %v2967, %v2967
    %v2972 = vpack.c.b16 %v2968, %v2968
    %v2973 = vpack.c.b16 %v2969, %v2969
    %v2974 = vpack.c.b16 %v2970, %v2970
    %2979 = vst [vmem:[#allocation3 + $0x10] sm:$0xf] %v2971
    %2980 = vst [vmem:[#allocation3 + $0x14] sm:$0xf] %v2972
    %2981 = vst [vmem:[#allocation3 + $0x18] sm:$0xf] %v2973
    %2982 = vst [vmem:[#allocation3 + $0x1c] sm:$0xf] %v2974
    %s2983 = scalar_lea.vmem [#allocation15], 128
    %v2984 = vld [vmem:[%s2983] sm:$0xf]
    %v2985 = vld [vmem:[%s2983 + $0x4] sm:$0xf]
    %v2986 = vld [vmem:[%s2983 + $0x8] sm:$0xf]
    %v2987 = vld [vmem:[%s2983 + $0xc] sm:$0xf]
    %v2988 = vld [vmem:[%s2983 + $0x10] sm:$0xf]
    %v2989 = vld [vmem:[%s2983 + $0x14] sm:$0xf]
    %v2990 = vld [vmem:[%s2983 + $0x18] sm:$0xf]
    %v2991 = vld [vmem:[%s2983 + $0x1c] sm:$0xf]
    %v2992 = vld [vmem:[%s2983 + $0x20] sm:$0xf]
    %v2993 = vld [vmem:[%s2983 + $0x24] sm:$0xf]
    %v2994 = vld [vmem:[%s2983 + $0x28] sm:$0xf]
    %v2995 = vld [vmem:[%s2983 + $0x2c] sm:$0xf]
    %v2996 = vld [vmem:[%s2983 + $0x30] sm:$0xf]
    %v2997 = vld [vmem:[%s2983 + $0x34] sm:$0xf]
    %v2998 = vld [vmem:[%s2983 + $0x38] sm:$0xf]
    %v2999 = vld [vmem:[%s2983 + $0x3c] sm:$0xf]
    %v3016 = vunpack.c.l.b16 %v2984
    %v3017 = vunpack.c.l.b16 %v2985
    %v3018 = vunpack.c.l.b16 %v2986
    %v3019 = vunpack.c.l.b16 %v2987
    %v3020 = vunpack.c.l.b16 %v2988
    %v3021 = vunpack.c.l.b16 %v2989
    %v3022 = vunpack.c.l.b16 %v2990
    %v3023 = vunpack.c.l.b16 %v2991
    %v3024 = vunpack.c.l.b16 %v2992
    %v3025 = vunpack.c.l.b16 %v2993
    %v3026 = vunpack.c.l.b16 %v2994
    %v3027 = vunpack.c.l.b16 %v2995
    %v3028 = vunpack.c.l.b16 %v2996
    %v3029 = vunpack.c.l.b16 %v2997
    %v3030 = vunpack.c.l.b16 %v2998
    %v3031 = vunpack.c.l.b16 %v2999
    %v3032 = vpack.c.b16 %v3017, %v3016
    %v3033 = vpack.c.b16 %v3019, %v3018
    %v3034 = vpack.c.b16 %v3021, %v3020
    %v3035 = vpack.c.b16 %v3023, %v3022
    %v3036 = vpack.c.b16 %v3025, %v3024
    %v3037 = vpack.c.b16 %v3027, %v3026
    %v3038 = vpack.c.b16 %v3029, %v3028
    %v3039 = vpack.c.b16 %v3031, %v3030
    %3048 = vmatprep.subr.bf16.mxu0 0
    %3049 = vmatpush1.bf16.msra.mxu0 %v3039
    %3050 = vmatprep.subr.bf16.mxu0 0
    %3051 = vmatpush1.bf16.msra.mxu0 %v3038
    %3052 = vmatprep.subr.bf16.mxu0 0
    %3053 = vmatpush1.bf16.msra.mxu0 %v3037
    %3054 = vmatprep.subr.bf16.mxu0 0
    %3055 = vmatpush1.bf16.msra.mxu0 %v3036
    %3056 = vmatprep.subr.bf16.mxu0 0
    %3057 = vmatpush1.bf16.msra.mxu0 %v3035
    %3058 = vmatprep.subr.bf16.mxu0 0
    %3059 = vmatpush1.bf16.msra.mxu0 %v3034
    %3060 = vmatprep.subr.bf16.mxu0 0
    %3061 = vmatpush1.bf16.msra.mxu0 %v3033
    %3062 = vmatprep.subr.bf16.mxu0 0
    %3063 = vmatpush1.bf16.msra.mxu0 %v3032
    %3064 = vmatprep.subr.bf16.mxu0 0
    %3065 = vmatpush2.bf16.msra.mxu0 0
    %3066 = vmatprep.subr.bf16.mxu0 0
    %3067 = vmatpush2.bf16.msra.mxu0 0
    %3068 = vmatprep.subr.bf16.mxu0 0
    %3069 = vmatpush2.bf16.msra.mxu0 0
    %3070 = vmatprep.subr.bf16.mxu0 0
    %3071 = vmatpush2.bf16.msra.mxu0 0
    %3072 = vmatprep.subr.bf16.mxu0 0
    %3073 = vmatpush2.bf16.msra.mxu0 0
    %3074 = vmatprep.subr.bf16.mxu0 0
    %3075 = vmatpush2.bf16.msra.mxu0 0
    %3076 = vmatprep.subr.bf16.mxu0 0
    %3077 = vmatpush2.bf16.msra.mxu0 0
    %3078 = vmatprep.subr.bf16.mxu0 0
    %3079 = vmatpush2.bf16.msra.mxu0 0
    %3080 = vmatprep.mubr.bf16.mxu0 0
    %3081 = vmatmul.mubr.bf16.gmra.mxu0 %v2714
    %v3082 = vpop.f32.mrf.mxu0
    %v3083 = vadd.f32 0.0, %v3082
    %v3084 = vpop.f32.mrf.mxu0
    %v3085 = vpop.f32.mrf.mxu0
    %v3086 = vadd.f32 0.0, %v3085
    %v3087 = vpop.f32.mrf.mxu0
    %3088 = vmatprep.mubr.bf16.mxu0 0
    %3089 = vmatmul.mubr.bf16.gmra.mxu0 %v2715
    %v3090 = vpop.f32.mrf.mxu0
    %v3091 = vadd.f32 0.0, %v3090
    %v3092 = vpop.f32.mrf.mxu0
    %v3093 = vpop.f32.mrf.mxu0
    %v3094 = vadd.f32 0.0, %v3093
    %v3095 = vpop.f32.mrf.mxu0
    %3096 = vdwg.mxu0
    %v3097 = vpack.c.bf16 %v3086, %v3083
    %v3098 = vpack.c.bf16 %v3094, %v3091
    %v3101 = vunpack.c.l.b16 %v3097
    %v3102 = vunpack.c.h.b16 %v3097
    %v3103 = vunpack.c.l.b16 %v3098
    %v3104 = vunpack.c.h.b16 %v3098
    %v3105 = vpack.c.b16 %v3101, %v3101
    %v3106 = vpack.c.b16 %v3102, %v3102
    %v3107 = vpack.c.b16 %v3103, %v3103
    %v3108 = vpack.c.b16 %v3104, %v3104
    %3113 = vst [vmem:[#allocation3 + $0x20] sm:$0xf] %v3105
    %3114 = vst [vmem:[#allocation3 + $0x24] sm:$0xf] %v3106
    %3115 = vst [vmem:[#allocation3 + $0x28] sm:$0xf] %v3107
    %3116 = vst [vmem:[#allocation3 + $0x2c] sm:$0xf] %v3108
    %s3117 = scalar_lea.vmem [#allocation15], 192
    %v3118 = vld [vmem:[%s3117] sm:$0xf]
    %v3119 = vld [vmem:[%s3117 + $0x4] sm:$0xf]
    %v3120 = vld [vmem:[%s3117 + $0x8] sm:$0xf]
    %v3121 = vld [vmem:[%s3117 + $0xc] sm:$0xf]
    %v3122 = vld [vmem:[%s3117 + $0x10] sm:$0xf]
    %v3123 = vld [vmem:[%s3117 + $0x14] sm:$0xf]
    %v3124 = vld [vmem:[%s3117 + $0x18] sm:$0xf]
    %v3125 = vld [vmem:[%s3117 + $0x1c] sm:$0xf]
    %v3126 = vld [vmem:[%s3117 + $0x20] sm:$0xf]
    %v3127 = vld [vmem:[%s3117 + $0x24] sm:$0xf]
    %v3128 = vld [vmem:[%s3117 + $0x28] sm:$0xf]
    %v3129 = vld [vmem:[%s3117 + $0x2c] sm:$0xf]
    %v3130 = vld [vmem:[%s3117 + $0x30] sm:$0xf]
    %v3131 = vld [vmem:[%s3117 + $0x34] sm:$0xf]
    %v3132 = vld [vmem:[%s3117 + $0x38] sm:$0xf]
    %v3133 = vld [vmem:[%s3117 + $0x3c] sm:$0xf]
    %v3150 = vunpack.c.l.b16 %v3118
    %v3151 = vunpack.c.l.b16 %v3119
    %v3152 = vunpack.c.l.b16 %v3120
    %v3153 = vunpack.c.l.b16 %v3121
    %v3154 = vunpack.c.l.b16 %v3122
    %v3155 = vunpack.c.l.b16 %v3123
    %v3156 = vunpack.c.l.b16 %v3124
    %v3157 = vunpack.c.l.b16 %v3125
    %v3158 = vunpack.c.l.b16 %v3126
    %v3159 = vunpack.c.l.b16 %v3127
    %v3160 = vunpack.c.l.b16 %v3128
    %v3161 = vunpack.c.l.b16 %v3129
    %v3162 = vunpack.c.l.b16 %v3130
    %v3163 = vunpack.c.l.b16 %v3131
    %v3164 = vunpack.c.l.b16 %v3132
    %v3165 = vunpack.c.l.b16 %v3133
    %v3166 = vpack.c.b16 %v3151, %v3150
    %v3167 = vpack.c.b16 %v3153, %v3152
    %v3168 = vpack.c.b16 %v3155, %v3154
    %v3169 = vpack.c.b16 %v3157, %v3156
    %v3170 = vpack.c.b16 %v3159, %v3158
    %v3171 = vpack.c.b16 %v3161, %v3160
    %v3172 = vpack.c.b16 %v3163, %v3162
    %v3173 = vpack.c.b16 %v3165, %v3164
    %3182 = vmatprep.subr.bf16.mxu0 0
    %3183 = vmatpush1.bf16.msra.mxu0 %v3173
    %3184 = vmatprep.subr.bf16.mxu0 0
    %3185 = vmatpush1.bf16.msra.mxu0 %v3172
    %3186 = vmatprep.subr.bf16.mxu0 0
    %3187 = vmatpush1.bf16.msra.mxu0 %v3171
    %3188 = vmatprep.subr.bf16.mxu0 0
    %3189 = vmatpush1.bf16.msra.mxu0 %v3170
    %3190 = vmatprep.subr.bf16.mxu0 0
    %3191 = vmatpush1.bf16.msra.mxu0 %v3169
    %3192 = vmatprep.subr.bf16.mxu0 0
    %3193 = vmatpush1.bf16.msra.mxu0 %v3168
    %3194 = vmatprep.subr.bf16.mxu0 0
    %3195 = vmatpush1.bf16.msra.mxu0 %v3167
    %3196 = vmatprep.subr.bf16.mxu0 0
    %3197 = vmatpush1.bf16.msra.mxu0 %v3166
    %3198 = vmatprep.subr.bf16.mxu0 0
    %3199 = vmatpush2.bf16.msra.mxu0 0
    %3200 = vmatprep.subr.bf16.mxu0 0
    %3201 = vmatpush2.bf16.msra.mxu0 0
    %3202 = vmatprep.subr.bf16.mxu0 0
    %3203 = vmatpush2.bf16.msra.mxu0 0
    %3204 = vmatprep.subr.bf16.mxu0 0
    %3205 = vmatpush2.bf16.msra.mxu0 0
    %3206 = vmatprep.subr.bf16.mxu0 0
    %3207 = vmatpush2.bf16.msra.mxu0 0
    %3208 = vmatprep.subr.bf16.mxu0 0
    %3209 = vmatpush2.bf16.msra.mxu0 0
    %3210 = vmatprep.subr.bf16.mxu0 0
    %3211 = vmatpush2.bf16.msra.mxu0 0
    %3212 = vmatprep.subr.bf16.mxu0 0
    %3213 = vmatpush2.bf16.msra.mxu0 0
    %3214 = vmatprep.mubr.bf16.mxu0 0
    %3215 = vmatmul.mubr.bf16.gmra.mxu0 %v2714
    %v3216 = vpop.f32.mrf.mxu0
    %v3217 = vadd.f32 0.0, %v3216
    %v3218 = vpop.f32.mrf.mxu0
    %v3219 = vpop.f32.mrf.mxu0
    %v3220 = vadd.f32 0.0, %v3219
    %v3221 = vpop.f32.mrf.mxu0
    %3222 = vmatprep.mubr.bf16.mxu0 0
    %3223 = vmatmul.mubr.bf16.gmra.mxu0 %v2715
    %v3224 = vpop.f32.mrf.mxu0
    %v3225 = vadd.f32 0.0, %v3224
    %v3226 = vpop.f32.mrf.mxu0
    %v3227 = vpop.f32.mrf.mxu0
    %v3228 = vadd.f32 0.0, %v3227
    %v3229 = vpop.f32.mrf.mxu0
    %3230 = vdwg.mxu0
    %v3231 = vpack.c.bf16 %v3220, %v3217
    %v3232 = vpack.c.bf16 %v3228, %v3225
    %v3235 = vunpack.c.l.b16 %v3231
    %v3236 = vunpack.c.h.b16 %v3231
    %v3237 = vunpack.c.l.b16 %v3232
    %v3238 = vunpack.c.h.b16 %v3232
    %v3239 = vpack.c.b16 %v3235, %v3235
    %v3240 = vpack.c.b16 %v3236, %v3236
    %v3241 = vpack.c.b16 %v3237, %v3237
    %v3242 = vpack.c.b16 %v3238, %v3238
    %3247 = vst [vmem:[#allocation3 + $0x30] sm:$0xf] %v3239
    %3248 = vst [vmem:[#allocation3 + $0x34] sm:$0xf] %v3240
    %3249 = vst [vmem:[#allocation3 + $0x38] sm:$0xf] %v3241
    %3250 = vst [vmem:[#allocation3 + $0x3c] sm:$0xf] %v3242
    %s3251 = scalar_lea.vmem [#allocation15], 256
    %v3252 = vld [vmem:[%s3251] sm:$0xf]
    %v3253 = vld [vmem:[%s3251 + $0x4] sm:$0xf]
    %v3254 = vld [vmem:[%s3251 + $0x8] sm:$0xf]
    %v3255 = vld [vmem:[%s3251 + $0xc] sm:$0xf]
    %v3256 = vld [vmem:[%s3251 + $0x10] sm:$0xf]
    %v3257 = vld [vmem:[%s3251 + $0x14] sm:$0xf]
    %v3258 = vld [vmem:[%s3251 + $0x18] sm:$0xf]
    %v3259 = vld [vmem:[%s3251 + $0x1c] sm:$0xf]
    %v3260 = vld [vmem:[%s3251 + $0x20] sm:$0xf]
    %v3261 = vld [vmem:[%s3251 + $0x24] sm:$0xf]
    %v3262 = vld [vmem:[%s3251 + $0x28] sm:$0xf]
    %v3263 = vld [vmem:[%s3251 + $0x2c] sm:$0xf]
    %v3264 = vld [vmem:[%s3251 + $0x30] sm:$0xf]
    %v3265 = vld [vmem:[%s3251 + $0x34] sm:$0xf]
    %v3266 = vld [vmem:[%s3251 + $0x38] sm:$0xf]
    %v3267 = vld [vmem:[%s3251 + $0x3c] sm:$0xf]
    %v3284 = vunpack.c.l.b16 %v3252
    %v3285 = vunpack.c.l.b16 %v3253
    %v3286 = vunpack.c.l.b16 %v3254
    %v3287 = vunpack.c.l.b16 %v3255
    %v3288 = vunpack.c.l.b16 %v3256
    %v3289 = vunpack.c.l.b16 %v3257
    %v3290 = vunpack.c.l.b16 %v3258
    %v3291 = vunpack.c.l.b16 %v3259
    %v3292 = vunpack.c.l.b16 %v3260
    %v3293 = vunpack.c.l.b16 %v3261
    %v3294 = vunpack.c.l.b16 %v3262
    %v3295 = vunpack.c.l.b16 %v3263
    %v3296 = vunpack.c.l.b16 %v3264
    %v3297 = vunpack.c.l.b16 %v3265
    %v3298 = vunpack.c.l.b16 %v3266
    %v3299 = vunpack.c.l.b16 %v3267
    %v3300 = vpack.c.b16 %v3285, %v3284
    %v3301 = vpack.c.b16 %v3287, %v3286
    %v3302 = vpack.c.b16 %v3289, %v3288
    %v3303 = vpack.c.b16 %v3291, %v3290
    %v3304 = vpack.c.b16 %v3293, %v3292
    %v3305 = vpack.c.b16 %v3295, %v3294
    %v3306 = vpack.c.b16 %v3297, %v3296
    %v3307 = vpack.c.b16 %v3299, %v3298
    %3316 = vmatprep.subr.bf16.mxu0 0
    %3317 = vmatpush1.bf16.msra.mxu0 %v3307
    %3318 = vmatprep.subr.bf16.mxu0 0
    %3319 = vmatpush1.bf16.msra.mxu0 %v3306
    %3320 = vmatprep.subr.bf16.mxu0 0
    %3321 = vmatpush1.bf16.msra.mxu0 %v3305
    %3322 = vmatprep.subr.bf16.mxu0 0
    %3323 = vmatpush1.bf16.msra.mxu0 %v3304
    %3324 = vmatprep.subr.bf16.mxu0 0
    %3325 = vmatpush1.bf16.msra.mxu0 %v3303
    %3326 = vmatprep.subr.bf16.mxu0 0
    %3327 = vmatpush1.bf16.msra.mxu0 %v3302
    %3328 = vmatprep.subr.bf16.mxu0 0
    %3329 = vmatpush1.bf16.msra.mxu0 %v3301
    %3330 = vmatprep.subr.bf16.mxu0 0
    %3331 = vmatpush1.bf16.msra.mxu0 %v3300
    %3332 = vmatprep.subr.bf16.mxu0 0
    %3333 = vmatpush2.bf16.msra.mxu0 0
    %3334 = vmatprep.subr.bf16.mxu0 0
    %3335 = vmatpush2.bf16.msra.mxu0 0
    %3336 = vmatprep.subr.bf16.mxu0 0
    %3337 = vmatpush2.bf16.msra.mxu0 0
    %3338 = vmatprep.subr.bf16.mxu0 0
    %3339 = vmatpush2.bf16.msra.mxu0 0
    %3340 = vmatprep.subr.bf16.mxu0 0
    %3341 = vmatpush2.bf16.msra.mxu0 0
    %3342 = vmatprep.subr.bf16.mxu0 0
    %3343 = vmatpush2.bf16.msra.mxu0 0
    %3344 = vmatprep.subr.bf16.mxu0 0
    %3345 = vmatpush2.bf16.msra.mxu0 0
    %3346 = vmatprep.subr.bf16.mxu0 0
    %3347 = vmatpush2.bf16.msra.mxu0 0
    %3348 = vmatprep.mubr.bf16.mxu0 0
    %3349 = vmatmul.mubr.bf16.gmra.mxu0 %v2714
    %v3350 = vpop.f32.mrf.mxu0
    %v3351 = vadd.f32 0.0, %v3350
    %v3352 = vpop.f32.mrf.mxu0
    %v3353 = vpop.f32.mrf.mxu0
    %v3354 = vadd.f32 0.0, %v3353
    %v3355 = vpop.f32.mrf.mxu0
    %3356 = vmatprep.mubr.bf16.mxu0 0
    %3357 = vmatmul.mubr.bf16.gmra.mxu0 %v2715
    %v3358 = vpop.f32.mrf.mxu0
    %v3359 = vadd.f32 0.0, %v3358
    %v3360 = vpop.f32.mrf.mxu0
    %v3361 = vpop.f32.mrf.mxu0
    %v3362 = vadd.f32 0.0, %v3361
    %v3363 = vpop.f32.mrf.mxu0
    %3364 = vdwg.mxu0
    %v3365 = vpack.c.bf16 %v3354, %v3351
    %v3366 = vpack.c.bf16 %v3362, %v3359
    %v3369 = vunpack.c.l.b16 %v3365
    %v3370 = vunpack.c.h.b16 %v3365
    %v3371 = vunpack.c.l.b16 %v3366
    %v3372 = vunpack.c.h.b16 %v3366
    %v3373 = vpack.c.b16 %v3369, %v3369
    %v3374 = vpack.c.b16 %v3370, %v3370
    %v3375 = vpack.c.b16 %v3371, %v3371
    %v3376 = vpack.c.b16 %v3372, %v3372
    %3381 = vst [vmem:[#allocation3 + $0x40] sm:$0xf] %v3373
    %3382 = vst [vmem:[#allocation3 + $0x44] sm:$0xf] %v3374
    %3383 = vst [vmem:[#allocation3 + $0x48] sm:$0xf] %v3375
    %3384 = vst [vmem:[#allocation3 + $0x4c] sm:$0xf] %v3376
    %s3385 = scalar_lea.vmem [#allocation15], 320
    %v3386 = vld [vmem:[%s3385] sm:$0xf]
    %v3387 = vld [vmem:[%s3385 + $0x4] sm:$0xf]
    %v3388 = vld [vmem:[%s3385 + $0x8] sm:$0xf]
    %v3389 = vld [vmem:[%s3385 + $0xc] sm:$0xf]
    %v3390 = vld [vmem:[%s3385 + $0x10] sm:$0xf]
    %v3391 = vld [vmem:[%s3385 + $0x14] sm:$0xf]
    %v3392 = vld [vmem:[%s3385 + $0x18] sm:$0xf]
    %v3393 = vld [vmem:[%s3385 + $0x1c] sm:$0xf]
    %v3394 = vld [vmem:[%s3385 + $0x20] sm:$0xf]
    %v3395 = vld [vmem:[%s3385 + $0x24] sm:$0xf]
    %v3396 = vld [vmem:[%s3385 + $0x28] sm:$0xf]
    %v3397 = vld [vmem:[%s3385 + $0x2c] sm:$0xf]
    %v3398 = vld [vmem:[%s3385 + $0x30] sm:$0xf]
    %v3399 = vld [vmem:[%s3385 + $0x34] sm:$0xf]
    %v3400 = vld [vmem:[%s3385 + $0x38] sm:$0xf]
    %v3401 = vld [vmem:[%s3385 + $0x3c] sm:$0xf]
    %v3418 = vunpack.c.l.b16 %v3386
    %v3419 = vunpack.c.l.b16 %v3387
    %v3420 = vunpack.c.l.b16 %v3388
    %v3421 = vunpack.c.l.b16 %v3389
    %v3422 = vunpack.c.l.b16 %v3390
    %v3423 = vunpack.c.l.b16 %v3391
    %v3424 = vunpack.c.l.b16 %v3392
    %v3425 = vunpack.c.l.b16 %v3393
    %v3426 = vunpack.c.l.b16 %v3394
    %v3427 = vunpack.c.l.b16 %v3395
    %v3428 = vunpack.c.l.b16 %v3396
    %v3429 = vunpack.c.l.b16 %v3397
    %v3430 = vunpack.c.l.b16 %v3398
    %v3431 = vunpack.c.l.b16 %v3399
    %v3432 = vunpack.c.l.b16 %v3400
    %v3433 = vunpack.c.l.b16 %v3401
    %v3434 = vpack.c.b16 %v3419, %v3418
    %v3435 = vpack.c.b16 %v3421, %v3420
    %v3436 = vpack.c.b16 %v3423, %v3422
    %v3437 = vpack.c.b16 %v3425, %v3424
    %v3438 = vpack.c.b16 %v3427, %v3426
    %v3439 = vpack.c.b16 %v3429, %v3428
    %v3440 = vpack.c.b16 %v3431, %v3430
    %v3441 = vpack.c.b16 %v3433, %v3432
    %3450 = vmatprep.subr.bf16.mxu0 0
    %3451 = vmatpush1.bf16.msra.mxu0 %v3441
    %3452 = vmatprep.subr.bf16.mxu0 0
    %3453 = vmatpush1.bf16.msra.mxu0 %v3440
    %3454 = vmatprep.subr.bf16.mxu0 0
    %3455 = vmatpush1.bf16.msra.mxu0 %v3439
    %3456 = vmatprep.subr.bf16.mxu0 0
    %3457 = vmatpush1.bf16.msra.mxu0 %v3438
    %3458 = vmatprep.subr.bf16.mxu0 0
    %3459 = vmatpush1.bf16.msra.mxu0 %v3437
    %3460 = vmatprep.subr.bf16.mxu0 0
    %3461 = vmatpush1.bf16.msra.mxu0 %v3436
    %3462 = vmatprep.subr.bf16.mxu0 0
    %3463 = vmatpush1.bf16.msra.mxu0 %v3435
    %3464 = vmatprep.subr.bf16.mxu0 0
    %3465 = vmatpush1.bf16.msra.mxu0 %v3434
    %3466 = vmatprep.subr.bf16.mxu0 0
    %3467 = vmatpush2.bf16.msra.mxu0 0
    %3468 = vmatprep.subr.bf16.mxu0 0
    %3469 = vmatpush2.bf16.msra.mxu0 0
    %3470 = vmatprep.subr.bf16.mxu0 0
    %3471 = vmatpush2.bf16.msra.mxu0 0
    %3472 = vmatprep.subr.bf16.mxu0 0
    %3473 = vmatpush2.bf16.msra.mxu0 0
    %3474 = vmatprep.subr.bf16.mxu0 0
    %3475 = vmatpush2.bf16.msra.mxu0 0
    %3476 = vmatprep.subr.bf16.mxu0 0
    %3477 = vmatpush2.bf16.msra.mxu0 0
    %3478 = vmatprep.subr.bf16.mxu0 0
    %3479 = vmatpush2.bf16.msra.mxu0 0
    %3480 = vmatprep.subr.bf16.mxu0 0
    %3481 = vmatpush2.bf16.msra.mxu0 0
    %3482 = vmatprep.mubr.bf16.mxu0 0
    %3483 = vmatmul.mubr.bf16.gmra.mxu0 %v2714
    %v3484 = vpop.f32.mrf.mxu0
    %v3485 = vadd.f32 0.0, %v3484
    %v3486 = vpop.f32.mrf.mxu0
    %v3487 = vpop.f32.mrf.mxu0
    %v3488 = vadd.f32 0.0, %v3487
    %v3489 = vpop.f32.mrf.mxu0
    %3490 = vmatprep.mubr.bf16.mxu0 0
    %3491 = vmatmul.mubr.bf16.gmra.mxu0 %v2715
    %v3492 = vpop.f32.mrf.mxu0
    %v3493 = vadd.f32 0.0, %v3492
    %v3494 = vpop.f32.mrf.mxu0
    %v3495 = vpop.f32.mrf.mxu0
    %v3496 = vadd.f32 0.0, %v3495
    %v3497 = vpop.f32.mrf.mxu0
    %3498 = vdwg.mxu0
    %v3499 = vpack.c.bf16 %v3488, %v3485
    %v3500 = vpack.c.bf16 %v3496, %v3493
    %v3503 = vunpack.c.l.b16 %v3499
    %v3504 = vunpack.c.h.b16 %v3499
    %v3505 = vunpack.c.l.b16 %v3500
    %v3506 = vunpack.c.h.b16 %v3500
    %v3507 = vpack.c.b16 %v3503, %v3503
    %v3508 = vpack.c.b16 %v3504, %v3504
    %v3509 = vpack.c.b16 %v3505, %v3505
    %v3510 = vpack.c.b16 %v3506, %v3506
    %3515 = vst [vmem:[#allocation3 + $0x50] sm:$0xf] %v3507
    %3516 = vst [vmem:[#allocation3 + $0x54] sm:$0xf] %v3508
    %3517 = vst [vmem:[#allocation3 + $0x58] sm:$0xf] %v3509
    %3518 = vst [vmem:[#allocation3 + $0x5c] sm:$0xf] %v3510
    %s3519 = scalar_lea.vmem [#allocation15], 384
    %v3520 = vld [vmem:[%s3519] sm:$0xf]
    %v3521 = vld [vmem:[%s3519 + $0x4] sm:$0xf]
    %v3522 = vld [vmem:[%s3519 + $0x8] sm:$0xf]
    %v3523 = vld [vmem:[%s3519 + $0xc] sm:$0xf]
    %v3524 = vld [vmem:[%s3519 + $0x10] sm:$0xf]
    %v3525 = vld [vmem:[%s3519 + $0x14] sm:$0xf]
    %v3526 = vld [vmem:[%s3519 + $0x18] sm:$0xf]
    %v3527 = vld [vmem:[%s3519 + $0x1c] sm:$0xf]
    %v3528 = vld [vmem:[%s3519 + $0x20] sm:$0xf]
    %v3529 = vld [vmem:[%s3519 + $0x24] sm:$0xf]
    %v3530 = vld [vmem:[%s3519 + $0x28] sm:$0xf]
    %v3531 = vld [vmem:[%s3519 + $0x2c] sm:$0xf]
    %v3532 = vld [vmem:[%s3519 + $0x30] sm:$0xf]
    %v3533 = vld [vmem:[%s3519 + $0x34] sm:$0xf]
    %v3534 = vld [vmem:[%s3519 + $0x38] sm:$0xf]
    %v3535 = vld [vmem:[%s3519 + $0x3c] sm:$0xf]
    %v3552 = vunpack.c.l.b16 %v3520
    %v3553 = vunpack.c.l.b16 %v3521
    %v3554 = vunpack.c.l.b16 %v3522
    %v3555 = vunpack.c.l.b16 %v3523
    %v3556 = vunpack.c.l.b16 %v3524
    %v3557 = vunpack.c.l.b16 %v3525
    %v3558 = vunpack.c.l.b16 %v3526
    %v3559 = vunpack.c.l.b16 %v3527
    %v3560 = vunpack.c.l.b16 %v3528
    %v3561 = vunpack.c.l.b16 %v3529
    %v3562 = vunpack.c.l.b16 %v3530
    %v3563 = vunpack.c.l.b16 %v3531
    %v3564 = vunpack.c.l.b16 %v3532
    %v3565 = vunpack.c.l.b16 %v3533
    %v3566 = vunpack.c.l.b16 %v3534
    %v3567 = vunpack.c.l.b16 %v3535
    %v3568 = vpack.c.b16 %v3553, %v3552
    %v3569 = vpack.c.b16 %v3555, %v3554
    %v3570 = vpack.c.b16 %v3557, %v3556
    %v3571 = vpack.c.b16 %v3559, %v3558
    %v3572 = vpack.c.b16 %v3561, %v3560
    %v3573 = vpack.c.b16 %v3563, %v3562
    %v3574 = vpack.c.b16 %v3565, %v3564
    %v3575 = vpack.c.b16 %v3567, %v3566
    %3584 = vmatprep.subr.bf16.mxu0 0
    %3585 = vmatpush1.bf16.msra.mxu0 %v3575
    %3586 = vmatprep.subr.bf16.mxu0 0
    %3587 = vmatpush1.bf16.msra.mxu0 %v3574
    %3588 = vmatprep.subr.bf16.mxu0 0
    %3589 = vmatpush1.bf16.msra.mxu0 %v3573
    %3590 = vmatprep.subr.bf16.mxu0 0
    %3591 = vmatpush1.bf16.msra.mxu0 %v3572
    %3592 = vmatprep.subr.bf16.mxu0 0
    %3593 = vmatpush1.bf16.msra.mxu0 %v3571
    %3594 = vmatprep.subr.bf16.mxu0 0
    %3595 = vmatpush1.bf16.msra.mxu0 %v3570
    %3596 = vmatprep.subr.bf16.mxu0 0
    %3597 = vmatpush1.bf16.msra.mxu0 %v3569
    %3598 = vmatprep.subr.bf16.mxu0 0
    %3599 = vmatpush1.bf16.msra.mxu0 %v3568
    %3600 = vmatprep.subr.bf16.mxu0 0
    %3601 = vmatpush2.bf16.msra.mxu0 0
    %3602 = vmatprep.subr.bf16.mxu0 0
    %3603 = vmatpush2.bf16.msra.mxu0 0
    %3604 = vmatprep.subr.bf16.mxu0 0
    %3605 = vmatpush2.bf16.msra.mxu0 0
    %3606 = vmatprep.subr.bf16.mxu0 0
    %3607 = vmatpush2.bf16.msra.mxu0 0
    %3608 = vmatprep.subr.bf16.mxu0 0
    %3609 = vmatpush2.bf16.msra.mxu0 0
    %3610 = vmatprep.subr.bf16.mxu0 0
    %3611 = vmatpush2.bf16.msra.mxu0 0
    %3612 = vmatprep.subr.bf16.mxu0 0
    %3613 = vmatpush2.bf16.msra.mxu0 0
    %3614 = vmatprep.subr.bf16.mxu0 0
    %3615 = vmatpush2.bf16.msra.mxu0 0
    %3616 = vmatprep.mubr.bf16.mxu0 0
    %3617 = vmatmul.mubr.bf16.gmra.mxu0 %v2714
    %v3618 = vpop.f32.mrf.mxu0
    %v3619 = vadd.f32 0.0, %v3618
    %v3620 = vpop.f32.mrf.mxu0
    %v3621 = vpop.f32.mrf.mxu0
    %v3622 = vadd.f32 0.0, %v3621
    %v3623 = vpop.f32.mrf.mxu0
    %3624 = vmatprep.mubr.bf16.mxu0 0
    %3625 = vmatmul.mubr.bf16.gmra.mxu0 %v2715
    %v3626 = vpop.f32.mrf.mxu0
    %v3627 = vadd.f32 0.0, %v3626
    %v3628 = vpop.f32.mrf.mxu0
    %v3629 = vpop.f32.mrf.mxu0
    %v3630 = vadd.f32 0.0, %v3629
    %v3631 = vpop.f32.mrf.mxu0
    %3632 = vdwg.mxu0
    %v3633 = vpack.c.bf16 %v3622, %v3619
    %v3634 = vpack.c.bf16 %v3630, %v3627
    %v3637 = vunpack.c.l.b16 %v3633
    %v3638 = vunpack.c.h.b16 %v3633
    %v3639 = vunpack.c.l.b16 %v3634
    %v3640 = vunpack.c.h.b16 %v3634
    %v3641 = vpack.c.b16 %v3637, %v3637
    %v3642 = vpack.c.b16 %v3638, %v3638
    %v3643 = vpack.c.b16 %v3639, %v3639
    %v3644 = vpack.c.b16 %v3640, %v3640
    %3649 = vst [vmem:[#allocation3 + $0x60] sm:$0xf] %v3641
    %3650 = vst [vmem:[#allocation3 + $0x64] sm:$0xf] %v3642
    %3651 = vst [vmem:[#allocation3 + $0x68] sm:$0xf] %v3643
    %3652 = vst [vmem:[#allocation3 + $0x6c] sm:$0xf] %v3644
    %s3653 = scalar_lea.vmem [#allocation15], 448
    %v3654 = vld [vmem:[%s3653] sm:$0xf]
    %v3655 = vld [vmem:[%s3653 + $0x4] sm:$0xf]
    %v3656 = vld [vmem:[%s3653 + $0x8] sm:$0xf]
    %v3657 = vld [vmem:[%s3653 + $0xc] sm:$0xf]
    %v3658 = vld [vmem:[%s3653 + $0x10] sm:$0xf]
    %v3659 = vld [vmem:[%s3653 + $0x14] sm:$0xf]
    %v3660 = vld [vmem:[%s3653 + $0x18] sm:$0xf]
    %v3661 = vld [vmem:[%s3653 + $0x1c] sm:$0xf]
    %v3662 = vld [vmem:[%s3653 + $0x20] sm:$0xf]
    %v3663 = vld [vmem:[%s3653 + $0x24] sm:$0xf]
    %v3664 = vld [vmem:[%s3653 + $0x28] sm:$0xf]
    %v3665 = vld [vmem:[%s3653 + $0x2c] sm:$0xf]
    %v3666 = vld [vmem:[%s3653 + $0x30] sm:$0xf]
    %v3667 = vld [vmem:[%s3653 + $0x34] sm:$0xf]
    %v3668 = vld [vmem:[%s3653 + $0x38] sm:$0xf]
    %v3669 = vld [vmem:[%s3653 + $0x3c] sm:$0xf]
    %v3686 = vunpack.c.l.b16 %v3654
    %v3687 = vunpack.c.l.b16 %v3655
    %v3688 = vunpack.c.l.b16 %v3656
    %v3689 = vunpack.c.l.b16 %v3657
    %v3690 = vunpack.c.l.b16 %v3658
    %v3691 = vunpack.c.l.b16 %v3659
    %v3692 = vunpack.c.l.b16 %v3660
    %v3693 = vunpack.c.l.b16 %v3661
    %v3694 = vunpack.c.l.b16 %v3662
    %v3695 = vunpack.c.l.b16 %v3663
    %v3696 = vunpack.c.l.b16 %v3664
    %v3697 = vunpack.c.l.b16 %v3665
    %v3698 = vunpack.c.l.b16 %v3666
    %v3699 = vunpack.c.l.b16 %v3667
    %v3700 = vunpack.c.l.b16 %v3668
    %v3701 = vunpack.c.l.b16 %v3669
    %v3702 = vpack.c.b16 %v3687, %v3686
    %v3703 = vpack.c.b16 %v3689, %v3688
    %v3704 = vpack.c.b16 %v3691, %v3690
    %v3705 = vpack.c.b16 %v3693, %v3692
    %v3706 = vpack.c.b16 %v3695, %v3694
    %v3707 = vpack.c.b16 %v3697, %v3696
    %v3708 = vpack.c.b16 %v3699, %v3698
    %v3709 = vpack.c.b16 %v3701, %v3700
    %3718 = vmatprep.subr.bf16.mxu0 0
    %3719 = vmatpush1.bf16.msra.mxu0 %v3709
    %3720 = vmatprep.subr.bf16.mxu0 0
    %3721 = vmatpush1.bf16.msra.mxu0 %v3708
    %3722 = vmatprep.subr.bf16.mxu0 0
    %3723 = vmatpush1.bf16.msra.mxu0 %v3707
    %3724 = vmatprep.subr.bf16.mxu0 0
    %3725 = vmatpush1.bf16.msra.mxu0 %v3706
    %3726 = vmatprep.subr.bf16.mxu0 0
    %3727 = vmatpush1.bf16.msra.mxu0 %v3705
    %3728 = vmatprep.subr.bf16.mxu0 0
    %3729 = vmatpush1.bf16.msra.mxu0 %v3704
    %3730 = vmatprep.subr.bf16.mxu0 0
    %3731 = vmatpush1.bf16.msra.mxu0 %v3703
    %3732 = vmatprep.subr.bf16.mxu0 0
    %3733 = vmatpush1.bf16.msra.mxu0 %v3702
    %3734 = vmatprep.subr.bf16.mxu0 0
    %3735 = vmatpush2.bf16.msra.mxu0 0
    %3736 = vmatprep.subr.bf16.mxu0 0
    %3737 = vmatpush2.bf16.msra.mxu0 0
    %3738 = vmatprep.subr.bf16.mxu0 0
    %3739 = vmatpush2.bf16.msra.mxu0 0
    %3740 = vmatprep.subr.bf16.mxu0 0
    %3741 = vmatpush2.bf16.msra.mxu0 0
    %3742 = vmatprep.subr.bf16.mxu0 0
    %3743 = vmatpush2.bf16.msra.mxu0 0
    %3744 = vmatprep.subr.bf16.mxu0 0
    %3745 = vmatpush2.bf16.msra.mxu0 0
    %3746 = vmatprep.subr.bf16.mxu0 0
    %3747 = vmatpush2.bf16.msra.mxu0 0
    %3748 = vmatprep.subr.bf16.mxu0 0
    %3749 = vmatpush2.bf16.msra.mxu0 0
    %3750 = vmatprep.mubr.bf16.mxu0 0
    %3751 = vmatmul.mubr.bf16.gmra.mxu0 %v2714
    %v3752 = vpop.f32.mrf.mxu0
    %v3753 = vadd.f32 0.0, %v3752
    %v3754 = vpop.f32.mrf.mxu0
    %v3755 = vpop.f32.mrf.mxu0
    %v3756 = vadd.f32 0.0, %v3755
    %v3757 = vpop.f32.mrf.mxu0
    %3758 = vmatprep.mubr.bf16.mxu0 0
    %3759 = vmatmul.mubr.bf16.gmra.mxu0 %v2715
    %v3760 = vpop.f32.mrf.mxu0
    %v3761 = vadd.f32 0.0, %v3760
    %v3762 = vpop.f32.mrf.mxu0
    %v3763 = vpop.f32.mrf.mxu0
    %v3764 = vadd.f32 0.0, %v3763
    %v3765 = vpop.f32.mrf.mxu0
    %3766 = vdwg.mxu0
    %v3767 = vpack.c.bf16 %v3756, %v3753
    %v3768 = vpack.c.bf16 %v3764, %v3761
    %v3771 = vunpack.c.l.b16 %v3767
    %v3772 = vunpack.c.h.b16 %v3767
    %v3773 = vunpack.c.l.b16 %v3768
    %v3774 = vunpack.c.h.b16 %v3768
    %v3775 = vpack.c.b16 %v3771, %v3771
    %v3776 = vpack.c.b16 %v3772, %v3772
    %v3777 = vpack.c.b16 %v3773, %v3773
    %v3778 = vpack.c.b16 %v3774, %v3774
    %3783 = vst [vmem:[#allocation3 + $0x70] sm:$0xf] %v3775
    %3784 = vst [vmem:[#allocation3 + $0x74] sm:$0xf] %v3776
    %3785 = vst [vmem:[#allocation3 + $0x78] sm:$0xf] %v3777
    %3786 = vst [vmem:[#allocation3 + $0x7c] sm:$0xf] %v3778
    %s3787 = scalar_lea.vmem [#allocation15], 512
    %v3788 = vld [vmem:[%s3787] sm:$0xf]
    %v3789 = vld [vmem:[%s3787 + $0x4] sm:$0xf]
    %v3790 = vld [vmem:[%s3787 + $0x8] sm:$0xf]
    %v3791 = vld [vmem:[%s3787 + $0xc] sm:$0xf]
    %v3792 = vld [vmem:[%s3787 + $0x10] sm:$0xf]
    %v3793 = vld [vmem:[%s3787 + $0x14] sm:$0xf]
    %v3794 = vld [vmem:[%s3787 + $0x18] sm:$0xf]
    %v3795 = vld [vmem:[%s3787 + $0x1c] sm:$0xf]
    %v3796 = vld [vmem:[%s3787 + $0x20] sm:$0xf]
    %v3797 = vld [vmem:[%s3787 + $0x24] sm:$0xf]
    %v3798 = vld [vmem:[%s3787 + $0x28] sm:$0xf]
    %v3799 = vld [vmem:[%s3787 + $0x2c] sm:$0xf]
    %v3800 = vld [vmem:[%s3787 + $0x30] sm:$0xf]
    %v3801 = vld [vmem:[%s3787 + $0x34] sm:$0xf]
    %v3802 = vld [vmem:[%s3787 + $0x38] sm:$0xf]
    %v3803 = vld [vmem:[%s3787 + $0x3c] sm:$0xf]
    %v3820 = vunpack.c.l.b16 %v3788
    %v3821 = vunpack.c.l.b16 %v3789
    %v3822 = vunpack.c.l.b16 %v3790
    %v3823 = vunpack.c.l.b16 %v3791
    %v3824 = vunpack.c.l.b16 %v3792
    %v3825 = vunpack.c.l.b16 %v3793
    %v3826 = vunpack.c.l.b16 %v3794
    %v3827 = vunpack.c.l.b16 %v3795
    %v3828 = vunpack.c.l.b16 %v3796
    %v3829 = vunpack.c.l.b16 %v3797
    %v3830 = vunpack.c.l.b16 %v3798
    %v3831 = vunpack.c.l.b16 %v3799
    %v3832 = vunpack.c.l.b16 %v3800
    %v3833 = vunpack.c.l.b16 %v3801
    %v3834 = vunpack.c.l.b16 %v3802
    %v3835 = vunpack.c.l.b16 %v3803
    %v3836 = vpack.c.b16 %v3821, %v3820
    %v3837 = vpack.c.b16 %v3823, %v3822
    %v3838 = vpack.c.b16 %v3825, %v3824
    %v3839 = vpack.c.b16 %v3827, %v3826
    %v3840 = vpack.c.b16 %v3829, %v3828
    %v3841 = vpack.c.b16 %v3831, %v3830
    %v3842 = vpack.c.b16 %v3833, %v3832
    %v3843 = vpack.c.b16 %v3835, %v3834
    %3852 = vmatprep.subr.bf16.mxu0 0
    %3853 = vmatpush1.bf16.msra.mxu0 %v3843
    %3854 = vmatprep.subr.bf16.mxu0 0
    %3855 = vmatpush1.bf16.msra.mxu0 %v3842
    %3856 = vmatprep.subr.bf16.mxu0 0
    %3857 = vmatpush1.bf16.msra.mxu0 %v3841
    %3858 = vmatprep.subr.bf16.mxu0 0
    %3859 = vmatpush1.bf16.msra.mxu0 %v3840
    %3860 = vmatprep.subr.bf16.mxu0 0
    %3861 = vmatpush1.bf16.msra.mxu0 %v3839
    %3862 = vmatprep.subr.bf16.mxu0 0
    %3863 = vmatpush1.bf16.msra.mxu0 %v3838
    %3864 = vmatprep.subr.bf16.mxu0 0
    %3865 = vmatpush1.bf16.msra.mxu0 %v3837
    %3866 = vmatprep.subr.bf16.mxu0 0
    %3867 = vmatpush1.bf16.msra.mxu0 %v3836
    %3868 = vmatprep.subr.bf16.mxu0 0
    %3869 = vmatpush2.bf16.msra.mxu0 0
    %3870 = vmatprep.subr.bf16.mxu0 0
    %3871 = vmatpush2.bf16.msra.mxu0 0
    %3872 = vmatprep.subr.bf16.mxu0 0
    %3873 = vmatpush2.bf16.msra.mxu0 0
    %3874 = vmatprep.subr.bf16.mxu0 0
    %3875 = vmatpush2.bf16.msra.mxu0 0
    %3876 = vmatprep.subr.bf16.mxu0 0
    %3877 = vmatpush2.bf16.msra.mxu0 0
    %3878 = vmatprep.subr.bf16.mxu0 0
    %3879 = vmatpush2.bf16.msra.mxu0 0
    %3880 = vmatprep.subr.bf16.mxu0 0
    %3881 = vmatpush2.bf16.msra.mxu0 0
    %3882 = vmatprep.subr.bf16.mxu0 0
    %3883 = vmatpush2.bf16.msra.mxu0 0
    %3884 = vmatprep.mubr.bf16.mxu0 0
    %3885 = vmatmul.mubr.bf16.gmra.mxu0 %v2714
    %v3886 = vpop.f32.mrf.mxu0
    %v3887 = vadd.f32 0.0, %v3886
    %v3888 = vpop.f32.mrf.mxu0
    %v3889 = vpop.f32.mrf.mxu0
    %v3890 = vadd.f32 0.0, %v3889
    %v3891 = vpop.f32.mrf.mxu0
    %3892 = vmatprep.mubr.bf16.mxu0 0
    %3893 = vmatmul.mubr.bf16.gmra.mxu0 %v2715
    %v3894 = vpop.f32.mrf.mxu0
    %v3895 = vadd.f32 0.0, %v3894
    %v3896 = vpop.f32.mrf.mxu0
    %v3897 = vpop.f32.mrf.mxu0
    %v3898 = vadd.f32 0.0, %v3897
    %v3899 = vpop.f32.mrf.mxu0
    %3900 = vdwg.mxu0
    %v3901 = vpack.c.bf16 %v3890, %v3887
    %v3902 = vpack.c.bf16 %v3898, %v3895
    %v3905 = vunpack.c.l.b16 %v3901
    %v3906 = vunpack.c.h.b16 %v3901
    %v3907 = vunpack.c.l.b16 %v3902
    %v3908 = vunpack.c.h.b16 %v3902
    %v3909 = vpack.c.b16 %v3905, %v3905
    %v3910 = vpack.c.b16 %v3906, %v3906
    %v3911 = vpack.c.b16 %v3907, %v3907
    %v3912 = vpack.c.b16 %v3908, %v3908
    %3917 = vst [vmem:[#allocation3 + $0x80] sm:$0xf] %v3909
    %3918 = vst [vmem:[#allocation3 + $0x84] sm:$0xf] %v3910
    %3919 = vst [vmem:[#allocation3 + $0x88] sm:$0xf] %v3911
    %3920 = vst [vmem:[#allocation3 + $0x8c] sm:$0xf] %v3912
    %v3921 = vld [vmem:[#allocation10] sm:$0xff]
    %v3922 = vld [vmem:[#allocation10 + $0x8] sm:$0xf]
    %v3923 = vld [vmem:[#allocation3] sm:$0xf]
    %v3924 = vld [vmem:[#allocation3 + $0x4] sm:$0xf]
    %v3925 = vld [vmem:[#allocation3 + $0x8] sm:$0xf]
    %v3926 = vld [vmem:[#allocation3 + $0xc] sm:$0xf]
    %v3927 = vld [vmem:[#allocation3 + $0x10] sm:$0xf]
    %v3928 = vld [vmem:[#allocation3 + $0x14] sm:$0xf]
    %v3929 = vld [vmem:[#allocation3 + $0x18] sm:$0xf]
    %v3930 = vld [vmem:[#allocation3 + $0x1c] sm:$0xf]
    %v3931 = vld [vmem:[#allocation3 + $0x20] sm:$0xf]
    %v3932 = vld [vmem:[#allocation3 + $0x24] sm:$0xf]
    %v3933 = vld [vmem:[#allocation3 + $0x28] sm:$0xf]
    %v3934 = vld [vmem:[#allocation3 + $0x2c] sm:$0xf]
    %v3935 = vld [vmem:[#allocation3 + $0x30] sm:$0xf]
    %v3936 = vld [vmem:[#allocation3 + $0x34] sm:$0xf]
    %v3937 = vld [vmem:[#allocation3 + $0x38] sm:$0xf]
    %v3938 = vld [vmem:[#allocation3 + $0x3c] sm:$0xf]
    %v3939 = vld [vmem:[#allocation3 + $0x40] sm:$0xf]
    %v3940 = vld [vmem:[#allocation3 + $0x44] sm:$0xf]
    %v3941 = vld [vmem:[#allocation3 + $0x48] sm:$0xf]
    %v3942 = vld [vmem:[#allocation3 + $0x4c] sm:$0xf]
    %v3943 = vld [vmem:[#allocation3 + $0x50] sm:$0xf]
    %v3944 = vld [vmem:[#allocation3 + $0x54] sm:$0xf]
    %v3945 = vld [vmem:[#allocation3 + $0x58] sm:$0xf]
    %v3946 = vld [vmem:[#allocation3 + $0x5c] sm:$0xf]
    %v3947 = vld [vmem:[#allocation3 + $0x60] sm:$0xf]
    %v3948 = vld [vmem:[#allocation3 + $0x64] sm:$0xf]
    %v3949 = vld [vmem:[#allocation3 + $0x68] sm:$0xf]
    %v3950 = vld [vmem:[#allocation3 + $0x6c] sm:$0xf]
    %v3951 = vld [vmem:[#allocation3 + $0x70] sm:$0xf]
    %v3952 = vld [vmem:[#allocation3 + $0x74] sm:$0xf]
    %v3953 = vld [vmem:[#allocation3 + $0x78] sm:$0xf]
    %v3954 = vld [vmem:[#allocation3 + $0x7c] sm:$0xf]
    %v3955 = vld [vmem:[#allocation3 + $0x80] sm:$0xf]
    %v3956 = vld [vmem:[#allocation3 + $0x84] sm:$0xf]
    %v3957 = vld [vmem:[#allocation3 + $0x88] sm:$0xf]
    %v3958 = vld [vmem:[#allocation3 + $0x8c] sm:$0xf]
    %v3959 = vld [vmem:[%s7] sm:$0xff]
    %3961 = vset.pattern.permute.xlu0 0
    %3962 = vperm.xlu0 %3961, %v3959
    %v3963 = vpop.permute.xlu0 %3962
    %v3967 = vunpack.c.l.b16 %v3921
    %v3968 = vunpack.c.h.b16 %v3921
    %v3969 = vunpack.c.l.b16 %v3922
    %v3970 = vpack.c.b16 %v3967, %v3967
    %v3971 = vpack.c.b16 %v3968, %v3968
    %v3972 = vpack.c.b16 %v3969, %v3969
    %v4011 = vunpack.c.l.b16 %v3923
    %v4012 = vunpack.c.l.b16 %v3924
    %v4013 = vunpack.c.l.b16 %v3925
    %v4014 = vunpack.c.l.b16 %v3926
    %v4015 = vunpack.c.l.b16 %v3927
    %v4016 = vunpack.c.l.b16 %v3928
    %v4017 = vunpack.c.l.b16 %v3929
    %v4018 = vunpack.c.l.b16 %v3930
    %v4019 = vunpack.c.l.b16 %v3931
    %v4020 = vunpack.c.l.b16 %v3932
    %v4021 = vunpack.c.l.b16 %v3933
    %v4022 = vunpack.c.l.b16 %v3934
    %v4023 = vunpack.c.l.b16 %v3935
    %v4024 = vunpack.c.l.b16 %v3936
    %v4025 = vunpack.c.l.b16 %v3937
    %v4026 = vunpack.c.l.b16 %v3938
    %v4027 = vunpack.c.l.b16 %v3939
    %v4028 = vunpack.c.l.b16 %v3940
    %v4029 = vunpack.c.l.b16 %v3941
    %v4030 = vunpack.c.l.b16 %v3942
    %v4031 = vunpack.c.l.b16 %v3943
    %v4032 = vunpack.c.l.b16 %v3944
    %v4033 = vunpack.c.l.b16 %v3945
    %v4034 = vunpack.c.l.b16 %v3946
    %v4035 = vunpack.c.l.b16 %v3947
    %v4036 = vunpack.c.l.b16 %v3948
    %v4037 = vunpack.c.l.b16 %v3949
    %v4038 = vunpack.c.l.b16 %v3950
    %v4039 = vunpack.c.l.b16 %v3951
    %v4040 = vunpack.c.l.b16 %v3952
    %v4041 = vunpack.c.l.b16 %v3953
    %v4042 = vunpack.c.l.b16 %v3954
    %v4043 = vunpack.c.l.b16 %v3955
    %v4044 = vunpack.c.l.b16 %v3956
    %v4045 = vunpack.c.l.b16 %v3957
    %v4046 = vunpack.c.l.b16 %v3958
    %v4047 = vpack.c.b16 %v4012, %v4011
    %v4048 = vpack.c.b16 %v4014, %v4013
    %v4049 = vpack.c.b16 %v4016, %v4015
    %v4050 = vpack.c.b16 %v4018, %v4017
    %v4051 = vpack.c.b16 %v4020, %v4019
    %v4052 = vpack.c.b16 %v4022, %v4021
    %v4053 = vpack.c.b16 %v4024, %v4023
    %v4054 = vpack.c.b16 %v4026, %v4025
    %v4055 = vpack.c.b16 %v4028, %v4027
    %v4056 = vpack.c.b16 %v4030, %v4029
    %v4057 = vpack.c.b16 %v4032, %v4031
    %v4058 = vpack.c.b16 %v4034, %v4033
    %v4059 = vpack.c.b16 %v4036, %v4035
    %v4060 = vpack.c.b16 %v4038, %v4037
    %v4061 = vpack.c.b16 %v4040, %v4039
    %v4062 = vpack.c.b16 %v4042, %v4041
    %v4063 = vpack.c.b16 %v4044, %v4043
    %v4064 = vpack.c.b16 %v4046, %v4045
    %v4084 = vsel %vm2609, %v3972, 0
    %4086 = vmatprep.subr.bf16.mxu0 0
    %4087 = vmatpush1.bf16.msra.mxu0 %v4054
    %4088 = vmatprep.subr.bf16.mxu0 0
    %4089 = vmatpush1.bf16.msra.mxu0 %v4053
    %4090 = vmatprep.subr.bf16.mxu0 0
    %4091 = vmatpush1.bf16.msra.mxu0 %v4052
    %4092 = vmatprep.subr.bf16.mxu0 0
    %4093 = vmatpush1.bf16.msra.mxu0 %v4051
    %4094 = vmatprep.subr.bf16.mxu0 0
    %4095 = vmatpush1.bf16.msra.mxu0 %v4050
    %4096 = vmatprep.subr.bf16.mxu0 0
    %4097 = vmatpush1.bf16.msra.mxu0 %v4049
    %4098 = vmatprep.subr.bf16.mxu0 0
    %4099 = vmatpush1.bf16.msra.mxu0 %v4048
    %4100 = vmatprep.subr.bf16.mxu0 0
    %4101 = vmatpush1.bf16.msra.mxu0 %v4047
    %4102 = vmatprep.subr.bf16.mxu0 0
    %4103 = vmatpush2.bf16.msra.mxu0 %v4062
    %4104 = vmatprep.subr.bf16.mxu0 0
    %4105 = vmatpush2.bf16.msra.mxu0 %v4061
    %4106 = vmatprep.subr.bf16.mxu0 0
    %4107 = vmatpush2.bf16.msra.mxu0 %v4060
    %4108 = vmatprep.subr.bf16.mxu0 0
    %4109 = vmatpush2.bf16.msra.mxu0 %v4059
    %4110 = vmatprep.subr.bf16.mxu0 0
    %4111 = vmatpush2.bf16.msra.mxu0 %v4058
    %4112 = vmatprep.subr.bf16.mxu0 0
    %4113 = vmatpush2.bf16.msra.mxu0 %v4057
    %4114 = vmatprep.subr.bf16.mxu0 0
    %4115 = vmatpush2.bf16.msra.mxu0 %v4056
    %4116 = vmatprep.subr.bf16.mxu0 0
    %4117 = vmatpush2.bf16.msra.mxu0 %v4055
    %4118 = vmatprep.mubr.bf16.mxu0 %v3971
    %4119 = vmatmul.mubr.bf16.gmra.mxu0 %v3970
    %v4120 = vpop.f32.mrf.mxu0
    %v4121 = vadd.f32 %v3963, %v4120
    %v4122 = vpop.f32.mrf.mxu0
    %v4123 = vpop.f32.mrf.mxu0
    %v4124 = vpop.f32.mrf.mxu0
    %4125 = vdwg.mxu0
    %4126 = vmatprep.subr.bf16.mxu0 0
    %4127 = vmatpush1.bf16.msra.mxu0 0
    %4128 = vmatprep.subr.bf16.mxu0 0
    %4129 = vmatpush1.bf16.msra.mxu0 0
    %4130 = vmatprep.subr.bf16.mxu0 0
    %4131 = vmatpush1.bf16.msra.mxu0 0
    %4132 = vmatprep.subr.bf16.mxu0 0
    %4133 = vmatpush1.bf16.msra.mxu0 0
    %4134 = vmatprep.subr.bf16.mxu0 0
    %4135 = vmatpush1.bf16.msra.mxu0 0
    %4136 = vmatprep.subr.bf16.mxu0 0
    %4137 = vmatpush1.bf16.msra.mxu0 0
    %4138 = vmatprep.subr.bf16.mxu0 0
    %4139 = vmatpush1.bf16.msra.mxu0 %v4064
    %4140 = vmatprep.subr.bf16.mxu0 0
    %4141 = vmatpush1.bf16.msra.mxu0 %v4063
    %4142 = vmatprep.subr.bf16.mxu0 0
    %4143 = vmatpush2.bf16.msra.mxu0 0
    %4144 = vmatprep.subr.bf16.mxu0 0
    %4145 = vmatpush2.bf16.msra.mxu0 0
    %4146 = vmatprep.subr.bf16.mxu0 0
    %4147 = vmatpush2.bf16.msra.mxu0 0
    %4148 = vmatprep.subr.bf16.mxu0 0
    %4149 = vmatpush2.bf16.msra.mxu0 0
    %4150 = vmatprep.subr.bf16.mxu0 0
    %4151 = vmatpush2.bf16.msra.mxu0 0
    %4152 = vmatprep.subr.bf16.mxu0 0
    %4153 = vmatpush2.bf16.msra.mxu0 0
    %4154 = vmatprep.subr.bf16.mxu0 0
    %4155 = vmatpush2.bf16.msra.mxu0 0
    %4156 = vmatprep.subr.bf16.mxu0 0
    %4157 = vmatpush2.bf16.msra.mxu0 0
    %4158 = vmatprep.mubr.bf16.mxu0 0
    %4159 = vmatmul.mubr.bf16.gmra.mxu0 %v4084
    %v4160 = vpop.f32.mrf.mxu0
    %v4161 = vadd.f32 %v4121, %v4160
    %v4162 = vpop.f32.mrf.mxu0
    %v4163 = vpop.f32.mrf.mxu0
    %v4164 = vpop.f32.mrf.mxu0
    %4165 = vdwg.mxu0
    %v4166 = vxor.u32 %v4161, 2147483648
    %v4167 = vmul.f32 %v4166, 1.442695
    %v4168 = vpow.pop %v4167
    %v4169 = vadd.f32 %v4168, 1.0
    %v4170 = vrcp.pop %v4169
    %v4171 = vmul.f32 1.0, %v4170
    %v4172 = vpack.c.bf16 %v4171, %v4171
    %v4173 = vld [vmem:[%s11] sm:$0xff]
    %v4174 = vld [vmem:[%s11 + $0x8] sm:$0xff]
    %v4175 = vld [vmem:[%s11 + $0x10] sm:$0xff]
    %v4176 = vld [vmem:[%s11 + $0x18] sm:$0xff]
    %v4177 = vld [vmem:[%s11 + $0x20] sm:$0xff]
    %v4178 = vld [vmem:[%s11 + $0x28] sm:$0xff]
    %v4179 = vld [vmem:[%s11 + $0x30] sm:$0xff]
    %v4180 = vld [vmem:[%s11 + $0x38] sm:$0xff]
    %v4181 = vld [vmem:[%s11 + $0x40] sm:$0xff]
    %v4182 = vld [vmem:[%s11 + $0x48] sm:$0xff]
    %v4183 = vld [vmem:[%s11 + $0x50] sm:$0xff]
    %v4184 = vld [vmem:[%s11 + $0x58] sm:$0xff]
    %v4185 = vld [vmem:[%s11 + $0x60] sm:$0xff]
    %v4186 = vld [vmem:[%s11 + $0x68] sm:$0xff]
    %v4187 = vld [vmem:[%s11 + $0x70] sm:$0xff]
    %v4188 = vld [vmem:[%s11 + $0x78] sm:$0xff]
    %v4205 = vunpack.c.l.b16 %v4173
    %v4206 = vunpack.c.h.b16 %v4173
    %v4207 = vunpack.c.l.b16 %v4174
    %v4208 = vunpack.c.h.b16 %v4174
    %v4209 = vunpack.c.l.b16 %v4175
    %v4210 = vunpack.c.h.b16 %v4175
    %v4211 = vunpack.c.l.b16 %v4176
    %v4212 = vunpack.c.h.b16 %v4176
    %v4213 = vunpack.c.l.b16 %v4177
    %v4214 = vunpack.c.h.b16 %v4177
    %v4215 = vunpack.c.l.b16 %v4178
    %v4216 = vunpack.c.h.b16 %v4178
    %v4217 = vunpack.c.l.b16 %v4179
    %v4218 = vunpack.c.h.b16 %v4179
    %v4219 = vunpack.c.l.b16 %v4180
    %v4220 = vunpack.c.h.b16 %v4180
    %v4221 = vunpack.c.l.b16 %v4181
    %v4222 = vunpack.c.h.b16 %v4181
    %v4223 = vunpack.c.l.b16 %v4182
    %v4224 = vunpack.c.h.b16 %v4182
    %v4225 = vunpack.c.l.b16 %v4183
    %v4226 = vunpack.c.h.b16 %v4183
    %v4227 = vunpack.c.l.b16 %v4184
    %v4228 = vunpack.c.h.b16 %v4184
    %v4229 = vunpack.c.l.b16 %v4185
    %v4230 = vunpack.c.h.b16 %v4185
    %v4231 = vunpack.c.l.b16 %v4186
    %v4232 = vunpack.c.h.b16 %v4186
    %v4233 = vunpack.c.l.b16 %v4187
    %v4234 = vunpack.c.h.b16 %v4187
    %v4235 = vunpack.c.l.b16 %v4188
    %v4236 = vunpack.c.h.b16 %v4188
    %v4237 = vpack.c.b16 %v4207, %v4205
    %v4238 = vpack.c.b16 %v4208, %v4206
    %v4239 = vpack.c.b16 %v4211, %v4209
    %v4240 = vpack.c.b16 %v4212, %v4210
    %v4241 = vpack.c.b16 %v4215, %v4213
    %v4242 = vpack.c.b16 %v4216, %v4214
    %v4243 = vpack.c.b16 %v4219, %v4217
    %v4244 = vpack.c.b16 %v4220, %v4218
    %v4245 = vpack.c.b16 %v4223, %v4221
    %v4246 = vpack.c.b16 %v4224, %v4222
    %v4247 = vpack.c.b16 %v4227, %v4225
    %v4248 = vpack.c.b16 %v4228, %v4226
    %v4249 = vpack.c.b16 %v4231, %v4229
    %v4250 = vpack.c.b16 %v4232, %v4230
    %v4251 = vpack.c.b16 %v4235, %v4233
    %v4252 = vpack.c.b16 %v4236, %v4234
    %4269 = vmatprep.subr.bf16.mxu0 %v4252
    %4270 = vmatpush1.bf16.msra.mxu0 %v4251
    %4271 = vmatprep.subr.bf16.mxu0 %v4250
    %4272 = vmatpush1.bf16.msra.mxu0 %v4249
    %4273 = vmatprep.subr.bf16.mxu0 %v4248
    %4274 = vmatpush1.bf16.msra.mxu0 %v4247
    %4275 = vmatprep.subr.bf16.mxu0 %v4246
    %4276 = vmatpush1.bf16.msra.mxu0 %v4245
    %4277 = vmatprep.subr.bf16.mxu0 %v4244
    %4278 = vmatpush1.bf16.msra.mxu0 %v4243
    %4279 = vmatprep.subr.bf16.mxu0 %v4242
    %4280 = vmatpush1.bf16.msra.mxu0 %v4241
    %4281 = vmatprep.subr.bf16.mxu0 %v4240
    %4282 = vmatpush1.bf16.msra.mxu0 %v4239
    %4283 = vmatprep.subr.bf16.mxu0 %v4238
    %4284 = vmatpush1.bf16.msra.mxu0 %v4237
    %4285 = vmatprep.subr.bf16.mxu0 0
    %4286 = vmatpush2.bf16.msra.mxu0 0
    %4287 = vmatprep.subr.bf16.mxu0 0
    %4288 = vmatpush2.bf16.msra.mxu0 0
    %4289 = vmatprep.subr.bf16.mxu0 0
    %4290 = vmatpush2.bf16.msra.mxu0 0
    %4291 = vmatprep.subr.bf16.mxu0 0
    %4292 = vmatpush2.bf16.msra.mxu0 0
    %4293 = vmatprep.subr.bf16.mxu0 0
    %4294 = vmatpush2.bf16.msra.mxu0 0
    %4295 = vmatprep.subr.bf16.mxu0 0
    %4296 = vmatpush2.bf16.msra.mxu0 0
    %4297 = vmatprep.subr.bf16.mxu0 0
    %4298 = vmatpush2.bf16.msra.mxu0 0
    %4299 = vmatprep.subr.bf16.mxu0 0
    %4300 = vmatpush2.bf16.msra.mxu0 0
    %4301 = vmatprep.mubr.bf16.mxu0 0
    %4302 = vmatmul.mubr.bf16.gmra.mxu0 %v4172
    %v4303 = vpop.f32.mrf.mxu0
    %v4304 = vadd.f32 0.0, %v4303
    %v4305 = vpop.f32.mrf.mxu0
    %v4306 = vadd.f32 0.0, %v4305
    %v4307 = vpop.f32.mrf.mxu0
    %v4308 = vpop.f32.mrf.mxu0
    %4309 = vdwg.mxu0
    %v4310 = vld [vmem:[#allocation7] sm:$0xff]
    %v4312 = vsel %vm162, %v4310, 0
    %4314 = vmatprep.subr.mxu0 0.0
    %4315 = vmatpush1.msra.mxu0 0.0
    %4316 = vmatprep.subr.mxu0 0.0
    %4317 = vmatpush1.msra.mxu0 0.0
    %4318 = vmatprep.subr.mxu0 0.0
    %4319 = vmatpush1.msra.mxu0 0.0
    %4320 = vmatprep.subr.mxu0 0.0
    %4321 = vmatpush1.msra.mxu0 0.0
    %4322 = vmatprep.subr.mxu0 0.0
    %4323 = vmatpush1.msra.mxu0 0.0
    %4324 = vmatprep.subr.mxu0 0.0
    %4325 = vmatpush1.msra.mxu0 0.0
    %4326 = vmatprep.subr.mxu0 0.0
    %4327 = vmatpush1.msra.mxu0 0.0
    %4328 = vmatprep.subr.mxu0 0.0
    %4329 = vmatpush1.msra.mxu0 0.0
    %4330 = vmatprep.subr.mxu0 0.0
    %4331 = vmatpush1.msra.mxu0 0.0
    %4332 = vmatprep.subr.mxu0 0.0
    %4333 = vmatpush1.msra.mxu0 0.0
    %4334 = vmatprep.subr.mxu0 0.0
    %4335 = vmatpush1.msra.mxu0 0.0
    %4336 = vmatprep.subr.mxu0 0.0
    %4337 = vmatpush1.msra.mxu0 0.0
    %4338 = vmatprep.subr.mxu0 0.0
    %4339 = vmatpush1.msra.mxu0 0.0
    %4340 = vmatprep.subr.mxu0 0.0
    %4341 = vmatpush1.msra.mxu0 0.0
    %4342 = vmatprep.subr.mxu0 0.0
    %4343 = vmatpush1.msra.mxu0 0.0
    %4344 = vmatprep.subr.mxu0 %v133
    %4345 = vmatpush1.msra.mxu0 %v132
    %4346 = vmatprep.subr.mxu0 0.0
    %4347 = vmatpush2.msra.mxu0 0.0
    %4348 = vmatprep.subr.mxu0 0.0
    %4349 = vmatpush2.msra.mxu0 0.0
    %4350 = vmatprep.subr.mxu0 0.0
    %4351 = vmatpush2.msra.mxu0 0.0
    %4352 = vmatprep.subr.mxu0 0.0
    %4353 = vmatpush2.msra.mxu0 0.0
    %4354 = vmatprep.subr.mxu0 0.0
    %4355 = vmatpush2.msra.mxu0 0.0
    %4356 = vmatprep.subr.mxu0 0.0
    %4357 = vmatpush2.msra.mxu0 0.0
    %4358 = vmatprep.subr.mxu0 0.0
    %4359 = vmatpush2.msra.mxu0 0.0
    %4360 = vmatprep.subr.mxu0 0.0
    %4361 = vmatpush2.msra.mxu0 0.0
    %4362 = vmatprep.subr.mxu0 0.0
    %4363 = vmatpush2.msra.mxu0 0.0
    %4364 = vmatprep.subr.mxu0 0.0
    %4365 = vmatpush2.msra.mxu0 0.0
    %4366 = vmatprep.subr.mxu0 0.0
    %4367 = vmatpush2.msra.mxu0 0.0
    %4368 = vmatprep.subr.mxu0 0.0
    %4369 = vmatpush2.msra.mxu0 0.0
    %4370 = vmatprep.subr.mxu0 0.0
    %4371 = vmatpush2.msra.mxu0 0.0
    %4372 = vmatprep.subr.mxu0 0.0
    %4373 = vmatpush2.msra.mxu0 0.0
    %4374 = vmatprep.subr.mxu0 0.0
    %4375 = vmatpush2.msra.mxu0 0.0
    %4376 = vmatprep.subr.mxu0 0.0
    %4377 = vmatpush2.msra.mxu0 0.0
    %4378 = vmatprep.mubr.f32.mxu0 0.0
    %4379 = vmatmul.mubr.f32.gmra.mxu0 %v4312
    %v4380 = vpop.f32.mrf.mxu0
    %v4381 = vadd.f32 0.0, %v4380
    %v4382 = vpop.f32.mrf.mxu0
    %v4383 = vadd.f32 0.0, %v4382
    %4384 = vdwg.mxu0
    %v4385 = vxor.u32 %v4381, 2147483648
    %v4386 = vxor.u32 %v4383, 2147483648
    %v4387 = vmul.f32 %v4385, 1.442695
    %v4388 = vpow.pop %v4387
    %v4389 = vmul.f32 %v4386, 1.442695
    %v4390 = vpow.pop %v4389
    %v4391 = vadd.f32 %v4388, 1.0
    %v4392 = vadd.f32 %v4390, 1.0
    %v4393 = vrcp.pop %v4391
    %v4394 = vmul.f32 1.0, %v4393
    %v4395 = vrcp.pop %v4392
    %v4396 = vmul.f32 1.0, %v4395
    %v4397 = vmul.f32 %v132, %v4304
    %v4398 = vmul.f32 %v133, %v4306
    %v4399 = vmul.f32 %v4397, %v4394
    %v4400 = vmul.f32 %v4398, %v4396
    %4401 = vst [vmem:[#allocation16] sm:$0xff] %v4399
    %4402 = vst [vmem:[#allocation16 + $0x8] sm:$0xff] %v4400
    // Predicated region
    $region78: #{tpu_custom_call.1} parent=1 // pred_check
      _
    $region79: #{tpu_custom_call.1} parent=1 // pred_check_branch
      %4404 = sbr.rel (0) target = $region81
    $region80: #{tpu_custom_call.1} parent=1 // pred_region
      %s4406 = ssub.s32 256, 256
      %4407 = vsyncadd [#allocation6], %s4406
      %s4409 = sshll.u32 [#allocation16], 4
      %s4410 = int_to_ptr.vmem [resolvable:$true] %s4409
      %4412 = dma.vmem_to_hbm [thread:$0]  %s4410, 256, %s12, [#allocation6]
    $region81: #{tpu_custom_call.1} parent=1 // pred_fallthru
      _
    // Predicated region
    $region82: #{tpu_custom_call.1} parent=1 // pred_check
      _
    $region83: #{tpu_custom_call.1} parent=1 // pred_check_branch
      %4414 = sbr.rel (0) target = $region85
    $region84: #{tpu_custom_call.1} parent=1 // pred_region
      %4415 = dma.done [#allocation6], 256
    $region85: #{tpu_custom_call.1} parent=1 // pred_fallthru
      _
    %4416 = vsyncpa [#allocation5], 1
    %4417 = vsyncpa [#allocation8], 1
    %4418 = vsyncpa [#allocation11], 1
    %4419 = vsyncpa [#allocation14], 1
    %4420 = vsyncpa [#allocation6], 1

</llo_original>
